<compile_context>
chip_gen: v6e
topology: v6e:2x2x1
jax: 0.10.0
libtpu: 0.0.40
codegen_flags: <defaults>
</compile_context>

<pallas_src>
import functools

import jax
import jax.numpy as jnp
from jax.experimental import pallas as pl
from jax.experimental.pallas import tpu as pltpu

START_TAG = "<START>"
STOP_TAG = "<STOP>"

# ---- model hyper-parameters (small, consistent with the torch module) ----
VOCAB = 20
EMBED_DIM = 16          # embedding_dim
HIDDEN_DIM = 32         # hidden_dim
H2 = HIDDEN_DIM // 2    # per-direction LSTM hidden size
FEAT_PAD = 8 * H2       # 128: fused gate width AND lane-dense padded tag width
TAG_TO_IX = {"B": 0, "I": 1, "O": 2, START_TAG: 3, STOP_TAG: 4}
K = len(TAG_TO_IX)      # tagset_size
B = 2                   # batch
T = 8                   # sequence length


# --------------------------------------------------------------------------
# Single fused kernel: one-hot embedding/input projection + fused BiLSTM +
# hidden2tag MLP + Viterbi decode (batch element 0).
# --------------------------------------------------------------------------
def _bilstm_crf_kernel(sentf_ref, sentb_ref,            # VMEM int32 [T*B, 1]
                       tablef_ref, tableb_ref,          # [VOCAB, 8*H2] (bias folded)
                       whh_ref,                         # [2*H2, 8*H2] block-diag per gate
                       h0_ref, c0_ref,                  # [B, 2*H2] = (fwd | bwd)
                       w1a_ref, w1b_ref, b1_ref,        # [H2,H],[H2,H],[1,H]
                       w2_ref, b2_ref,                  # [H, FEAT_PAD],[1, FEAT_PAD]
                       trans_ref,                       # [K, K] transitions[next, prev]
                       feats_ref, score_ref, path_ref,  # out: [T*B,128], [1,1], [T,1]
                       hf_scr, hb_scr,                  # VMEM scratch [T*B, H2] each
                       *, T, B, H2, K, VOCAB, start_idx, stop_idx):
    TB = T * B
    f32 = jnp.float32

    # ---- input projection for all (t, b) rows, BOTH directions, off the chain ----
    iota_v = jax.lax.broadcasted_iota(jnp.int32, (TB, VOCAB), 1)
    oh_f = (sentf_ref[...] == iota_v).astype(f32)                 # [TB, VOCAB]
    oh_b = (sentb_ref[...] == iota_v).astype(f32)                 # rows time-reversed
    xpre = (jnp.dot(oh_f, tablef_ref[...], preferred_element_type=f32)
            + jnp.dot(oh_b, tableb_ref[...], preferred_element_type=f32))  # [TB, 8*H2]

    whh = whh_ref[...]                                            # [2*H2, 8*H2]
    h = h0_ref[...]                                               # [B, 2*H2] = (hf | hb)
    c = c0_ref[...]

    # ---- fused fwd+bwd recurrence: 1 matmul + 1 sigmoid + 2 tanh per step ----
    # gate column layout: i_f|i_b | f_f|f_b | o_f|o_b | g_f|g_b (each H2 wide)
    for t in range(T):
        tb = T - 1 - t
        pre = xpre[t * B:(t + 1) * B, :] + jnp.dot(h, whh, preferred_element_type=f32)
        sig = jax.nn.sigmoid(pre[:, :6 * H2])                     # i | f | o, both dirs
        g_g = jnp.tanh(pre[:, 6 * H2:])                           # g, both dirs
        i_g = sig[:, 0:2 * H2]
        f_g = sig[:, 2 * H2:4 * H2]
        o_g = sig[:, 4 * H2:6 * H2]
        c = f_g * c + i_g * g_g
        h = o_g * jnp.tanh(c)
        hf_scr[pl.ds(t * B, B), :] = h[:, 0:H2]                   # fwd hidden -> time t
        hb_scr[pl.ds(tb * B, B), :] = h[:, H2:2 * H2]             # bwd hidden -> time T-1-t

    # ---- hidden2tag MLP batched over all T*B rows, lane-dense padded output ----
    z = (jnp.dot(hf_scr[...], w1a_ref[...], preferred_element_type=f32)
         + jnp.dot(hb_scr[...], w1b_ref[...], preferred_element_type=f32)
         + b1_ref[...])
    z = jnp.maximum(z, 0.0)
    feats = jnp.dot(z, w2_ref[...], preferred_element_type=f32) + b2_ref[...]  # [TB, 128]
    feats_ref[...] = feats                                        # single lane-dense store

    # ---- fused Viterbi decode on batch element 0 (as in the torch module) ----
    trans = trans_ref[...]                                        # trans[next, prev]
    neg = f32(-10000.0)
    kf = f32(K)
    iota_row = jax.lax.broadcasted_iota(jnp.int32, (1, K), 1)
    iota_prev = jax.lax.broadcasted_iota(jnp.int32, (K, K), 1)
    iota_sub = jax.lax.broadcasted_iota(jnp.int32, (K, K), 0)
    eye_k = (iota_sub == iota_prev).astype(f32)
    ones_1k = jnp.ones((1, K), f32)

    def col_to_row(col):                                          # [K,1] -> [1,K]
        return jnp.dot(ones_1k, col * eye_k, preferred_element_type=f32)

    fv = jnp.where(iota_row == start_idx, f32(0.0), neg)          # [1, K]
    bp_rows = []
    for t in range(T):
        feat_t = feats[t * B:t * B + 1, 0:K]                      # batch-0 emission at t
        m = trans + fv                                            # m[next, prev]
        best_col = jnp.max(m, axis=1, keepdims=True)              # [K, 1]
        cand = jnp.where(m == best_col, iota_prev.astype(f32), kf)
        bp_rows.append(col_to_row(jnp.min(cand, axis=1, keepdims=True)))  # lowest idx on ties
        fv = col_to_row(best_col) + feat_t                        # [1, K]

    terminal = fv + trans[stop_idx:stop_idx + 1, :]               # [1, K]
    path_score = jnp.max(terminal, axis=1, keepdims=True)         # [1, 1]
    best_idx = jnp.min(jnp.where(terminal == path_score, iota_row.astype(f32), kf),
                       axis=1, keepdims=True)                     # [1, 1] f32 index
    score_ref[...] = path_score

    cur_i = best_idx.astype(jnp.int32)
    cur = (iota_row == cur_i).astype(f32)                         # one-hot current tag
    path_ref[pl.ds(T - 1, 1), :] = cur_i
    for t in range(T - 1, 0, -1):
        prev_f = jnp.sum(bp_rows[t] * cur, axis=1, keepdims=True)  # bp[t][cur]
        cur_i = prev_f.astype(jnp.int32)
        path_ref[pl.ds(t - 1, 1), :] = cur_i
        cur = (iota_row == cur_i).astype(f32)
    # TODO(synk): torch asserts the backtrack terminates at START; no in-kernel assert here.


def _run_bilstm_crf(params, sentence, h0, c0):
    """sentence int32 [B, T]; h0/c0 [2, B, H2] -> (feats_pad [T*B,128], score [1,1], path [T,1])."""
    b, t = sentence.shape
    sent_f = sentence.T.reshape(t * b, 1).astype(jnp.int32)               # row (t, b)
    sent_b = sentence[:, ::-1].T.reshape(t * b, 1).astype(jnp.int32)      # row (t, b) = word at T-1-t
    h_init = jnp.concatenate([h0[0], h0[1]], axis=1).astype(jnp.float32)  # [B, 2*H2]
    c_init = jnp.concatenate([c0[0], c0[1]], axis=1).astype(jnp.float32)

    kernel = functools.partial(
        _bilstm_crf_kernel, T=t, B=b, H2=H2, K=K, VOCAB=VOCAB,
        start_idx=TAG_TO_IX[START_TAG], stop_idx=TAG_TO_IX[STOP_TAG])
    vmem = pl.BlockSpec(memory_space=pltpu.MemorySpace.VMEM)

    feats_pad, score, path = pl.pallas_call(
        kernel,
        out_shape=(jax.ShapeDtypeStruct((t * b, FEAT_PAD), jnp.float32),
                   jax.ShapeDtypeStruct((1, 1), jnp.float32),
                   jax.ShapeDtypeStruct((t, 1), jnp.int32)),
        in_specs=[vmem] * 13,
        out_specs=(vmem, vmem, vmem),
        scratch_shapes=[pltpu.VMEM((t * b, H2), jnp.float32),
                        pltpu.VMEM((t * b, H2), jnp.float32)],
    )(sent_f, sent_b, params["table_f"], params["table_b"], params["whh"],
      h_init, c_init, params["w1a"], params["w1b"], params["b1"],
      params["w2p"], params["b2p"], params["transitions"])
    return feats_pad, score, path


def bilstm_crf_forward(params, sentence, h0, c0):
    """Mirrors BiLSTM_CRF.forward: returns (viterbi path score, best tag sequence [T])."""
    _, score, path = _run_bilstm_crf(params, sentence, h0, c0)
    return score[0, 0], path[:, 0]


def get_lstm_features(params, sentence, h0, c0):
    """Mirrors _get_lstm_features (with explicit h0/c0): returns [B, T, K]."""
    b, t = sentence.shape
    feats_pad, _, _ = _run_bilstm_crf(params, sentence, h0, c0)
    return jnp.transpose(feats_pad[:, :K].reshape(t, b, K), (1, 0, 2))


# --------------------------------------------------------------------------
# Parameter init: torch-style random weights, packed ONCE into kernel layout.
# --------------------------------------------------------------------------
def _pack_direction(w_ih, w_hh, b_ih, b_hh, direction):
    """Pack one torch LSTM direction into the fused gate layout.

    Fused column layout: i_f|i_b | f_f|f_b | o_f|o_b | g_f|g_b (each H2 wide).
    direction 0 (forward) fills the even slots and rows 0:H2 of whh (hf);
    direction 1 (backward) fills the odd slots and rows H2:2*H2 (hb).
    """
    def gates(w):  # torch gate row order (i, f, g, o) -> transposed, order (i, f, o, g)
        return (w[0:H2].T, w[H2:2 * H2].T, w[3 * H2:4 * H2].T, w[2 * H2:3 * H2].T)

    b = b_ih + b_hh
    b_gates = (b[0:H2], b[H2:2 * H2], b[3 * H2:4 * H2], b[2 * H2:3 * H2])
    g_ih = gates(w_ih)                          # each [E, H2]
    g_hh = gates(w_hh)                          # each [H2, H2]

    e = w_ih.shape[1]
    wih_sc = jnp.zeros((e, 8 * H2), jnp.float32)
    whh_sc = jnp.zeros((2 * H2, 8 * H2), jnp.float32)
    bias_sc = jnp.zeros((1, 8 * H2), jnp.float32)
    row0 = direction * H2
    for gi in range(4):
        col0 = (2 * gi + direction) * H2
        wih_sc = wih_sc.at[:, col0:col0 + H2].set(g_ih[gi])
        whh_sc = whh_sc.at[row0:row0 + H2, col0:col0 + H2].set(g_hh[gi])
        bias_sc = bias_sc.at[:, col0:col0 + H2].set(b_gates[gi].reshape(1, H2))
    return wih_sc, whh_sc, bias_sc


def init_params(key):
    ks = jax.random.split(key, 14)

    def unif(k, shape, fan):
        bound = 1.0 / float(fan) ** 0.5
        return jax.random.uniform(k, shape, jnp.float32, -bound, bound)

    emb = jax.random.normal(ks[0], (VOCAB, EMBED_DIM), jnp.float32)

    # torch-layout LSTM params for both directions (gate row order i, f, g, o).
    wih_f = unif(ks[1], (4 * H2, EMBED_DIM), H2)
    whh_f = unif(ks[2], (4 * H2, H2), H2)
    bih_f = unif(ks[3], (4 * H2,), H2)
    bhh_f = unif(ks[4], (4 * H2,), H2)
    wih_b = unif(ks[5], (4 * H2, EMBED_DIM), H2)
    whh_b = unif(ks[6], (4 * H2, H2), H2)
    bih_b = unif(ks[7], (4 * H2,), H2)
    bhh_b = unif(ks[8], (4 * H2,), H2)

    wihF, whhF, biasF = _pack_direction(wih_f, whh_f, bih_f, bhh_f, direction=0)
    wihB, whhB, biasB = _pack_direction(wih_b, whh_b, bih_b, bhh_b, direction=1)

    p = {}
    p["whh"] = whhF + whhB                          # [2*H2, 8*H2] block-diag per gate
    # Input projection hoisted out of the recurrence entirely (bias folded in):
    p["table_f"] = jnp.dot(emb, wihF) + biasF       # [VOCAB, 8*H2]
    p["table_b"] = jnp.dot(emb, wihB) + biasB       # [VOCAB, 8*H2]

    # hidden2tag: Linear(H, H) -> ReLU -> Linear(H, K), pre-transposed/split/padded.
    w1 = unif(ks[9], (HIDDEN_DIM, HIDDEN_DIM), HIDDEN_DIM)    # torch [out, in]
    b1 = unif(ks[10], (HIDDEN_DIM,), HIDDEN_DIM)
    w2 = unif(ks[11], (K, HIDDEN_DIM), HIDDEN_DIM)
    b2 = unif(ks[12], (K,), HIDDEN_DIM)
    w1_t = w1.T                                     # [in, out] = [H, H]
    p["w1a"] = w1_t[:H2, :]                         # rows for forward hidden
    p["w1b"] = w1_t[H2:, :]                         # rows for backward hidden
    p["b1"] = b1.reshape(1, HIDDEN_DIM)
    p["w2p"] = jnp.zeros((HIDDEN_DIM, FEAT_PAD), jnp.float32).at[:, :K].set(w2.T)
    p["b2p"] = jnp.zeros((1, FEAT_PAD), jnp.float32).at[:, :K].set(b2.reshape(1, K))

    # CRF transitions: transitions[next, prev]
    trans = jax.random.normal(ks[13], (K, K), jnp.float32)
    trans = trans.at[TAG_TO_IX[START_TAG], :].set(-10000.0)
    trans = trans.at[:, TAG_TO_IX[STOP_TAG]].set(-10000.0)
    p["transitions"] = trans
    return p


if __name__ == "__main__":
    key = jax.random.PRNGKey(0)
    pkey, skey, hkey, ckey = jax.random.split(key, 4)

    params = init_params(pkey)
    sentence = jax.random.randint(skey, (B, T), 0, VOCAB, dtype=jnp.int32)
    # the torch module draws random (h0, c0) per forward; here drawn deterministically
    h0 = jax.random.normal(hkey, (2, B, H2), jnp.float32)
    c0 = jax.random.normal(ckey, (2, B, H2), jnp.float32)

    fwd = jax.jit(bilstm_crf_forward)
    score, tag_seq = fwd(params, sentence, h0, c0)
    jax.block_until_ready((score, tag_seq))
    print("KERNEL_OK")
</pallas_src>

<mosaic_0001>
module attributes {stable_mosaic.version = 11 : i64} {
  func.func @_bilstm_crf_kernel(%arg0: memref<16x1xi32, #tpu.memory_space<vmem>>, %arg1: memref<16x1xi32, #tpu.memory_space<vmem>>, %arg2: memref<20x128xf32, #tpu.memory_space<vmem>>, %arg3: memref<20x128xf32, #tpu.memory_space<vmem>>, %arg4: memref<32x128xf32, #tpu.memory_space<vmem>>, %arg5: memref<2x32xf32, #tpu.memory_space<vmem>>, %arg6: memref<2x32xf32, #tpu.memory_space<vmem>>, %arg7: memref<16x32xf32, #tpu.memory_space<vmem>>, %arg8: memref<16x32xf32, #tpu.memory_space<vmem>>, %arg9: memref<1x32xf32, #tpu.memory_space<vmem>>, %arg10: memref<32x128xf32, #tpu.memory_space<vmem>>, %arg11: memref<1x128xf32, #tpu.memory_space<vmem>>, %arg12: memref<5x5xf32, #tpu.memory_space<vmem>>, %arg13: memref<16x128xf32, #tpu.memory_space<vmem>>, %arg14: memref<1x1xf32, #tpu.memory_space<vmem>>, %arg15: memref<8x1xi32, #tpu.memory_space<vmem>>, %arg16: memref<16x16xf32, #tpu.memory_space<vmem>>, %arg17: memref<16x16xf32, #tpu.memory_space<vmem>>) attributes {dimension_semantics = [], scalar_prefetch = 0 : i64, scratch_operands = 2 : i64, tpu.core_type = #tpu.core_type<tc>} {
    %0 = tpu.iota {dimensions = array<i32: 1>} : vector<16x20xi32>
    %c0 = arith.constant 0 : index
    %c0_0 = arith.constant 0 : index
    %1 = vector.load %arg0[%c0, %c0_0] : memref<16x1xi32, #tpu.memory_space<vmem>>, vector<16x1xi32>
    %2 = vector.broadcast %1 : vector<16x1xi32> to vector<16x20xi32>
    %3 = arith.cmpi eq, %2, %0 : vector<16x20xi32>
    %4 = arith.extui %3 : vector<16x20xi1> to vector<16x20xi32>
    %5 = arith.sitofp %4 : vector<16x20xi32> to vector<16x20xf32>
    %c0_1 = arith.constant 0 : index
    %c0_2 = arith.constant 0 : index
    %6 = vector.load %arg1[%c0_1, %c0_2] : memref<16x1xi32, #tpu.memory_space<vmem>>, vector<16x1xi32>
    %7 = vector.broadcast %6 : vector<16x1xi32> to vector<16x20xi32>
    %8 = arith.cmpi eq, %7, %0 : vector<16x20xi32>
    %9 = arith.extui %8 : vector<16x20xi1> to vector<16x20xi32>
    %10 = arith.sitofp %9 : vector<16x20xi32> to vector<16x20xf32>
    %c0_3 = arith.constant 0 : index
    %c0_4 = arith.constant 0 : index
    %11 = vector.load %arg2[%c0_3, %c0_4] : memref<20x128xf32, #tpu.memory_space<vmem>>, vector<20x128xf32>
    %cst = arith.constant dense<0.000000e+00> : vector<16x128xf32>
    %12 = tpu.matmul %5, %11, %cst {dimension_numbers = #tpu.dot_dimension_numbers<[1], [0], [0], [1], [0, 0, 1, 1], [], []>} : vector<16x20xf32>, vector<20x128xf32>, vector<16x128xf32> -> vector<16x128xf32>
    %c0_5 = arith.constant 0 : index
    %c0_6 = arith.constant 0 : index
    %13 = vector.load %arg3[%c0_5, %c0_6] : memref<20x128xf32, #tpu.memory_space<vmem>>, vector<20x128xf32>
    %cst_7 = arith.constant dense<0.000000e+00> : vector<16x128xf32>
    %14 = tpu.matmul %10, %13, %cst_7 {dimension_numbers = #tpu.dot_dimension_numbers<[1], [0], [0], [1], [0, 0, 1, 1], [], []>} : vector<16x20xf32>, vector<20x128xf32>, vector<16x128xf32> -> vector<16x128xf32>
    %15 = arith.addf %12, %14 : vector<16x128xf32>
    %c0_8 = arith.constant 0 : index
    %c0_9 = arith.constant 0 : index
    %16 = vector.load %arg4[%c0_8, %c0_9] : memref<32x128xf32, #tpu.memory_space<vmem>>, vector<32x128xf32>
    %c0_10 = arith.constant 0 : index
    %c0_11 = arith.constant 0 : index
    %17 = vector.load %arg5[%c0_10, %c0_11] : memref<2x32xf32, #tpu.memory_space<vmem>>, vector<2x32xf32>
    %c0_12 = arith.constant 0 : index
    %c0_13 = arith.constant 0 : index
    %18 = vector.load %arg6[%c0_12, %c0_13] : memref<2x32xf32, #tpu.memory_space<vmem>>, vector<2x32xf32>
    %19 = vector.extract_strided_slice %15 {offsets = [0, 0], sizes = [2, 128], strides = [1, 1]} : vector<16x128xf32> to vector<2x128xf32>
    %cst_14 = arith.constant dense<0.000000e+00> : vector<2x128xf32>
    %20 = tpu.matmul %17, %16, %cst_14 {dimension_numbers = #tpu.dot_dimension_numbers<[1], [0], [0], [1], [0, 0, 1, 1], [], []>} : vector<2x32xf32>, vector<32x128xf32>, vector<2x128xf32> -> vector<2x128xf32>
    %21 = arith.addf %19, %20 : vector<2x128xf32>
    %22 = vector.extract_strided_slice %21 {offsets = [0, 0], sizes = [2, 96], strides = [1, 1]} : vector<2x128xf32> to vector<2x96xf32>
    %23 = arith.negf %22 : vector<2x96xf32>
    %24 = math.exp %23 : vector<2x96xf32>
    %cst_15 = arith.constant 1.000000e+00 : f32
    %25 = vector.broadcast %cst_15 : f32 to vector<2x96xf32>
    %26 = arith.addf %25, %24 : vector<2x96xf32>
    %27 = arith.divf %25, %26 : vector<2x96xf32>
    %28 = vector.extract_strided_slice %21 {offsets = [0, 96], sizes = [2, 32], strides = [1, 1]} : vector<2x128xf32> to vector<2x32xf32>
    %29 = math.tanh %28 : vector<2x32xf32>
    %30 = vector.extract_strided_slice %27 {offsets = [0, 0], sizes = [2, 32], strides = [1, 1]} : vector<2x96xf32> to vector<2x32xf32>
    %31 = vector.extract_strided_slice %27 {offsets = [0, 32], sizes = [2, 32], strides = [1, 1]} : vector<2x96xf32> to vector<2x32xf32>
    %32 = vector.extract_strided_slice %27 {offsets = [0, 64], sizes = [2, 32], strides = [1, 1]} : vector<2x96xf32> to vector<2x32xf32>
    %33 = arith.mulf %31, %18 : vector<2x32xf32>
    %34 = arith.mulf %30, %29 : vector<2x32xf32>
    %35 = arith.addf %33, %34 : vector<2x32xf32>
    %36 = math.tanh %35 : vector<2x32xf32>
    %37 = arith.mulf %32, %36 : vector<2x32xf32>
    %38 = vector.extract_strided_slice %37 {offsets = [0, 0], sizes = [2, 16], strides = [1, 1]} : vector<2x32xf32> to vector<2x16xf32>
    %c0_16 = arith.constant 0 : index
    %c0_17 = arith.constant 0 : index
    %39 = vector.load %arg16[%c0_16, %c0_17] : memref<16x16xf32, #tpu.memory_space<vmem>>, vector<2x16xf32>
    tpu.vector_store %arg16[%c0_16, %c0_17], %38 {strides = array<i32>} : memref<16x16xf32, #tpu.memory_space<vmem>>, vector<2x16xf32>,
    %40 = vector.extract_strided_slice %37 {offsets = [0, 16], sizes = [2, 16], strides = [1, 1]} : vector<2x32xf32> to vector<2x16xf32>
    %c14 = arith.constant 14 : index
    %c0_18 = arith.constant 0 : index
    %41 = vector.load %arg17[%c14, %c0_18] : memref<16x16xf32, #tpu.memory_space<vmem>>, vector<2x16xf32>
    tpu.vector_store %arg17[%c14, %c0_18], %40 {strides = array<i32>} : memref<16x16xf32, #tpu.memory_space<vmem>>, vector<2x16xf32>,
    %42 = vector.extract_strided_slice %15 {offsets = [2, 0], sizes = [2, 128], strides = [1, 1]} : vector<16x128xf32> to vector<2x128xf32>
    %cst_19 = arith.constant dense<0.000000e+00> : vector<2x128xf32>
    %43 = tpu.matmul %37, %16, %cst_19 {dimension_numbers = #tpu.dot_dimension_numbers<[1], [0], [0], [1], [0, 0, 1, 1], [], []>} : vector<2x32xf32>, vector<32x128xf32>, vector<2x128xf32> -> vector<2x128xf32>
    %44 = arith.addf %42, %43 : vector<2x128xf32>
    %45 = vector.extract_strided_slice %44 {offsets = [0, 0], sizes = [2, 96], strides = [1, 1]} : vector<2x128xf32> to vector<2x96xf32>
    %46 = arith.negf %45 : vector<2x96xf32>
    %47 = math.exp %46 : vector<2x96xf32>
    %cst_20 = arith.constant 1.000000e+00 : f32
    %48 = vector.broadcast %cst_20 : f32 to vector<2x96xf32>
    %49 = arith.addf %48, %47 : vector<2x96xf32>
    %50 = arith.divf %48, %49 : vector<2x96xf32>
    %51 = vector.extract_strided_slice %44 {offsets = [0, 96], sizes = [2, 32], strides = [1, 1]} : vector<2x128xf32> to vector<2x32xf32>
    %52 = math.tanh %51 : vector<2x32xf32>
    %53 = vector.extract_strided_slice %50 {offsets = [0, 0], sizes = [2, 32], strides = [1, 1]} : vector<2x96xf32> to vector<2x32xf32>
    %54 = vector.extract_strided_slice %50 {offsets = [0, 32], sizes = [2, 32], strides = [1, 1]} : vector<2x96xf32> to vector<2x32xf32>
    %55 = vector.extract_strided_slice %50 {offsets = [0, 64], sizes = [2, 32], strides = [1, 1]} : vector<2x96xf32> to vector<2x32xf32>
    %56 = arith.mulf %54, %35 : vector<2x32xf32>
    %57 = arith.mulf %53, %52 : vector<2x32xf32>
    %58 = arith.addf %56, %57 : vector<2x32xf32>
    %59 = math.tanh %58 : vector<2x32xf32>
    %60 = arith.mulf %55, %59 : vector<2x32xf32>
    %61 = vector.extract_strided_slice %60 {offsets = [0, 0], sizes = [2, 16], strides = [1, 1]} : vector<2x32xf32> to vector<2x16xf32>
    %c2 = arith.constant 2 : index
    %c0_21 = arith.constant 0 : index
    %62 = vector.load %arg16[%c2, %c0_21] : memref<16x16xf32, #tpu.memory_space<vmem>>, vector<2x16xf32>
    tpu.vector_store %arg16[%c2, %c0_21], %61 {strides = array<i32>} : memref<16x16xf32, #tpu.memory_space<vmem>>, vector<2x16xf32>,
    %63 = vector.extract_strided_slice %60 {offsets = [0, 16], sizes = [2, 16], strides = [1, 1]} : vector<2x32xf32> to vector<2x16xf32>
    %c12 = arith.constant 12 : index
    %c0_22 = arith.constant 0 : index
    %64 = vector.load %arg17[%c12, %c0_22] : memref<16x16xf32, #tpu.memory_space<vmem>>, vector<2x16xf32>
    tpu.vector_store %arg17[%c12, %c0_22], %63 {strides = array<i32>} : memref<16x16xf32, #tpu.memory_space<vmem>>, vector<2x16xf32>,
    %65 = vector.extract_strided_slice %15 {offsets = [4, 0], sizes = [2, 128], strides = [1, 1]} : vector<16x128xf32> to vector<2x128xf32>
    %cst_23 = arith.constant dense<0.000000e+00> : vector<2x128xf32>
    %66 = tpu.matmul %60, %16, %cst_23 {dimension_numbers = #tpu.dot_dimension_numbers<[1], [0], [0], [1], [0, 0, 1, 1], [], []>} : vector<2x32xf32>, vector<32x128xf32>, vector<2x128xf32> -> vector<2x128xf32>
    %67 = arith.addf %65, %66 : vector<2x128xf32>
    %68 = vector.extract_strided_slice %67 {offsets = [0, 0], sizes = [2, 96], strides = [1, 1]} : vector<2x128xf32> to vector<2x96xf32>
    %69 = arith.negf %68 : vector<2x96xf32>
    %70 = math.exp %69 : vector<2x96xf32>
    %cst_24 = arith.constant 1.000000e+00 : f32
    %71 = vector.broadcast %cst_24 : f32 to vector<2x96xf32>
    %72 = arith.addf %71, %70 : vector<2x96xf32>
    %73 = arith.divf %71, %72 : vector<2x96xf32>
    %74 = vector.extract_strided_slice %67 {offsets = [0, 96], sizes = [2, 32], strides = [1, 1]} : vector<2x128xf32> to vector<2x32xf32>
    %75 = math.tanh %74 : vector<2x32xf32>
    %76 = vector.extract_strided_slice %73 {offsets = [0, 0], sizes = [2, 32], strides = [1, 1]} : vector<2x96xf32> to vector<2x32xf32>
    %77 = vector.extract_strided_slice %73 {offsets = [0, 32], sizes = [2, 32], strides = [1, 1]} : vector<2x96xf32> to vector<2x32xf32>
    %78 = vector.extract_strided_slice %73 {offsets = [0, 64], sizes = [2, 32], strides = [1, 1]} : vector<2x96xf32> to vector<2x32xf32>
    %79 = arith.mulf %77, %58 : vector<2x32xf32>
    %80 = arith.mulf %76, %75 : vector<2x32xf32>
    %81 = arith.addf %79, %80 : vector<2x32xf32>
    %82 = math.tanh %81 : vector<2x32xf32>
    %83 = arith.mulf %78, %82 : vector<2x32xf32>
    %84 = vector.extract_strided_slice %83 {offsets = [0, 0], sizes = [2, 16], strides = [1, 1]} : vector<2x32xf32> to vector<2x16xf32>
    %c4 = arith.constant 4 : index
    %c0_25 = arith.constant 0 : index
    %85 = vector.load %arg16[%c4, %c0_25] : memref<16x16xf32, #tpu.memory_space<vmem>>, vector<2x16xf32>
    tpu.vector_store %arg16[%c4, %c0_25], %84 {strides = array<i32>} : memref<16x16xf32, #tpu.memory_space<vmem>>, vector<2x16xf32>,
    %86 = vector.extract_strided_slice %83 {offsets = [0, 16], sizes = [2, 16], strides = [1, 1]} : vector<2x32xf32> to vector<2x16xf32>
    %c10 = arith.constant 10 : index
    %c0_26 = arith.constant 0 : index
    %87 = vector.load %arg17[%c10, %c0_26] : memref<16x16xf32, #tpu.memory_space<vmem>>, vector<2x16xf32>
    tpu.vector_store %arg17[%c10, %c0_26], %86 {strides = array<i32>} : memref<16x16xf32, #tpu.memory_space<vmem>>, vector<2x16xf32>,
    %88 = vector.extract_strided_slice %15 {offsets = [6, 0], sizes = [2, 128], strides = [1, 1]} : vector<16x128xf32> to vector<2x128xf32>
    %cst_27 = arith.constant dense<0.000000e+00> : vector<2x128xf32>
    %89 = tpu.matmul %83, %16, %cst_27 {dimension_numbers = #tpu.dot_dimension_numbers<[1], [0], [0], [1], [0, 0, 1, 1], [], []>} : vector<2x32xf32>, vector<32x128xf32>, vector<2x128xf32> -> vector<2x128xf32>
    %90 = arith.addf %88, %89 : vector<2x128xf32>
    %91 = vector.extract_strided_slice %90 {offsets = [0, 0], sizes = [2, 96], strides = [1, 1]} : vector<2x128xf32> to vector<2x96xf32>
    %92 = arith.negf %91 : vector<2x96xf32>
    %93 = math.exp %92 : vector<2x96xf32>
    %cst_28 = arith.constant 1.000000e+00 : f32
    %94 = vector.broadcast %cst_28 : f32 to vector<2x96xf32>
    %95 = arith.addf %94, %93 : vector<2x96xf32>
    %96 = arith.divf %94, %95 : vector<2x96xf32>
    %97 = vector.extract_strided_slice %90 {offsets = [0, 96], sizes = [2, 32], strides = [1, 1]} : vector<2x128xf32> to vector<2x32xf32>
    %98 = math.tanh %97 : vector<2x32xf32>
    %99 = vector.extract_strided_slice %96 {offsets = [0, 0], sizes = [2, 32], strides = [1, 1]} : vector<2x96xf32> to vector<2x32xf32>
    %100 = vector.extract_strided_slice %96 {offsets = [0, 32], sizes = [2, 32], strides = [1, 1]} : vector<2x96xf32> to vector<2x32xf32>
    %101 = vector.extract_strided_slice %96 {offsets = [0, 64], sizes = [2, 32], strides = [1, 1]} : vector<2x96xf32> to vector<2x32xf32>
    %102 = arith.mulf %100, %81 : vector<2x32xf32>
    %103 = arith.mulf %99, %98 : vector<2x32xf32>
    %104 = arith.addf %102, %103 : vector<2x32xf32>
    %105 = math.tanh %104 : vector<2x32xf32>
    %106 = arith.mulf %101, %105 : vector<2x32xf32>
    %107 = vector.extract_strided_slice %106 {offsets = [0, 0], sizes = [2, 16], strides = [1, 1]} : vector<2x32xf32> to vector<2x16xf32>
    %c6 = arith.constant 6 : index
    %c0_29 = arith.constant 0 : index
    %108 = vector.load %arg16[%c6, %c0_29] : memref<16x16xf32, #tpu.memory_space<vmem>>, vector<2x16xf32>
    tpu.vector_store %arg16[%c6, %c0_29], %107 {strides = array<i32>} : memref<16x16xf32, #tpu.memory_space<vmem>>, vector<2x16xf32>,
    %109 = vector.extract_strided_slice %106 {offsets = [0, 16], sizes = [2, 16], strides = [1, 1]} : vector<2x32xf32> to vector<2x16xf32>
    %c8 = arith.constant 8 : index
    %c0_30 = arith.constant 0 : index
    %110 = vector.load %arg17[%c8, %c0_30] : memref<16x16xf32, #tpu.memory_space<vmem>>, vector<2x16xf32>
    tpu.vector_store %arg17[%c8, %c0_30], %109 {strides = array<i32>} : memref<16x16xf32, #tpu.memory_space<vmem>>, vector<2x16xf32>,
    %111 = vector.extract_strided_slice %15 {offsets = [8, 0], sizes = [2, 128], strides = [1, 1]} : vector<16x128xf32> to vector<2x128xf32>
    %cst_31 = arith.constant dense<0.000000e+00> : vector<2x128xf32>
    %112 = tpu.matmul %106, %16, %cst_31 {dimension_numbers = #tpu.dot_dimension_numbers<[1], [0], [0], [1], [0, 0, 1, 1], [], []>} : vector<2x32xf32>, vector<32x128xf32>, vector<2x128xf32> -> vector<2x128xf32>
    %113 = arith.addf %111, %112 : vector<2x128xf32>
    %114 = vector.extract_strided_slice %113 {offsets = [0, 0], sizes = [2, 96], strides = [1, 1]} : vector<2x128xf32> to vector<2x96xf32>
    %115 = arith.negf %114 : vector<2x96xf32>
    %116 = math.exp %115 : vector<2x96xf32>
    %cst_32 = arith.constant 1.000000e+00 : f32
    %117 = vector.broadcast %cst_32 : f32 to vector<2x96xf32>
    %118 = arith.addf %117, %116 : vector<2x96xf32>
    %119 = arith.divf %117, %118 : vector<2x96xf32>
    %120 = vector.extract_strided_slice %113 {offsets = [0, 96], sizes = [2, 32], strides = [1, 1]} : vector<2x128xf32> to vector<2x32xf32>
    %121 = math.tanh %120 : vector<2x32xf32>
    %122 = vector.extract_strided_slice %119 {offsets = [0, 0], sizes = [2, 32], strides = [1, 1]} : vector<2x96xf32> to vector<2x32xf32>
    %123 = vector.extract_strided_slice %119 {offsets = [0, 32], sizes = [2, 32], strides = [1, 1]} : vector<2x96xf32> to vector<2x32xf32>
    %124 = vector.extract_strided_slice %119 {offsets = [0, 64], sizes = [2, 32], strides = [1, 1]} : vector<2x96xf32> to vector<2x32xf32>
    %125 = arith.mulf %123, %104 : vector<2x32xf32>
    %126 = arith.mulf %122, %121 : vector<2x32xf32>
    %127 = arith.addf %125, %126 : vector<2x32xf32>
    %128 = math.tanh %127 : vector<2x32xf32>
    %129 = arith.mulf %124, %128 : vector<2x32xf32>
    %130 = vector.extract_strided_slice %129 {offsets = [0, 0], sizes = [2, 16], strides = [1, 1]} : vector<2x32xf32> to vector<2x16xf32>
    %c8_33 = arith.constant 8 : index
    %c0_34 = arith.constant 0 : index
    %131 = vector.load %arg16[%c8_33, %c0_34] : memref<16x16xf32, #tpu.memory_space<vmem>>, vector<2x16xf32>
    tpu.vector_store %arg16[%c8_33, %c0_34], %130 {strides = array<i32>} : memref<16x16xf32, #tpu.memory_space<vmem>>, vector<2x16xf32>,
    %132 = vector.extract_strided_slice %129 {offsets = [0, 16], sizes = [2, 16], strides = [1, 1]} : vector<2x32xf32> to vector<2x16xf32>
    %c6_35 = arith.constant 6 : index
    %c0_36 = arith.constant 0 : index
    %133 = vector.load %arg17[%c6_35, %c0_36] : memref<16x16xf32, #tpu.memory_space<vmem>>, vector<2x16xf32>
    tpu.vector_store %arg17[%c6_35, %c0_36], %132 {strides = array<i32>} : memref<16x16xf32, #tpu.memory_space<vmem>>, vector<2x16xf32>,
    %134 = vector.extract_strided_slice %15 {offsets = [10, 0], sizes = [2, 128], strides = [1, 1]} : vector<16x128xf32> to vector<2x128xf32>
    %cst_37 = arith.constant dense<0.000000e+00> : vector<2x128xf32>
    %135 = tpu.matmul %129, %16, %cst_37 {dimension_numbers = #tpu.dot_dimension_numbers<[1], [0], [0], [1], [0, 0, 1, 1], [], []>} : vector<2x32xf32>, vector<32x128xf32>, vector<2x128xf32> -> vector<2x128xf32>
    %136 = arith.addf %134, %135 : vector<2x128xf32>
    %137 = vector.extract_strided_slice %136 {offsets = [0, 0], sizes = [2, 96], strides = [1, 1]} : vector<2x128xf32> to vector<2x96xf32>
    %138 = arith.negf %137 : vector<2x96xf32>
    %139 = math.exp %138 : vector<2x96xf32>
    %cst_38 = arith.constant 1.000000e+00 : f32
    %140 = vector.broadcast %cst_38 : f32 to vector<2x96xf32>
    %141 = arith.addf %140, %139 : vector<2x96xf32>
    %142 = arith.divf %140, %141 : vector<2x96xf32>
    %143 = vector.extract_strided_slice %136 {offsets = [0, 96], sizes = [2, 32], strides = [1, 1]} : vector<2x128xf32> to vector<2x32xf32>
    %144 = math.tanh %143 : vector<2x32xf32>
    %145 = vector.extract_strided_slice %142 {offsets = [0, 0], sizes = [2, 32], strides = [1, 1]} : vector<2x96xf32> to vector<2x32xf32>
    %146 = vector.extract_strided_slice %142 {offsets = [0, 32], sizes = [2, 32], strides = [1, 1]} : vector<2x96xf32> to vector<2x32xf32>
    %147 = vector.extract_strided_slice %142 {offsets = [0, 64], sizes = [2, 32], strides = [1, 1]} : vector<2x96xf32> to vector<2x32xf32>
    %148 = arith.mulf %146, %127 : vector<2x32xf32>
    %149 = arith.mulf %145, %144 : vector<2x32xf32>
    %150 = arith.addf %148, %149 : vector<2x32xf32>
    %151 = math.tanh %150 : vector<2x32xf32>
    %152 = arith.mulf %147, %151 : vector<2x32xf32>
    %153 = vector.extract_strided_slice %152 {offsets = [0, 0], sizes = [2, 16], strides = [1, 1]} : vector<2x32xf32> to vector<2x16xf32>
    %c10_39 = arith.constant 10 : index
    %c0_40 = arith.constant 0 : index
    %154 = vector.load %arg16[%c10_39, %c0_40] : memref<16x16xf32, #tpu.memory_space<vmem>>, vector<2x16xf32>
    tpu.vector_store %arg16[%c10_39, %c0_40], %153 {strides = array<i32>} : memref<16x16xf32, #tpu.memory_space<vmem>>, vector<2x16xf32>,
    %155 = vector.extract_strided_slice %152 {offsets = [0, 16], sizes = [2, 16], strides = [1, 1]} : vector<2x32xf32> to vector<2x16xf32>
    %c4_41 = arith.constant 4 : index
    %c0_42 = arith.constant 0 : index
    %156 = vector.load %arg17[%c4_41, %c0_42] : memref<16x16xf32, #tpu.memory_space<vmem>>, vector<2x16xf32>
    tpu.vector_store %arg17[%c4_41, %c0_42], %155 {strides = array<i32>} : memref<16x16xf32, #tpu.memory_space<vmem>>, vector<2x16xf32>,
    %157 = vector.extract_strided_slice %15 {offsets = [12, 0], sizes = [2, 128], strides = [1, 1]} : vector<16x128xf32> to vector<2x128xf32>
    %cst_43 = arith.constant dense<0.000000e+00> : vector<2x128xf32>
    %158 = tpu.matmul %152, %16, %cst_43 {dimension_numbers = #tpu.dot_dimension_numbers<[1], [0], [0], [1], [0, 0, 1, 1], [], []>} : vector<2x32xf32>, vector<32x128xf32>, vector<2x128xf32> -> vector<2x128xf32>
    %159 = arith.addf %157, %158 : vector<2x128xf32>
    %160 = vector.extract_strided_slice %159 {offsets = [0, 0], sizes = [2, 96], strides = [1, 1]} : vector<2x128xf32> to vector<2x96xf32>
    %161 = arith.negf %160 : vector<2x96xf32>
    %162 = math.exp %161 : vector<2x96xf32>
    %cst_44 = arith.constant 1.000000e+00 : f32
    %163 = vector.broadcast %cst_44 : f32 to vector<2x96xf32>
    %164 = arith.addf %163, %162 : vector<2x96xf32>
    %165 = arith.divf %163, %164 : vector<2x96xf32>
    %166 = vector.extract_strided_slice %159 {offsets = [0, 96], sizes = [2, 32], strides = [1, 1]} : vector<2x128xf32> to vector<2x32xf32>
    %167 = math.tanh %166 : vector<2x32xf32>
    %168 = vector.extract_strided_slice %165 {offsets = [0, 0], sizes = [2, 32], strides = [1, 1]} : vector<2x96xf32> to vector<2x32xf32>
    %169 = vector.extract_strided_slice %165 {offsets = [0, 32], sizes = [2, 32], strides = [1, 1]} : vector<2x96xf32> to vector<2x32xf32>
    %170 = vector.extract_strided_slice %165 {offsets = [0, 64], sizes = [2, 32], strides = [1, 1]} : vector<2x96xf32> to vector<2x32xf32>
    %171 = arith.mulf %169, %150 : vector<2x32xf32>
    %172 = arith.mulf %168, %167 : vector<2x32xf32>
    %173 = arith.addf %171, %172 : vector<2x32xf32>
    %174 = math.tanh %173 : vector<2x32xf32>
    %175 = arith.mulf %170, %174 : vector<2x32xf32>
    %176 = vector.extract_strided_slice %175 {offsets = [0, 0], sizes = [2, 16], strides = [1, 1]} : vector<2x32xf32> to vector<2x16xf32>
    %c12_45 = arith.constant 12 : index
    %c0_46 = arith.constant 0 : index
    %177 = vector.load %arg16[%c12_45, %c0_46] : memref<16x16xf32, #tpu.memory_space<vmem>>, vector<2x16xf32>
    tpu.vector_store %arg16[%c12_45, %c0_46], %176 {strides = array<i32>} : memref<16x16xf32, #tpu.memory_space<vmem>>, vector<2x16xf32>,
    %178 = vector.extract_strided_slice %175 {offsets = [0, 16], sizes = [2, 16], strides = [1, 1]} : vector<2x32xf32> to vector<2x16xf32>
    %c2_47 = arith.constant 2 : index
    %c0_48 = arith.constant 0 : index
    %179 = vector.load %arg17[%c2_47, %c0_48] : memref<16x16xf32, #tpu.memory_space<vmem>>, vector<2x16xf32>
    tpu.vector_store %arg17[%c2_47, %c0_48], %178 {strides = array<i32>} : memref<16x16xf32, #tpu.memory_space<vmem>>, vector<2x16xf32>,
    %180 = vector.extract_strided_slice %15 {offsets = [14, 0], sizes = [2, 128], strides = [1, 1]} : vector<16x128xf32> to vector<2x128xf32>
    %cst_49 = arith.constant dense<0.000000e+00> : vector<2x128xf32>
    %181 = tpu.matmul %175, %16, %cst_49 {dimension_numbers = #tpu.dot_dimension_numbers<[1], [0], [0], [1], [0, 0, 1, 1], [], []>} : vector<2x32xf32>, vector<32x128xf32>, vector<2x128xf32> -> vector<2x128xf32>
    %182 = arith.addf %180, %181 : vector<2x128xf32>
    %183 = vector.extract_strided_slice %182 {offsets = [0, 0], sizes = [2, 96], strides = [1, 1]} : vector<2x128xf32> to vector<2x96xf32>
    %184 = arith.negf %183 : vector<2x96xf32>
    %185 = math.exp %184 : vector<2x96xf32>
    %cst_50 = arith.constant 1.000000e+00 : f32
    %186 = vector.broadcast %cst_50 : f32 to vector<2x96xf32>
    %187 = arith.addf %186, %185 : vector<2x96xf32>
    %188 = arith.divf %186, %187 : vector<2x96xf32>
    %189 = vector.extract_strided_slice %182 {offsets = [0, 96], sizes = [2, 32], strides = [1, 1]} : vector<2x128xf32> to vector<2x32xf32>
    %190 = math.tanh %189 : vector<2x32xf32>
    %191 = vector.extract_strided_slice %188 {offsets = [0, 0], sizes = [2, 32], strides = [1, 1]} : vector<2x96xf32> to vector<2x32xf32>
    %192 = vector.extract_strided_slice %188 {offsets = [0, 32], sizes = [2, 32], strides = [1, 1]} : vector<2x96xf32> to vector<2x32xf32>
    %193 = vector.extract_strided_slice %188 {offsets = [0, 64], sizes = [2, 32], strides = [1, 1]} : vector<2x96xf32> to vector<2x32xf32>
    %194 = arith.mulf %192, %173 : vector<2x32xf32>
    %195 = arith.mulf %191, %190 : vector<2x32xf32>
    %196 = arith.addf %194, %195 : vector<2x32xf32>
    %197 = math.tanh %196 : vector<2x32xf32>
    %198 = arith.mulf %193, %197 : vector<2x32xf32>
    %199 = vector.extract_strided_slice %198 {offsets = [0, 0], sizes = [2, 16], strides = [1, 1]} : vector<2x32xf32> to vector<2x16xf32>
    %c14_51 = arith.constant 14 : index
    %c0_52 = arith.constant 0 : index
    %200 = vector.load %arg16[%c14_51, %c0_52] : memref<16x16xf32, #tpu.memory_space<vmem>>, vector<2x16xf32>
    tpu.vector_store %arg16[%c14_51, %c0_52], %199 {strides = array<i32>} : memref<16x16xf32, #tpu.memory_space<vmem>>, vector<2x16xf32>,
    %201 = vector.extract_strided_slice %198 {offsets = [0, 16], sizes = [2, 16], strides = [1, 1]} : vector<2x32xf32> to vector<2x16xf32>
    %c0_53 = arith.constant 0 : index
    %c0_54 = arith.constant 0 : index
    %202 = vector.load %arg17[%c0_53, %c0_54] : memref<16x16xf32, #tpu.memory_space<vmem>>, vector<2x16xf32>
    tpu.vector_store %arg17[%c0_53, %c0_54], %201 {strides = array<i32>} : memref<16x16xf32, #tpu.memory_space<vmem>>, vector<2x16xf32>,
    %c0_55 = arith.constant 0 : index
    %c0_56 = arith.constant 0 : index
    %203 = vector.load %arg16[%c0_55, %c0_56] : memref<16x16xf32, #tpu.memory_space<vmem>>, vector<16x16xf32>
    %c0_57 = arith.constant 0 : index
    %c0_58 = arith.constant 0 : index
    %204 = vector.load %arg7[%c0_57, %c0_58] : memref<16x32xf32, #tpu.memory_space<vmem>>, vector<16x32xf32>
    %cst_59 = arith.constant dense<0.000000e+00> : vector<16x32xf32>
    %205 = tpu.matmul %203, %204, %cst_59 {dimension_numbers = #tpu.dot_dimension_numbers<[1], [0], [0], [1], [0, 0, 1, 1], [], []>} : vector<16x16xf32>, vector<16x32xf32>, vector<16x32xf32> -> vector<16x32xf32>
    %c0_60 = arith.constant 0 : index
    %c0_61 = arith.constant 0 : index
    %206 = vector.load %arg17[%c0_60, %c0_61] : memref<16x16xf32, #tpu.memory_space<vmem>>, vector<16x16xf32>
    %c0_62 = arith.constant 0 : index
    %c0_63 = arith.constant 0 : index
    %207 = vector.load %arg8[%c0_62, %c0_63] : memref<16x32xf32, #tpu.memory_space<vmem>>, vector<16x32xf32>
    %cst_64 = arith.constant dense<0.000000e+00> : vector<16x32xf32>
    %208 = tpu.matmul %206, %207, %cst_64 {dimension_numbers = #tpu.dot_dimension_numbers<[1], [0], [0], [1], [0, 0, 1, 1], [], []>} : vector<16x16xf32>, vector<16x32xf32>, vector<16x32xf32> -> vector<16x32xf32>
    %209 = arith.addf %205, %208 : vector<16x32xf32>
    %c0_65 = arith.constant 0 : index
    %c0_66 = arith.constant 0 : index
    %210 = vector.load %arg9[%c0_65, %c0_66] : memref<1x32xf32, #tpu.memory_space<vmem>>, vector<1x32xf32>
    %211 = vector.broadcast %210 : vector<1x32xf32> to vector<16x32xf32>
    %212 = arith.addf %209, %211 : vector<16x32xf32>
    %cst_67 = arith.constant 0.000000e+00 : f32
    %213 = vector.broadcast %cst_67 : f32 to vector<16x32xf32>
    %214 = arith.maximumf %212, %213 : vector<16x32xf32>
    %c0_68 = arith.constant 0 : index
    %c0_69 = arith.constant 0 : index
    %215 = vector.load %arg10[%c0_68, %c0_69] : memref<32x128xf32, #tpu.memory_space<vmem>>, vector<32x128xf32>
    %cst_70 = arith.constant dense<0.000000e+00> : vector<16x128xf32>
    %216 = tpu.matmul %214, %215, %cst_70 {dimension_numbers = #tpu.dot_dimension_numbers<[1], [0], [0], [1], [0, 0, 1, 1], [], []>} : vector<16x32xf32>, vector<32x128xf32>, vector<16x128xf32> -> vector<16x128xf32>
    %c0_71 = arith.constant 0 : index
    %c0_72 = arith.constant 0 : index
    %217 = vector.load %arg11[%c0_71, %c0_72] : memref<1x128xf32, #tpu.memory_space<vmem>>, vector<1x128xf32>
    %218 = vector.broadcast %217 : vector<1x128xf32> to vector<16x128xf32>
    %219 = arith.addf %216, %218 : vector<16x128xf32>
    %c0_73 = arith.constant 0 : index
    %c0_74 = arith.constant 0 : index
    %220 = vector.load %arg13[%c0_73, %c0_74] : memref<16x128xf32, #tpu.memory_space<vmem>>, vector<16x128xf32>
    tpu.vector_store %arg13[%c0_73, %c0_74], %219 {strides = array<i32>} : memref<16x128xf32, #tpu.memory_space<vmem>>, vector<16x128xf32>,
    %c0_75 = arith.constant 0 : index
    %c0_76 = arith.constant 0 : index
    %221 = vector.load %arg12[%c0_75, %c0_76] : memref<5x5xf32, #tpu.memory_space<vmem>>, vector<5x5xf32>
    %222 = tpu.iota {dimensions = array<i32: 1>} : vector<1x5xi32>
    %223 = tpu.iota {dimensions = array<i32: 1>} : vector<5x5xi32>
    %224 = tpu.iota {dimensions = array<i32: 0>} : vector<5x5xi32>
    %225 = arith.cmpi eq, %224, %223 : vector<5x5xi32>
    %226 = arith.extui %225 : vector<5x5xi1> to vector<5x5xi32>
    %227 = arith.sitofp %226 : vector<5x5xi32> to vector<5x5xf32>
    %cst_77 = arith.constant 1.000000e+00 : f32
    %228 = vector.broadcast %cst_77 : f32 to vector<1x5xf32>
    %c3_i32 = arith.constant 3 : i32
    %229 = vector.broadcast %c3_i32 : i32 to vector<1x5xi32>
    %230 = arith.cmpi eq, %222, %229 : vector<1x5xi32>
    %cst_78 = arith.constant 0.000000e+00 : f32
    %cst_79 = arith.constant -1.000000e+04 : f32
    %231 = vector.broadcast %cst_78 : f32 to vector<1x5xf32>
    %232 = vector.broadcast %cst_79 : f32 to vector<1x5xf32>
    %233 = arith.select %230, %231, %232 : vector<1x5xi1>, vector<1x5xf32>
    %234 = vector.extract_strided_slice %219 {offsets = [0, 0], sizes = [1, 5], strides = [1, 1]} : vector<16x128xf32> to vector<1x5xf32>
    %235 = vector.broadcast %233 : vector<1x5xf32> to vector<5x5xf32>
    %236 = arith.addf %221, %235 : vector<5x5xf32>
    %cst_80 = arith.constant dense<0xFF800000> : vector<5xf32>
    %237 = vector.multi_reduction <maximumf>, %236, %cst_80 [1] : vector<5x5xf32> to vector<5xf32>
    %238 = vector.shape_cast %237 : vector<5xf32> to vector<5x1xf32>
    %239 = vector.broadcast %238 : vector<5x1xf32> to vector<5x5xf32>
    %240 = arith.mulf %239, %227 : vector<5x5xf32>
    %cst_81 = arith.constant dense<0.000000e+00> : vector<1x5xf32>
    %241 = tpu.matmul %228, %240, %cst_81 {dimension_numbers = #tpu.dot_dimension_numbers<[1], [0], [0], [1], [0, 0, 1, 1], [], []>} : vector<1x5xf32>, vector<5x5xf32>, vector<1x5xf32> -> vector<1x5xf32>
    %242 = arith.addf %241, %234 : vector<1x5xf32>
    %243 = vector.extract_strided_slice %219 {offsets = [2, 0], sizes = [1, 5], strides = [1, 1]} : vector<16x128xf32> to vector<1x5xf32>
    %244 = vector.broadcast %242 : vector<1x5xf32> to vector<5x5xf32>
    %245 = arith.addf %221, %244 : vector<5x5xf32>
    %cst_82 = arith.constant dense<0xFF800000> : vector<5xf32>
    %246 = vector.multi_reduction <maximumf>, %245, %cst_82 [1] : vector<5x5xf32> to vector<5xf32>
    %247 = vector.shape_cast %246 : vector<5xf32> to vector<5x1xf32>
    %248 = vector.broadcast %247 : vector<5x1xf32> to vector<5x5xf32>
    %249 = arith.cmpf oeq, %245, %248 : vector<5x5xf32>
    %250 = arith.sitofp %223 : vector<5x5xi32> to vector<5x5xf32>
    %cst_83 = arith.constant 5.000000e+00 : f32
    %251 = vector.broadcast %cst_83 : f32 to vector<5x5xf32>
    %252 = arith.select %249, %250, %251 : vector<5x5xi1>, vector<5x5xf32>
    %cst_84 = arith.constant dense<0x7F800000> : vector<5xf32>
    %253 = vector.multi_reduction <minimumf>, %252, %cst_84 [1] : vector<5x5xf32> to vector<5xf32>
    %254 = vector.shape_cast %253 : vector<5xf32> to vector<5x1xf32>
    %255 = vector.broadcast %254 : vector<5x1xf32> to vector<5x5xf32>
    %256 = arith.mulf %255, %227 : vector<5x5xf32>
    %cst_85 = arith.constant dense<0.000000e+00> : vector<1x5xf32>
    %257 = tpu.matmul %228, %256, %cst_85 {dimension_numbers = #tpu.dot_dimension_numbers<[1], [0], [0], [1], [0, 0, 1, 1], [], []>} : vector<1x5xf32>, vector<5x5xf32>, vector<1x5xf32> -> vector<1x5xf32>
    %258 = vector.broadcast %247 : vector<5x1xf32> to vector<5x5xf32>
    %259 = arith.mulf %258, %227 : vector<5x5xf32>
    %cst_86 = arith.constant dense<0.000000e+00> : vector<1x5xf32>
    %260 = tpu.matmul %228, %259, %cst_86 {dimension_numbers = #tpu.dot_dimension_numbers<[1], [0], [0], [1], [0, 0, 1, 1], [], []>} : vector<1x5xf32>, vector<5x5xf32>, vector<1x5xf32> -> vector<1x5xf32>
    %261 = arith.addf %260, %243 : vector<1x5xf32>
    %262 = vector.extract_strided_slice %219 {offsets = [4, 0], sizes = [1, 5], strides = [1, 1]} : vector<16x128xf32> to vector<1x5xf32>
    %263 = vector.broadcast %261 : vector<1x5xf32> to vector<5x5xf32>
    %264 = arith.addf %221, %263 : vector<5x5xf32>
    %cst_87 = arith.constant dense<0xFF800000> : vector<5xf32>
    %265 = vector.multi_reduction <maximumf>, %264, %cst_87 [1] : vector<5x5xf32> to vector<5xf32>
    %266 = vector.shape_cast %265 : vector<5xf32> to vector<5x1xf32>
    %267 = vector.broadcast %266 : vector<5x1xf32> to vector<5x5xf32>
    %268 = arith.cmpf oeq, %264, %267 : vector<5x5xf32>
    %269 = arith.sitofp %223 : vector<5x5xi32> to vector<5x5xf32>
    %cst_88 = arith.constant 5.000000e+00 : f32
    %270 = vector.broadcast %cst_88 : f32 to vector<5x5xf32>
    %271 = arith.select %268, %269, %270 : vector<5x5xi1>, vector<5x5xf32>
    %cst_89 = arith.constant dense<0x7F800000> : vector<5xf32>
    %272 = vector.multi_reduction <minimumf>, %271, %cst_89 [1] : vector<5x5xf32> to vector<5xf32>
    %273 = vector.shape_cast %272 : vector<5xf32> to vector<5x1xf32>
    %274 = vector.broadcast %273 : vector<5x1xf32> to vector<5x5xf32>
    %275 = arith.mulf %274, %227 : vector<5x5xf32>
    %cst_90 = arith.constant dense<0.000000e+00> : vector<1x5xf32>
    %276 = tpu.matmul %228, %275, %cst_90 {dimension_numbers = #tpu.dot_dimension_numbers<[1], [0], [0], [1], [0, 0, 1, 1], [], []>} : vector<1x5xf32>, vector<5x5xf32>, vector<1x5xf32> -> vector<1x5xf32>
    %277 = vector.broadcast %266 : vector<5x1xf32> to vector<5x5xf32>
    %278 = arith.mulf %277, %227 : vector<5x5xf32>
    %cst_91 = arith.constant dense<0.000000e+00> : vector<1x5xf32>
    %279 = tpu.matmul %228, %278, %cst_91 {dimension_numbers = #tpu.dot_dimension_numbers<[1], [0], [0], [1], [0, 0, 1, 1], [], []>} : vector<1x5xf32>, vector<5x5xf32>, vector<1x5xf32> -> vector<1x5xf32>
    %280 = arith.addf %279, %262 : vector<1x5xf32>
    %281 = vector.extract_strided_slice %219 {offsets = [6, 0], sizes = [1, 5], strides = [1, 1]} : vector<16x128xf32> to vector<1x5xf32>
    %282 = vector.broadcast %280 : vector<1x5xf32> to vector<5x5xf32>
    %283 = arith.addf %221, %282 : vector<5x5xf32>
    %cst_92 = arith.constant dense<0xFF800000> : vector<5xf32>
    %284 = vector.multi_reduction <maximumf>, %283, %cst_92 [1] : vector<5x5xf32> to vector<5xf32>
    %285 = vector.shape_cast %284 : vector<5xf32> to vector<5x1xf32>
    %286 = vector.broadcast %285 : vector<5x1xf32> to vector<5x5xf32>
    %287 = arith.cmpf oeq, %283, %286 : vector<5x5xf32>
    %288 = arith.sitofp %223 : vector<5x5xi32> to vector<5x5xf32>
    %cst_93 = arith.constant 5.000000e+00 : f32
    %289 = vector.broadcast %cst_93 : f32 to vector<5x5xf32>
    %290 = arith.select %287, %288, %289 : vector<5x5xi1>, vector<5x5xf32>
    %cst_94 = arith.constant dense<0x7F800000> : vector<5xf32>
    %291 = vector.multi_reduction <minimumf>, %290, %cst_94 [1] : vector<5x5xf32> to vector<5xf32>
    %292 = vector.shape_cast %291 : vector<5xf32> to vector<5x1xf32>
    %293 = vector.broadcast %292 : vector<5x1xf32> to vector<5x5xf32>
    %294 = arith.mulf %293, %227 : vector<5x5xf32>
    %cst_95 = arith.constant dense<0.000000e+00> : vector<1x5xf32>
    %295 = tpu.matmul %228, %294, %cst_95 {dimension_numbers = #tpu.dot_dimension_numbers<[1], [0], [0], [1], [0, 0, 1, 1], [], []>} : vector<1x5xf32>, vector<5x5xf32>, vector<1x5xf32> -> vector<1x5xf32>
    %296 = vector.broadcast %285 : vector<5x1xf32> to vector<5x5xf32>
    %297 = arith.mulf %296, %227 : vector<5x5xf32>
    %cst_96 = arith.constant dense<0.000000e+00> : vector<1x5xf32>
    %298 = tpu.matmul %228, %297, %cst_96 {dimension_numbers = #tpu.dot_dimension_numbers<[1], [0], [0], [1], [0, 0, 1, 1], [], []>} : vector<1x5xf32>, vector<5x5xf32>, vector<1x5xf32> -> vector<1x5xf32>
    %299 = arith.addf %298, %281 : vector<1x5xf32>
    %300 = vector.extract_strided_slice %219 {offsets = [8, 0], sizes = [1, 5], strides = [1, 1]} : vector<16x128xf32> to vector<1x5xf32>
    %301 = vector.broadcast %299 : vector<1x5xf32> to vector<5x5xf32>
    %302 = arith.addf %221, %301 : vector<5x5xf32>
    %cst_97 = arith.constant dense<0xFF800000> : vector<5xf32>
    %303 = vector.multi_reduction <maximumf>, %302, %cst_97 [1] : vector<5x5xf32> to vector<5xf32>
    %304 = vector.shape_cast %303 : vector<5xf32> to vector<5x1xf32>
    %305 = vector.broadcast %304 : vector<5x1xf32> to vector<5x5xf32>
    %306 = arith.cmpf oeq, %302, %305 : vector<5x5xf32>
    %307 = arith.sitofp %223 : vector<5x5xi32> to vector<5x5xf32>
    %cst_98 = arith.constant 5.000000e+00 : f32
    %308 = vector.broadcast %cst_98 : f32 to vector<5x5xf32>
    %309 = arith.select %306, %307, %308 : vector<5x5xi1>, vector<5x5xf32>
    %cst_99 = arith.constant dense<0x7F800000> : vector<5xf32>
    %310 = vector.multi_reduction <minimumf>, %309, %cst_99 [1] : vector<5x5xf32> to vector<5xf32>
    %311 = vector.shape_cast %310 : vector<5xf32> to vector<5x1xf32>
    %312 = vector.broadcast %311 : vector<5x1xf32> to vector<5x5xf32>
    %313 = arith.mulf %312, %227 : vector<5x5xf32>
    %cst_100 = arith.constant dense<0.000000e+00> : vector<1x5xf32>
    %314 = tpu.matmul %228, %313, %cst_100 {dimension_numbers = #tpu.dot_dimension_numbers<[1], [0], [0], [1], [0, 0, 1, 1], [], []>} : vector<1x5xf32>, vector<5x5xf32>, vector<1x5xf32> -> vector<1x5xf32>
    %315 = vector.broadcast %304 : vector<5x1xf32> to vector<5x5xf32>
    %316 = arith.mulf %315, %227 : vector<5x5xf32>
    %cst_101 = arith.constant dense<0.000000e+00> : vector<1x5xf32>
    %317 = tpu.matmul %228, %316, %cst_101 {dimension_numbers = #tpu.dot_dimension_numbers<[1], [0], [0], [1], [0, 0, 1, 1], [], []>} : vector<1x5xf32>, vector<5x5xf32>, vector<1x5xf32> -> vector<1x5xf32>
    %318 = arith.addf %317, %300 : vector<1x5xf32>
    %319 = vector.extract_strided_slice %219 {offsets = [10, 0], sizes = [1, 5], strides = [1, 1]} : vector<16x128xf32> to vector<1x5xf32>
    %320 = vector.broadcast %318 : vector<1x5xf32> to vector<5x5xf32>
    %321 = arith.addf %221, %320 : vector<5x5xf32>
    %cst_102 = arith.constant dense<0xFF800000> : vector<5xf32>
    %322 = vector.multi_reduction <maximumf>, %321, %cst_102 [1] : vector<5x5xf32> to vector<5xf32>
    %323 = vector.shape_cast %322 : vector<5xf32> to vector<5x1xf32>
    %324 = vector.broadcast %323 : vector<5x1xf32> to vector<5x5xf32>
    %325 = arith.cmpf oeq, %321, %324 : vector<5x5xf32>
    %326 = arith.sitofp %223 : vector<5x5xi32> to vector<5x5xf32>
    %cst_103 = arith.constant 5.000000e+00 : f32
    %327 = vector.broadcast %cst_103 : f32 to vector<5x5xf32>
    %328 = arith.select %325, %326, %327 : vector<5x5xi1>, vector<5x5xf32>
    %cst_104 = arith.constant dense<0x7F800000> : vector<5xf32>
    %329 = vector.multi_reduction <minimumf>, %328, %cst_104 [1] : vector<5x5xf32> to vector<5xf32>
    %330 = vector.shape_cast %329 : vector<5xf32> to vector<5x1xf32>
    %331 = vector.broadcast %330 : vector<5x1xf32> to vector<5x5xf32>
    %332 = arith.mulf %331, %227 : vector<5x5xf32>
    %cst_105 = arith.constant dense<0.000000e+00> : vector<1x5xf32>
    %333 = tpu.matmul %228, %332, %cst_105 {dimension_numbers = #tpu.dot_dimension_numbers<[1], [0], [0], [1], [0, 0, 1, 1], [], []>} : vector<1x5xf32>, vector<5x5xf32>, vector<1x5xf32> -> vector<1x5xf32>
    %334 = vector.broadcast %323 : vector<5x1xf32> to vector<5x5xf32>
    %335 = arith.mulf %334, %227 : vector<5x5xf32>
    %cst_106 = arith.constant dense<0.000000e+00> : vector<1x5xf32>
    %336 = tpu.matmul %228, %335, %cst_106 {dimension_numbers = #tpu.dot_dimension_numbers<[1], [0], [0], [1], [0, 0, 1, 1], [], []>} : vector<1x5xf32>, vector<5x5xf32>, vector<1x5xf32> -> vector<1x5xf32>
    %337 = arith.addf %336, %319 : vector<1x5xf32>
    %338 = vector.extract_strided_slice %219 {offsets = [12, 0], sizes = [1, 5], strides = [1, 1]} : vector<16x128xf32> to vector<1x5xf32>
    %339 = vector.broadcast %337 : vector<1x5xf32> to vector<5x5xf32>
    %340 = arith.addf %221, %339 : vector<5x5xf32>
    %cst_107 = arith.constant dense<0xFF800000> : vector<5xf32>
    %341 = vector.multi_reduction <maximumf>, %340, %cst_107 [1] : vector<5x5xf32> to vector<5xf32>
    %342 = vector.shape_cast %341 : vector<5xf32> to vector<5x1xf32>
    %343 = vector.broadcast %342 : vector<5x1xf32> to vector<5x5xf32>
    %344 = arith.cmpf oeq, %340, %343 : vector<5x5xf32>
    %345 = arith.sitofp %223 : vector<5x5xi32> to vector<5x5xf32>
    %cst_108 = arith.constant 5.000000e+00 : f32
    %346 = vector.broadcast %cst_108 : f32 to vector<5x5xf32>
    %347 = arith.select %344, %345, %346 : vector<5x5xi1>, vector<5x5xf32>
    %cst_109 = arith.constant dense<0x7F800000> : vector<5xf32>
    %348 = vector.multi_reduction <minimumf>, %347, %cst_109 [1] : vector<5x5xf32> to vector<5xf32>
    %349 = vector.shape_cast %348 : vector<5xf32> to vector<5x1xf32>
    %350 = vector.broadcast %349 : vector<5x1xf32> to vector<5x5xf32>
    %351 = arith.mulf %350, %227 : vector<5x5xf32>
    %cst_110 = arith.constant dense<0.000000e+00> : vector<1x5xf32>
    %352 = tpu.matmul %228, %351, %cst_110 {dimension_numbers = #tpu.dot_dimension_numbers<[1], [0], [0], [1], [0, 0, 1, 1], [], []>} : vector<1x5xf32>, vector<5x5xf32>, vector<1x5xf32> -> vector<1x5xf32>
    %353 = vector.broadcast %342 : vector<5x1xf32> to vector<5x5xf32>
    %354 = arith.mulf %353, %227 : vector<5x5xf32>
    %cst_111 = arith.constant dense<0.000000e+00> : vector<1x5xf32>
    %355 = tpu.matmul %228, %354, %cst_111 {dimension_numbers = #tpu.dot_dimension_numbers<[1], [0], [0], [1], [0, 0, 1, 1], [], []>} : vector<1x5xf32>, vector<5x5xf32>, vector<1x5xf32> -> vector<1x5xf32>
    %356 = arith.addf %355, %338 : vector<1x5xf32>
    %357 = vector.extract_strided_slice %219 {offsets = [14, 0], sizes = [1, 5], strides = [1, 1]} : vector<16x128xf32> to vector<1x5xf32>
    %358 = vector.broadcast %356 : vector<1x5xf32> to vector<5x5xf32>
    %359 = arith.addf %221, %358 : vector<5x5xf32>
    %cst_112 = arith.constant dense<0xFF800000> : vector<5xf32>
    %360 = vector.multi_reduction <maximumf>, %359, %cst_112 [1] : vector<5x5xf32> to vector<5xf32>
    %361 = vector.shape_cast %360 : vector<5xf32> to vector<5x1xf32>
    %362 = vector.broadcast %361 : vector<5x1xf32> to vector<5x5xf32>
    %363 = arith.cmpf oeq, %359, %362 : vector<5x5xf32>
    %364 = arith.sitofp %223 : vector<5x5xi32> to vector<5x5xf32>
    %cst_113 = arith.constant 5.000000e+00 : f32
    %365 = vector.broadcast %cst_113 : f32 to vector<5x5xf32>
    %366 = arith.select %363, %364, %365 : vector<5x5xi1>, vector<5x5xf32>
    %cst_114 = arith.constant dense<0x7F800000> : vector<5xf32>
    %367 = vector.multi_reduction <minimumf>, %366, %cst_114 [1] : vector<5x5xf32> to vector<5xf32>
    %368 = vector.shape_cast %367 : vector<5xf32> to vector<5x1xf32>
    %369 = vector.broadcast %368 : vector<5x1xf32> to vector<5x5xf32>
    %370 = arith.mulf %369, %227 : vector<5x5xf32>
    %cst_115 = arith.constant dense<0.000000e+00> : vector<1x5xf32>
    %371 = tpu.matmul %228, %370, %cst_115 {dimension_numbers = #tpu.dot_dimension_numbers<[1], [0], [0], [1], [0, 0, 1, 1], [], []>} : vector<1x5xf32>, vector<5x5xf32>, vector<1x5xf32> -> vector<1x5xf32>
    %372 = vector.broadcast %361 : vector<5x1xf32> to vector<5x5xf32>
    %373 = arith.mulf %372, %227 : vector<5x5xf32>
    %cst_116 = arith.constant dense<0.000000e+00> : vector<1x5xf32>
    %374 = tpu.matmul %228, %373, %cst_116 {dimension_numbers = #tpu.dot_dimension_numbers<[1], [0], [0], [1], [0, 0, 1, 1], [], []>} : vector<1x5xf32>, vector<5x5xf32>, vector<1x5xf32> -> vector<1x5xf32>
    %375 = arith.addf %374, %357 : vector<1x5xf32>
    %376 = vector.extract_strided_slice %221 {offsets = [4, 0], sizes = [1, 5], strides = [1, 1]} : vector<5x5xf32> to vector<1x5xf32>
    %377 = arith.addf %375, %376 : vector<1x5xf32>
    %cst_117 = arith.constant dense<0xFF800000> : vector<1xf32>
    %378 = vector.multi_reduction <maximumf>, %377, %cst_117 [1] : vector<1x5xf32> to vector<1xf32>
    %379 = vector.shape_cast %378 : vector<1xf32> to vector<1x1xf32>
    %380 = vector.broadcast %379 : vector<1x1xf32> to vector<1x5xf32>
    %381 = arith.cmpf oeq, %377, %380 : vector<1x5xf32>
    %382 = arith.sitofp %222 : vector<1x5xi32> to vector<1x5xf32>
    %cst_118 = arith.constant 5.000000e+00 : f32
    %383 = vector.broadcast %cst_118 : f32 to vector<1x5xf32>
    %384 = arith.select %381, %382, %383 : vector<1x5xi1>, vector<1x5xf32>
    %cst_119 = arith.constant dense<0x7F800000> : vector<1xf32>
    %385 = vector.multi_reduction <minimumf>, %384, %cst_119 [1] : vector<1x5xf32> to vector<1xf32>
    %386 = vector.shape_cast %385 : vector<1xf32> to vector<1x1xf32>
    %c0_120 = arith.constant 0 : index
    %c0_121 = arith.constant 0 : index
    %387 = vector.load %arg14[%c0_120, %c0_121] : memref<1x1xf32, #tpu.memory_space<vmem>>, vector<1x1xf32>
    tpu.vector_store %arg14[%c0_120, %c0_121], %379 {strides = array<i32>} : memref<1x1xf32, #tpu.memory_space<vmem>>, vector<1x1xf32>,
    %388 = arith.fptosi %386 : vector<1x1xf32> to vector<1x1xi32>
    %389 = vector.broadcast %388 : vector<1x1xi32> to vector<1x5xi32>
    %390 = arith.cmpi eq, %222, %389 : vector<1x5xi32>
    %391 = arith.extui %390 : vector<1x5xi1> to vector<1x5xi32>
    %392 = arith.sitofp %391 : vector<1x5xi32> to vector<1x5xf32>
    %c7 = arith.constant 7 : index
    %c0_122 = arith.constant 0 : index
    %393 = vector.load %arg15[%c7, %c0_122] : memref<8x1xi32, #tpu.memory_space<vmem>>, vector<1x1xi32>
    tpu.vector_store %arg15[%c7, %c0_122], %388 {strides = array<i32>} : memref<8x1xi32, #tpu.memory_space<vmem>>, vector<1x1xi32>,
    %394 = arith.mulf %371, %392 : vector<1x5xf32>
    %cst_123 = arith.constant dense<0.000000e+00> : vector<1xf32>
    %395 = vector.multi_reduction <add>, %394, %cst_123 [1] : vector<1x5xf32> to vector<1xf32>
    %396 = vector.shape_cast %395 : vector<1xf32> to vector<1x1xf32>
    %397 = arith.fptosi %396 : vector<1x1xf32> to vector<1x1xi32>
    %c6_124 = arith.constant 6 : index
    %c0_125 = arith.constant 0 : index
    %398 = vector.load %arg15[%c6_124, %c0_125] : memref<8x1xi32, #tpu.memory_space<vmem>>, vector<1x1xi32>
    tpu.vector_store %arg15[%c6_124, %c0_125], %397 {strides = array<i32>} : memref<8x1xi32, #tpu.memory_space<vmem>>, vector<1x1xi32>,
    %399 = vector.broadcast %397 : vector<1x1xi32> to vector<1x5xi32>
    %400 = arith.cmpi eq, %222, %399 : vector<1x5xi32>
    %401 = arith.extui %400 : vector<1x5xi1> to vector<1x5xi32>
    %402 = arith.sitofp %401 : vector<1x5xi32> to vector<1x5xf32>
    %403 = arith.mulf %352, %402 : vector<1x5xf32>
    %cst_126 = arith.constant dense<0.000000e+00> : vector<1xf32>
    %404 = vector.multi_reduction <add>, %403, %cst_126 [1] : vector<1x5xf32> to vector<1xf32>
    %405 = vector.shape_cast %404 : vector<1xf32> to vector<1x1xf32>
    %406 = arith.fptosi %405 : vector<1x1xf32> to vector<1x1xi32>
    %c5 = arith.constant 5 : index
    %c0_127 = arith.constant 0 : index
    %407 = vector.load %arg15[%c5, %c0_127] : memref<8x1xi32, #tpu.memory_space<vmem>>, vector<1x1xi32>
    tpu.vector_store %arg15[%c5, %c0_127], %406 {strides = array<i32>} : memref<8x1xi32, #tpu.memory_space<vmem>>, vector<1x1xi32>,
    %408 = vector.broadcast %406 : vector<1x1xi32> to vector<1x5xi32>
    %409 = arith.cmpi eq, %222, %408 : vector<1x5xi32>
    %410 = arith.extui %409 : vector<1x5xi1> to vector<1x5xi32>
    %411 = arith.sitofp %410 : vector<1x5xi32> to vector<1x5xf32>
    %412 = arith.mulf %333, %411 : vector<1x5xf32>
    %cst_128 = arith.constant dense<0.000000e+00> : vector<1xf32>
    %413 = vector.multi_reduction <add>, %412, %cst_128 [1] : vector<1x5xf32> to vector<1xf32>
    %414 = vector.shape_cast %413 : vector<1xf32> to vector<1x1xf32>
    %415 = arith.fptosi %414 : vector<1x1xf32> to vector<1x1xi32>
    %c4_129 = arith.constant 4 : index
    %c0_130 = arith.constant 0 : index
    %416 = vector.load %arg15[%c4_129, %c0_130] : memref<8x1xi32, #tpu.memory_space<vmem>>, vector<1x1xi32>
    tpu.vector_store %arg15[%c4_129, %c0_130], %415 {strides = array<i32>} : memref<8x1xi32, #tpu.memory_space<vmem>>, vector<1x1xi32>,
    %417 = vector.broadcast %415 : vector<1x1xi32> to vector<1x5xi32>
    %418 = arith.cmpi eq, %222, %417 : vector<1x5xi32>
    %419 = arith.extui %418 : vector<1x5xi1> to vector<1x5xi32>
    %420 = arith.sitofp %419 : vector<1x5xi32> to vector<1x5xf32>
    %421 = arith.mulf %314, %420 : vector<1x5xf32>
    %cst_131 = arith.constant dense<0.000000e+00> : vector<1xf32>
    %422 = vector.multi_reduction <add>, %421, %cst_131 [1] : vector<1x5xf32> to vector<1xf32>
    %423 = vector.shape_cast %422 : vector<1xf32> to vector<1x1xf32>
    %424 = arith.fptosi %423 : vector<1x1xf32> to vector<1x1xi32>
    %c3 = arith.constant 3 : index
    %c0_132 = arith.constant 0 : index
    %425 = vector.load %arg15[%c3, %c0_132] : memref<8x1xi32, #tpu.memory_space<vmem>>, vector<1x1xi32>
    tpu.vector_store %arg15[%c3, %c0_132], %424 {strides = array<i32>} : memref<8x1xi32, #tpu.memory_space<vmem>>, vector<1x1xi32>,
    %426 = vector.broadcast %424 : vector<1x1xi32> to vector<1x5xi32>
    %427 = arith.cmpi eq, %222, %426 : vector<1x5xi32>
    %428 = arith.extui %427 : vector<1x5xi1> to vector<1x5xi32>
    %429 = arith.sitofp %428 : vector<1x5xi32> to vector<1x5xf32>
    %430 = arith.mulf %295, %429 : vector<1x5xf32>
    %cst_133 = arith.constant dense<0.000000e+00> : vector<1xf32>
    %431 = vector.multi_reduction <add>, %430, %cst_133 [1] : vector<1x5xf32> to vector<1xf32>
    %432 = vector.shape_cast %431 : vector<1xf32> to vector<1x1xf32>
    %433 = arith.fptosi %432 : vector<1x1xf32> to vector<1x1xi32>
    %c2_134 = arith.constant 2 : index
    %c0_135 = arith.constant 0 : index
    %434 = vector.load %arg15[%c2_134, %c0_135] : memref<8x1xi32, #tpu.memory_space<vmem>>, vector<1x1xi32>
    tpu.vector_store %arg15[%c2_134, %c0_135], %433 {strides = array<i32>} : memref<8x1xi32, #tpu.memory_space<vmem>>, vector<1x1xi32>,
    %435 = vector.broadcast %433 : vector<1x1xi32> to vector<1x5xi32>
    %436 = arith.cmpi eq, %222, %435 : vector<1x5xi32>
    %437 = arith.extui %436 : vector<1x5xi1> to vector<1x5xi32>
    %438 = arith.sitofp %437 : vector<1x5xi32> to vector<1x5xf32>
    %439 = arith.mulf %276, %438 : vector<1x5xf32>
    %cst_136 = arith.constant dense<0.000000e+00> : vector<1xf32>
    %440 = vector.multi_reduction <add>, %439, %cst_136 [1] : vector<1x5xf32> to vector<1xf32>
    %441 = vector.shape_cast %440 : vector<1xf32> to vector<1x1xf32>
    %442 = arith.fptosi %441 : vector<1x1xf32> to vector<1x1xi32>
    %c1 = arith.constant 1 : index
    %c0_137 = arith.constant 0 : index
    %443 = vector.load %arg15[%c1, %c0_137] : memref<8x1xi32, #tpu.memory_space<vmem>>, vector<1x1xi32>
    tpu.vector_store %arg15[%c1, %c0_137], %442 {strides = array<i32>} : memref<8x1xi32, #tpu.memory_space<vmem>>, vector<1x1xi32>,
    %444 = vector.broadcast %442 : vector<1x1xi32> to vector<1x5xi32>
    %445 = arith.cmpi eq, %222, %444 : vector<1x5xi32>
    %446 = arith.extui %445 : vector<1x5xi1> to vector<1x5xi32>
    %447 = arith.sitofp %446 : vector<1x5xi32> to vector<1x5xf32>
    %448 = arith.mulf %257, %447 : vector<1x5xf32>
    %cst_138 = arith.constant dense<0.000000e+00> : vector<1xf32>
    %449 = vector.multi_reduction <add>, %448, %cst_138 [1] : vector<1x5xf32> to vector<1xf32>
    %450 = vector.shape_cast %449 : vector<1xf32> to vector<1x1xf32>
    %451 = arith.fptosi %450 : vector<1x1xf32> to vector<1x1xi32>
    %c0_139 = arith.constant 0 : index
    %c0_140 = arith.constant 0 : index
    %452 = vector.load %arg15[%c0_139, %c0_140] : memref<8x1xi32, #tpu.memory_space<vmem>>, vector<1x1xi32>
    tpu.vector_store %arg15[%c0_139, %c0_140], %451 {strides = array<i32>} : memref<8x1xi32, #tpu.memory_space<vmem>>, vector<1x1xi32>,
    return
  }
}

</mosaic_0001>

<llo_original>
// kernel: bilstm_crf_forward.1
$region0: #{bilstm_crf_forward.1}
  #allocation0 [shape = 'u32[]', space=smem, size = 0x4, offset = 0x4, fixed_abs, tag = 'smem constant byte address 0x4 - core index']
  #allocation1 [shape = 'u32[144,128]{1,0:T(1,128)}', space=vmem, size = 0x12000, scoped, tag = 'internal scratch']
  #allocation2 [shape = 'f32[16,16]{1,0:T(8,128)}', space=vmem, size = 0x2000, scoped, tag = 'scratch operand']
  #allocation3 [shape = 'f32[16,16]{1,0:T(8,128)}', space=vmem, size = 0x2000, scoped, tag = 'scratch operand']
  %s0 = inlined_call_operand.vmem [shape: s32[16,1], index: 0, kind: input, shape index: {}]
  %s1 = inlined_call_operand.vmem [shape: s32[16,1], index: 1, kind: input, shape index: {}]
  %s2 = inlined_call_operand.vmem [shape: f32[20,128], index: 2, kind: input, shape index: {}]
  %s3 = inlined_call_operand.vmem [shape: f32[20,128], index: 3, kind: input, shape index: {}]
  %s4 = inlined_call_operand.vmem [shape: f32[32,128], index: 4, kind: input, shape index: {}]
  %s5 = inlined_call_operand.vmem [shape: f32[2,32], index: 5, kind: input, shape index: {}]
  %s6 = inlined_call_operand.vmem [shape: f32[2,32], index: 6, kind: input, shape index: {}]
  %s7 = inlined_call_operand.hbm [shape: f32[16,32], index: 7, kind: input, shape index: {}]
  %s8 = inlined_call_operand.hbm [shape: f32[16,32], index: 8, kind: input, shape index: {}]
  %s9 = inlined_call_operand.vmem [shape: f32[1,32], index: 9, kind: input, shape index: {}]
  %s10 = inlined_call_operand.vmem [shape: f32[32,128], index: 10, kind: input, shape index: {}]
  %s11 = inlined_call_operand.hbm [shape: f32[1,128], index: 11, kind: input, shape index: {}]
  %s12 = inlined_call_operand.hbm [shape: f32[5,5], index: 12, kind: input, shape index: {}]
  %s13 = inlined_call_operand.hbm [shape: f32[16,128], index: 13, kind: output, shape index: {0}]
  %s14 = inlined_call_operand.hbm [shape: f32[1,1], index: 14, kind: output, shape index: {1}]
  %s15 = inlined_call_operand.vmem [shape: s32[8,1], index: 15, kind: output, shape index: {2}]
  %16 = xla_tuple %s13, %s14, %s15
  %s17 = sld [smem:[#allocation0]]
  $region94: #{bilstm_crf_forward.1} parent=0
    _
  %s19 = ssub.s32 1, %s17
  %s20 = scalar_select 0, %s19, %s17
  $region1: #{bilstm_crf_forward.1} parent=0
    #allocation4 [shape = 'u8[8192]{0}', space=vmem, size = 0x2000, scoped, tag = 'input window, operand 7, single buffered']
    #allocation5 [shape = 's32[1]{0}', space=sflag, size = 0x4, scoped, tag = 'scoped memory for bilstm_crf_forward.1']
    #allocation6 [shape = 's32[1]{0}', space=sflag, size = 0x4, scoped, tag = 'scoped memory for bilstm_crf_forward.1']
    #allocation7 [shape = 'u8[8192]{0}', space=vmem, size = 0x2000, scoped, tag = 'input window, operand 8, single buffered']
    #allocation8 [shape = 's32[1]{0}', space=sflag, size = 0x4, scoped, tag = 'scoped memory for bilstm_crf_forward.1']
    #allocation9 [shape = 'u8[512]{0}', space=vmem, size = 0x400, scoped, tag = 'input window, operand 11, single buffered']
    #allocation10 [shape = 'u8[4096]{0}', space=vmem, size = 0x1000, scoped, tag = 'input window, operand 12, single buffered']
    #allocation11 [shape = 's32[1]{0}', space=sflag, size = 0x4, scoped, tag = 'scoped memory for bilstm_crf_forward.1']
    #allocation12 [shape = 'u8[8192]{0}', space=vmem, size = 0x2000, scoped, tag = 'output window, operand 0, single buffered']
    #allocation13 [shape = 'u8[512]{0}', space=vmem, size = 0x400, scoped, tag = 'output window, operand 1, single buffered']
    #allocation14 [shape = 's32[1]{0}', space=sflag, size = 0x4, scoped, tag = 'scoped memory for bilstm_crf_forward.1']
    %21 = vsyncpa [#allocation5], 0
    %22 = vsyncpa [#allocation8], 0
    %23 = vsyncpa [#allocation11], 0
    %24 = vsyncpa [#allocation6], 0
    %25 = vsyncpa [#allocation14], 0
    // Predicated region
    $region2: #{bilstm_crf_forward.1} parent=1 // pred_check
      _
    $region3: #{bilstm_crf_forward.1} parent=1 // pred_check_branch
      %27 = sbr.rel (0) target = $region5
    $region4: #{bilstm_crf_forward.1} parent=1 // pred_region
      _
    $region5: #{bilstm_crf_forward.1} parent=1 // pred_fallthru
      _
    // Predicated region
    $region6: #{bilstm_crf_forward.1} parent=1 // pred_check
      _
    $region7: #{bilstm_crf_forward.1} parent=1 // pred_check_branch
      %29 = sbr.rel (0) target = $region9
    $region8: #{bilstm_crf_forward.1} parent=1 // pred_region
      _
    $region9: #{bilstm_crf_forward.1} parent=1 // pred_fallthru
      _
    // Predicated region
    $region10: #{bilstm_crf_forward.1} parent=1 // pred_check
      _
    $region11: #{bilstm_crf_forward.1} parent=1 // pred_check_branch
      %31 = sbr.rel (0) target = $region13
    $region12: #{bilstm_crf_forward.1} parent=1 // pred_region
      _
    $region13: #{bilstm_crf_forward.1} parent=1 // pred_fallthru
      _
    // Predicated region
    $region14: #{bilstm_crf_forward.1} parent=1 // pred_check
      _
    $region15: #{bilstm_crf_forward.1} parent=1 // pred_check_branch
      %33 = sbr.rel (0) target = $region17
    $region16: #{bilstm_crf_forward.1} parent=1 // pred_region
      _
    $region17: #{bilstm_crf_forward.1} parent=1 // pred_fallthru
      _
    // Predicated region
    $region18: #{bilstm_crf_forward.1} parent=1 // pred_check
      _
    $region19: #{bilstm_crf_forward.1} parent=1 // pred_check_branch
      %35 = sbr.rel (0) target = $region21
    $region20: #{bilstm_crf_forward.1} parent=1 // pred_region
      _
    $region21: #{bilstm_crf_forward.1} parent=1 // pred_fallthru
      _
    // Predicated region
    $region22: #{bilstm_crf_forward.1} parent=1 // pred_check
      _
    $region23: #{bilstm_crf_forward.1} parent=1 // pred_check_branch
      %37 = sbr.rel (0) target = $region25
    $region24: #{bilstm_crf_forward.1} parent=1 // pred_region
      _
    $region25: #{bilstm_crf_forward.1} parent=1 // pred_fallthru
      _
    // Predicated region
    $region26: #{bilstm_crf_forward.1} parent=1 // pred_check
      _
    $region27: #{bilstm_crf_forward.1} parent=1 // pred_check_branch
      %39 = sbr.rel (0) target = $region29
    $region28: #{bilstm_crf_forward.1} parent=1 // pred_region
      _
    $region29: #{bilstm_crf_forward.1} parent=1 // pred_fallthru
      _
    // Predicated region
    $region30: #{bilstm_crf_forward.1} parent=1 // pred_check
      _
    $region31: #{bilstm_crf_forward.1} parent=1 // pred_check_branch
      %41 = sbr.rel (0) target = $region33
    $region32: #{bilstm_crf_forward.1} parent=1 // pred_region
      %s43 = ssub.s32 256, 256
      %44 = vsyncadd [#allocation5], %s43
      %s45 = sshll.u32 [#allocation4], 4
      %s46 = int_to_ptr.vmem [resolvable:$true] %s45
      %51 = dma.hbm_to_vmem [thread:$0]  %s7, 256, %s46, [#allocation5], 128, 128, 8
    $region33: #{bilstm_crf_forward.1} parent=1 // pred_fallthru
      _
    // Predicated region
    $region34: #{bilstm_crf_forward.1} parent=1 // pred_check
      _
    $region35: #{bilstm_crf_forward.1} parent=1 // pred_check_branch
      %53 = sbr.rel (0) target = $region37
    $region36: #{bilstm_crf_forward.1} parent=1 // pred_region
      %s55 = ssub.s32 256, 256
      %56 = vsyncadd [#allocation8], %s55
      %s57 = sshll.u32 [#allocation7], 4
      %s58 = int_to_ptr.vmem [resolvable:$true] %s57
      %63 = dma.hbm_to_vmem [thread:$0]  %s8, 256, %s58, [#allocation8], 128, 128, 8
    $region37: #{bilstm_crf_forward.1} parent=1 // pred_fallthru
      _
    // Predicated region
    $region38: #{bilstm_crf_forward.1} parent=1 // pred_check
      _
    $region39: #{bilstm_crf_forward.1} parent=1 // pred_check_branch
      %65 = sbr.rel (0) target = $region41
    $region40: #{bilstm_crf_forward.1} parent=1 // pred_region
      _
    $region41: #{bilstm_crf_forward.1} parent=1 // pred_fallthru
      _
    // Predicated region
    $region42: #{bilstm_crf_forward.1} parent=1 // pred_check
      _
    $region43: #{bilstm_crf_forward.1} parent=1 // pred_check_branch
      %67 = sbr.rel (0) target = $region45
    $region44: #{bilstm_crf_forward.1} parent=1 // pred_region
      _
    $region45: #{bilstm_crf_forward.1} parent=1 // pred_fallthru
      _
    // Predicated region
    $region46: #{bilstm_crf_forward.1} parent=1 // pred_check
      _
    $region47: #{bilstm_crf_forward.1} parent=1 // pred_check_branch
      %69 = sbr.rel (0) target = $region49
    $region48: #{bilstm_crf_forward.1} parent=1 // pred_region
      %s71 = ssub.s32 16, 16
      %72 = vsyncadd [#allocation8], %s71
      %s74 = sshll.u32 [#allocation9], 4
      %s75 = int_to_ptr.vmem [resolvable:$true] %s74
      %77 = dma.hbm_to_vmem [thread:$0]  %s11, 16, %s75, [#allocation8]
    $region49: #{bilstm_crf_forward.1} parent=1 // pred_fallthru
      _
    // Predicated region
    $region50: #{bilstm_crf_forward.1} parent=1 // pred_check
      _
    $region51: #{bilstm_crf_forward.1} parent=1 // pred_check_branch
      %79 = sbr.rel (0) target = $region53
    $region52: #{bilstm_crf_forward.1} parent=1 // pred_region
      %s81 = ssub.s32 128, 128
      %82 = vsyncadd [#allocation11], %s81
      %s84 = sshll.u32 [#allocation10], 4
      %s85 = int_to_ptr.vmem [resolvable:$true] %s84
      %87 = dma.hbm_to_vmem [thread:$0]  %s12, 128, %s85, [#allocation11]
    $region53: #{bilstm_crf_forward.1} parent=1 // pred_fallthru
      _
    // Predicated region
    $region54: #{bilstm_crf_forward.1} parent=1 // pred_check
      _
    $region55: #{bilstm_crf_forward.1} parent=1 // pred_check_branch
      %89 = sbr.rel (0) target = $region57
    $region56: #{bilstm_crf_forward.1} parent=1 // pred_region
      %90 = dma.done [#allocation5], 256
    $region57: #{bilstm_crf_forward.1} parent=1 // pred_fallthru
      _
    // Predicated region
    $region58: #{bilstm_crf_forward.1} parent=1 // pred_check
      _
    $region59: #{bilstm_crf_forward.1} parent=1 // pred_check_branch
      %92 = sbr.rel (0) target = $region61
    $region60: #{bilstm_crf_forward.1} parent=1 // pred_region
      %93 = dma.done [#allocation8], 256
    $region61: #{bilstm_crf_forward.1} parent=1 // pred_fallthru
      _
    // Predicated region
    $region62: #{bilstm_crf_forward.1} parent=1 // pred_check
      _
    $region63: #{bilstm_crf_forward.1} parent=1 // pred_check_branch
      %95 = sbr.rel (0) target = $region65
    $region64: #{bilstm_crf_forward.1} parent=1 // pred_region
      %96 = dma.done [#allocation8], 16
    $region65: #{bilstm_crf_forward.1} parent=1 // pred_fallthru
      _
    // Predicated region
    $region66: #{bilstm_crf_forward.1} parent=1 // pred_check
      _
    $region67: #{bilstm_crf_forward.1} parent=1 // pred_check_branch
      %98 = sbr.rel (0) target = $region69
    $region68: #{bilstm_crf_forward.1} parent=1 // pred_region
      %99 = dma.done [#allocation11], 128
    $region69: #{bilstm_crf_forward.1} parent=1 // pred_fallthru
      _
    %v100 = vlaneseq
    %v101 = vand.u32 %v100, 127
    %v102 = vld [vmem:[%s0] sm:$0xff]
    %v103 = vld [vmem:[%s0 + $0x8] sm:$0xff]
    %104 = vset.pattern.permute.xlu0 0
    %105 = vperm.xlu0 %104, %v102
    %v106 = vpop.permute.xlu0 %105
    %107 = vset.pattern.permute.xlu0 0
    %108 = vperm.xlu0 %107, %v103
    %v109 = vpop.permute.xlu0 %108
    %vm110 = vcmp.eq.s32.totalorder %v106, %v101
    %vm111 = vcmp.eq.s32.totalorder %v109, %v101
    %v112 = vsel %vm110, 1, 0
    %v113 = vsel %vm111, 1, 0
    %v114 = vcvt.s32.f32 %v112
    %v115 = vcvt.s32.f32 %v113
    %v116 = vld [vmem:[%s1] sm:$0xff]
    %v117 = vld [vmem:[%s1 + $0x8] sm:$0xff]
    %118 = vset.pattern.permute.xlu0 0
    %119 = vperm.xlu0 %118, %v116
    %v120 = vpop.permute.xlu0 %119
    %121 = vset.pattern.permute.xlu0 0
    %122 = vperm.xlu0 %121, %v117
    %v123 = vpop.permute.xlu0 %122
    %vm124 = vcmp.eq.s32.totalorder %v120, %v101
    %vm125 = vcmp.eq.s32.totalorder %v123, %v101
    %v126 = vsel %vm124, 1, 0
    %v127 = vsel %vm125, 1, 0
    %v128 = vcvt.s32.f32 %v126
    %v129 = vcvt.s32.f32 %v127
    %v130 = vld [vmem:[%s2] sm:$0xff]
    %v131 = vld [vmem:[%s2 + $0x8] sm:$0xff]
    %v132 = vld [vmem:[%s2 + $0x10] sm:$0xf]
    %v133 = vld [vmem:[%s3] sm:$0xff]
    %v134 = vld [vmem:[%s3 + $0x8] sm:$0xff]
    %v135 = vld [vmem:[%s3 + $0x10] sm:$0xf]
    %vm136 = vcmask 162816
    %v138 = vsel %vm136, %v128, 0
    %v141 = vsel %vm136, %v129, 0
    %vm143 = vcmask 1043456
    %v145 = vsel %vm143, %v135, 0
    %147 = vmatprep.subr.mxu0 0.0
    %148 = vmatpush1.msra.mxu0 0.0
    %149 = vmatprep.subr.mxu0 0.0
    %150 = vmatpush1.msra.mxu0 0.0
    %151 = vmatprep.subr.mxu0 0.0
    %152 = vmatpush1.msra.mxu0 0.0
    %153 = vmatprep.subr.mxu0 0.0
    %154 = vmatpush1.msra.mxu0 0.0
    %155 = vmatprep.subr.mxu0 0.0
    %156 = vmatpush1.msra.mxu0 0.0
    %157 = vmatprep.subr.mxu0 0.0
    %158 = vmatpush1.msra.mxu0 0.0
    %159 = vmatprep.subr.mxu0 0.0
    %160 = vmatpush1.msra.mxu0 0.0
    %161 = vmatprep.subr.mxu0 0.0
    %162 = vmatpush1.msra.mxu0 0.0
    %163 = vmatprep.subr.mxu0 0.0
    %164 = vmatpush1.msra.mxu0 0.0
    %165 = vmatprep.subr.mxu0 0.0
    %166 = vmatpush1.msra.mxu0 0.0
    %167 = vmatprep.subr.mxu0 0.0
    %168 = vmatpush1.msra.mxu0 0.0
    %169 = vmatprep.subr.mxu0 0.0
    %170 = vmatpush1.msra.mxu0 0.0
    %171 = vmatprep.subr.mxu0 0.0
    %172 = vmatpush1.msra.mxu0 0.0
    %173 = vmatprep.subr.mxu0 0.0
    %174 = vmatpush1.msra.mxu0 %v145
    %175 = vmatprep.subr.mxu0 0.0
    %176 = vmatpush1.msra.mxu0 %v134
    %177 = vmatprep.subr.mxu0 0.0
    %178 = vmatpush1.msra.mxu0 %v133
    %179 = vmatprep.subr.mxu0 0.0
    %180 = vmatpush2.msra.mxu0 0.0
    %181 = vmatprep.subr.mxu0 0.0
    %182 = vmatpush2.msra.mxu0 0.0
    %183 = vmatprep.subr.mxu0 0.0
    %184 = vmatpush2.msra.mxu0 0.0
    %185 = vmatprep.subr.mxu0 0.0
    %186 = vmatpush2.msra.mxu0 0.0
    %187 = vmatprep.subr.mxu0 0.0
    %188 = vmatpush2.msra.mxu0 0.0
    %189 = vmatprep.subr.mxu0 0.0
    %190 = vmatpush2.msra.mxu0 0.0
    %191 = vmatprep.subr.mxu0 0.0
    %192 = vmatpush2.msra.mxu0 0.0
    %193 = vmatprep.subr.mxu0 0.0
    %194 = vmatpush2.msra.mxu0 0.0
    %195 = vmatprep.subr.mxu0 0.0
    %196 = vmatpush2.msra.mxu0 0.0
    %197 = vmatprep.subr.mxu0 0.0
    %198 = vmatpush2.msra.mxu0 0.0
    %199 = vmatprep.subr.mxu0 0.0
    %200 = vmatpush2.msra.mxu0 0.0
    %201 = vmatprep.subr.mxu0 0.0
    %202 = vmatpush2.msra.mxu0 0.0
    %203 = vmatprep.subr.mxu0 0.0
    %204 = vmatpush2.msra.mxu0 0.0
    %205 = vmatprep.subr.mxu0 0.0
    %206 = vmatpush2.msra.mxu0 0.0
    %207 = vmatprep.subr.mxu0 0.0
    %208 = vmatpush2.msra.mxu0 0.0
    %209 = vmatprep.subr.mxu0 0.0
    %210 = vmatpush2.msra.mxu0 0.0
    %211 = vmatprep.mubr.f32.mxu0 0.0
    %212 = vmatmul.mubr.f32.gmra.mxu0 %v138
    %v213 = vpop.f32.mrf.mxu0
    %v214 = vadd.f32 0.0, %v213
    %v215 = vpop.f32.mrf.mxu0
    %216 = vmatprep.mubr.f32.mxu0 0.0
    %217 = vmatmul.mubr.f32.gmra.mxu0 %v141
    %v218 = vpop.f32.mrf.mxu0
    %v219 = vadd.f32 0.0, %v218
    %v220 = vpop.f32.mrf.mxu0
    %221 = vdwg.mxu0
    %v223 = vsel %vm136, %v114, 0
    %v226 = vsel %vm136, %v115, 0
    %v229 = vsel %vm143, %v132, 0
    %231 = vmatprep.subr.mxu0 0.0
    %232 = vmatpush1.msra.mxu0 0.0
    %233 = vmatprep.subr.mxu0 0.0
    %234 = vmatpush1.msra.mxu0 0.0
    %235 = vmatprep.subr.mxu0 0.0
    %236 = vmatpush1.msra.mxu0 0.0
    %237 = vmatprep.subr.mxu0 0.0
    %238 = vmatpush1.msra.mxu0 0.0
    %239 = vmatprep.subr.mxu0 0.0
    %240 = vmatpush1.msra.mxu0 0.0
    %241 = vmatprep.subr.mxu0 0.0
    %242 = vmatpush1.msra.mxu0 0.0
    %243 = vmatprep.subr.mxu0 0.0
    %244 = vmatpush1.msra.mxu0 0.0
    %245 = vmatprep.subr.mxu0 0.0
    %246 = vmatpush1.msra.mxu0 0.0
    %247 = vmatprep.subr.mxu0 0.0
    %248 = vmatpush1.msra.mxu0 0.0
    %249 = vmatprep.subr.mxu0 0.0
    %250 = vmatpush1.msra.mxu0 0.0
    %251 = vmatprep.subr.mxu0 0.0
    %252 = vmatpush1.msra.mxu0 0.0
    %253 = vmatprep.subr.mxu0 0.0
    %254 = vmatpush1.msra.mxu0 0.0
    %255 = vmatprep.subr.mxu0 0.0
    %256 = vmatpush1.msra.mxu0 0.0
    %257 = vmatprep.subr.mxu0 0.0
    %258 = vmatpush1.msra.mxu0 %v229
    %259 = vmatprep.subr.mxu0 0.0
    %260 = vmatpush1.msra.mxu0 %v131
    %261 = vmatprep.subr.mxu0 0.0
    %262 = vmatpush1.msra.mxu0 %v130
    %263 = vmatprep.subr.mxu0 0.0
    %264 = vmatpush2.msra.mxu0 0.0
    %265 = vmatprep.subr.mxu0 0.0
    %266 = vmatpush2.msra.mxu0 0.0
    %267 = vmatprep.subr.mxu0 0.0
    %268 = vmatpush2.msra.mxu0 0.0
    %269 = vmatprep.subr.mxu0 0.0
    %270 = vmatpush2.msra.mxu0 0.0
    %271 = vmatprep.subr.mxu0 0.0
    %272 = vmatpush2.msra.mxu0 0.0
    %273 = vmatprep.subr.mxu0 0.0
    %274 = vmatpush2.msra.mxu0 0.0
    %275 = vmatprep.subr.mxu0 0.0
    %276 = vmatpush2.msra.mxu0 0.0
    %277 = vmatprep.subr.mxu0 0.0
    %278 = vmatpush2.msra.mxu0 0.0
    %279 = vmatprep.subr.mxu0 0.0
    %280 = vmatpush2.msra.mxu0 0.0
    %281 = vmatprep.subr.mxu0 0.0
    %282 = vmatpush2.msra.mxu0 0.0
    %283 = vmatprep.subr.mxu0 0.0
    %284 = vmatpush2.msra.mxu0 0.0
    %285 = vmatprep.subr.mxu0 0.0
    %286 = vmatpush2.msra.mxu0 0.0
    %287 = vmatprep.subr.mxu0 0.0
    %288 = vmatpush2.msra.mxu0 0.0
    %289 = vmatprep.subr.mxu0 0.0
    %290 = vmatpush2.msra.mxu0 0.0
    %291 = vmatprep.subr.mxu0 0.0
    %292 = vmatpush2.msra.mxu0 0.0
    %293 = vmatprep.subr.mxu0 0.0
    %294 = vmatpush2.msra.mxu0 0.0
    %295 = vmatprep.mubr.f32.mxu0 0.0
    %296 = vmatmul.mubr.f32.gmra.mxu0 %v223
    %v297 = vpop.f32.mrf.mxu0
    %v298 = vadd.f32 %v214, %v297
    %v299 = vpop.f32.mrf.mxu0
    %300 = vmatprep.mubr.f32.mxu0 0.0
    %301 = vmatmul.mubr.f32.gmra.mxu0 %v226
    %v302 = vpop.f32.mrf.mxu0
    %v303 = vadd.f32 %v219, %v302
    %v304 = vpop.f32.mrf.mxu0
    %305 = vdwg.mxu0
    %v306 = vld [vmem:[%s4] sm:$0xff]
    %v307 = vld [vmem:[%s4 + $0x8] sm:$0xff]
    %v308 = vld [vmem:[%s4 + $0x10] sm:$0xff]
    %v309 = vld [vmem:[%s4 + $0x18] sm:$0xff]
    %v310 = vld [vmem:[%s5] sm:$0x3]
    %v311 = vld [vmem:[%s6] sm:$0x3]
    %vm312 = vcmask 261120
    %v314 = vsel %vm312, %v310, 0
    %316 = vmatprep.subr.mxu0 0.0
    %317 = vmatpush1.msra.mxu0 0.0
    %318 = vmatprep.subr.mxu0 0.0
    %319 = vmatpush1.msra.mxu0 0.0
    %320 = vmatprep.subr.mxu0 0.0
    %321 = vmatpush1.msra.mxu0 0.0
    %322 = vmatprep.subr.mxu0 0.0
    %323 = vmatpush1.msra.mxu0 0.0
    %324 = vmatprep.subr.mxu0 0.0
    %325 = vmatpush1.msra.mxu0 0.0
    %326 = vmatprep.subr.mxu0 0.0
    %327 = vmatpush1.msra.mxu0 0.0
    %328 = vmatprep.subr.mxu0 0.0
    %329 = vmatpush1.msra.mxu0 0.0
    %330 = vmatprep.subr.mxu0 0.0
    %331 = vmatpush1.msra.mxu0 0.0
    %332 = vmatprep.subr.mxu0 0.0
    %333 = vmatpush1.msra.mxu0 0.0
    %334 = vmatprep.subr.mxu0 0.0
    %335 = vmatpush1.msra.mxu0 0.0
    %336 = vmatprep.subr.mxu0 0.0
    %337 = vmatpush1.msra.mxu0 0.0
    %338 = vmatprep.subr.mxu0 0.0
    %339 = vmatpush1.msra.mxu0 0.0
    %340 = vmatprep.subr.mxu0 0.0
    %341 = vmatpush1.msra.mxu0 %v309
    %342 = vmatprep.subr.mxu0 0.0
    %343 = vmatpush1.msra.mxu0 %v308
    %344 = vmatprep.subr.mxu0 0.0
    %345 = vmatpush1.msra.mxu0 %v307
    %346 = vmatprep.subr.mxu0 0.0
    %347 = vmatpush1.msra.mxu0 %v306
    %348 = vmatprep.subr.mxu0 0.0
    %349 = vmatpush2.msra.mxu0 0.0
    %350 = vmatprep.subr.mxu0 0.0
    %351 = vmatpush2.msra.mxu0 0.0
    %352 = vmatprep.subr.mxu0 0.0
    %353 = vmatpush2.msra.mxu0 0.0
    %354 = vmatprep.subr.mxu0 0.0
    %355 = vmatpush2.msra.mxu0 0.0
    %356 = vmatprep.subr.mxu0 0.0
    %357 = vmatpush2.msra.mxu0 0.0
    %358 = vmatprep.subr.mxu0 0.0
    %359 = vmatpush2.msra.mxu0 0.0
    %360 = vmatprep.subr.mxu0 0.0
    %361 = vmatpush2.msra.mxu0 0.0
    %362 = vmatprep.subr.mxu0 0.0
    %363 = vmatpush2.msra.mxu0 0.0
    %364 = vmatprep.subr.mxu0 0.0
    %365 = vmatpush2.msra.mxu0 0.0
    %366 = vmatprep.subr.mxu0 0.0
    %367 = vmatpush2.msra.mxu0 0.0
    %368 = vmatprep.subr.mxu0 0.0
    %369 = vmatpush2.msra.mxu0 0.0
    %370 = vmatprep.subr.mxu0 0.0
    %371 = vmatpush2.msra.mxu0 0.0
    %372 = vmatprep.subr.mxu0 0.0
    %373 = vmatpush2.msra.mxu0 0.0
    %374 = vmatprep.subr.mxu0 0.0
    %375 = vmatpush2.msra.mxu0 0.0
    %376 = vmatprep.subr.mxu0 0.0
    %377 = vmatpush2.msra.mxu0 0.0
    %378 = vmatprep.subr.mxu0 0.0
    %379 = vmatpush2.msra.mxu0 0.0
    %380 = vmatprep.mubr.f32.mxu0 0.0
    %381 = vmatmul.mubr.f32.gmra.mxu0 %v314
    %v382 = vpop.f32.mrf.mxu0
    %v383 = vadd.f32 0.0, %v382
    %v384 = vpop.f32.mrf.mxu0
    %385 = vdwg.mxu0
    %v386 = vadd.f32 %v298, %v383
    %v387 = vxor.u32 %v386, 2147483648
    %v388 = vmul.f32 %v387, 1.442695
    %v389 = vpow.pop %v388
    %v390 = vadd.f32 %v389, 1.0
    %v391 = vrcp.pop %v390
    %v392 = vmul.f32 1.0, %v391
    %v393 = vtanh.pop %v386
    %395 = vrot.lane.b32.xlu0 %v311, 32
    %v396 = vpop.permute.xlu0 %395
    %v398 = vmul.f32 %v392, %v396
    %400 = vrot.lane.b32.xlu0 %v393, 32
    %v401 = vpop.permute.xlu0 %400
    %v403 = vmul.f32 %v392, %v401
    %405 = vrot.lane.b32.xlu0 %v403, 32
    %v406 = vpop.permute.xlu0 %405
    %v408 = vadd.f32 %v398, %v406
    %v409 = vtanh.pop %v408
    %411 = vrot.lane.b32.xlu0 %v409, 32
    %v412 = vpop.permute.xlu0 %411
    %v414 = vmul.f32 %v392, %v412
    %416 = vrot.lane.b32.xlu0 %v414, 64
    %v417 = vpop.permute.xlu0 %416
    %vm419 = vcmask 123904
    %420 = vst.msk [vmem:[#allocation2] sm:$0x3] %vm419, %v417
    %421 = vrot.lane.b32.xlu0 %v414, 48
    %v422 = vpop.permute.xlu0 %421
    %424 = vst.msk [vmem:[#allocation3 + $0xe] sm:$0x3] %vm419, %v422
    %v425 = vsel %vm312, %v417, 0
    %427 = vmatprep.subr.mxu0 0.0
    %428 = vmatpush1.msra.mxu0 0.0
    %429 = vmatprep.subr.mxu0 0.0
    %430 = vmatpush1.msra.mxu0 0.0
    %431 = vmatprep.subr.mxu0 0.0
    %432 = vmatpush1.msra.mxu0 0.0
    %433 = vmatprep.subr.mxu0 0.0
    %434 = vmatpush1.msra.mxu0 0.0
    %435 = vmatprep.subr.mxu0 0.0
    %436 = vmatpush1.msra.mxu0 0.0
    %437 = vmatprep.subr.mxu0 0.0
    %438 = vmatpush1.msra.mxu0 0.0
    %439 = vmatprep.subr.mxu0 0.0
    %440 = vmatpush1.msra.mxu0 0.0
    %441 = vmatprep.subr.mxu0 0.0
    %442 = vmatpush1.msra.mxu0 0.0
    %443 = vmatprep.subr.mxu0 0.0
    %444 = vmatpush1.msra.mxu0 0.0
    %445 = vmatprep.subr.mxu0 0.0
    %446 = vmatpush1.msra.mxu0 0.0
    %447 = vmatprep.subr.mxu0 0.0
    %448 = vmatpush1.msra.mxu0 0.0
    %449 = vmatprep.subr.mxu0 0.0
    %450 = vmatpush1.msra.mxu0 0.0
    %451 = vmatprep.subr.mxu0 0.0
    %452 = vmatpush1.msra.mxu0 %v309
    %453 = vmatprep.subr.mxu0 0.0
    %454 = vmatpush1.msra.mxu0 %v308
    %455 = vmatprep.subr.mxu0 0.0
    %456 = vmatpush1.msra.mxu0 %v307
    %457 = vmatprep.subr.mxu0 0.0
    %458 = vmatpush1.msra.mxu0 %v306
    %459 = vmatprep.subr.mxu0 0.0
    %460 = vmatpush2.msra.mxu0 0.0
    %461 = vmatprep.subr.mxu0 0.0
    %462 = vmatpush2.msra.mxu0 0.0
    %463 = vmatprep.subr.mxu0 0.0
    %464 = vmatpush2.msra.mxu0 0.0
    %465 = vmatprep.subr.mxu0 0.0
    %466 = vmatpush2.msra.mxu0 0.0
    %467 = vmatprep.subr.mxu0 0.0
    %468 = vmatpush2.msra.mxu0 0.0
    %469 = vmatprep.subr.mxu0 0.0
    %470 = vmatpush2.msra.mxu0 0.0
    %471 = vmatprep.subr.mxu0 0.0
    %472 = vmatpush2.msra.mxu0 0.0
    %473 = vmatprep.subr.mxu0 0.0
    %474 = vmatpush2.msra.mxu0 0.0
    %475 = vmatprep.subr.mxu0 0.0
    %476 = vmatpush2.msra.mxu0 0.0
    %477 = vmatprep.subr.mxu0 0.0
    %478 = vmatpush2.msra.mxu0 0.0
    %479 = vmatprep.subr.mxu0 0.0
    %480 = vmatpush2.msra.mxu0 0.0
    %481 = vmatprep.subr.mxu0 0.0
    %482 = vmatpush2.msra.mxu0 0.0
    %483 = vmatprep.subr.mxu0 0.0
    %484 = vmatpush2.msra.mxu0 0.0
    %485 = vmatprep.subr.mxu0 0.0
    %486 = vmatpush2.msra.mxu0 0.0
    %487 = vmatprep.subr.mxu0 0.0
    %488 = vmatpush2.msra.mxu0 0.0
    %489 = vmatprep.subr.mxu0 0.0
    %490 = vmatpush2.msra.mxu0 0.0
    %491 = vmatprep.mubr.f32.mxu0 0.0
    %492 = vmatmul.mubr.f32.gmra.mxu0 %v425
    %v493 = vpop.f32.mrf.mxu0
    %v494 = vadd.f32 0.0, %v493
    %v495 = vpop.f32.mrf.mxu0
    %496 = vdwg.mxu0
    %v498 = vrot.slane %v494, 6
    %v500 = vadd.f32 %v298, %v498
    %v501 = vxor.u32 %v500, 2147483648
    %v502 = vmul.f32 %v501, 1.442695
    %v503 = vpow.pop %v502
    %v504 = vadd.f32 %v503, 1.0
    %v505 = vrcp.pop %v504
    %v506 = vmul.f32 1.0, %v505
    %v507 = vtanh.pop %v500
    %v509 = vrot.slane %v408, 6
    %v511 = vmul.f32 %v506, %v509
    %513 = vrot.lane.b32.xlu0 %v507, 32
    %v514 = vpop.permute.xlu0 %513
    %v516 = vmul.f32 %v506, %v514
    %518 = vrot.lane.b32.xlu0 %v516, 32
    %v519 = vpop.permute.xlu0 %518
    %v521 = vadd.f32 %v511, %v519
    %v522 = vtanh.pop %v521
    %524 = vrot.lane.b32.xlu0 %v522, 32
    %v525 = vpop.permute.xlu0 %524
    %v527 = vmul.f32 %v506, %v525
    %529 = vrot.lane.b32.xlu0 %v527, 64
    %v530 = vpop.permute.xlu0 %529
    %vm532 = vcmask 125954
    %533 = vst.msk [vmem:[#allocation2] sm:$0xc] %vm532, %v530
    %534 = vrot.lane.b32.xlu0 %v527, 48
    %v535 = vpop.permute.xlu0 %534
    %537 = vst.msk [vmem:[#allocation3 + $0xa] sm:$0xc] %vm532, %v535
    %v538 = vrot.slane %v527, 2
    %539 = vrot.lane.b32.xlu0 %v538, 64
    %v540 = vpop.permute.xlu0 %539
    %v541 = vsel %vm312, %v540, 0
    %543 = vmatprep.subr.mxu0 0.0
    %544 = vmatpush1.msra.mxu0 0.0
    %545 = vmatprep.subr.mxu0 0.0
    %546 = vmatpush1.msra.mxu0 0.0
    %547 = vmatprep.subr.mxu0 0.0
    %548 = vmatpush1.msra.mxu0 0.0
    %549 = vmatprep.subr.mxu0 0.0
    %550 = vmatpush1.msra.mxu0 0.0
    %551 = vmatprep.subr.mxu0 0.0
    %552 = vmatpush1.msra.mxu0 0.0
    %553 = vmatprep.subr.mxu0 0.0
    %554 = vmatpush1.msra.mxu0 0.0
    %555 = vmatprep.subr.mxu0 0.0
    %556 = vmatpush1.msra.mxu0 0.0
    %557 = vmatprep.subr.mxu0 0.0
    %558 = vmatpush1.msra.mxu0 0.0
    %559 = vmatprep.subr.mxu0 0.0
    %560 = vmatpush1.msra.mxu0 0.0
    %561 = vmatprep.subr.mxu0 0.0
    %562 = vmatpush1.msra.mxu0 0.0
    %563 = vmatprep.subr.mxu0 0.0
    %564 = vmatpush1.msra.mxu0 0.0
    %565 = vmatprep.subr.mxu0 0.0
    %566 = vmatpush1.msra.mxu0 0.0
    %567 = vmatprep.subr.mxu0 0.0
    %568 = vmatpush1.msra.mxu0 %v309
    %569 = vmatprep.subr.mxu0 0.0
    %570 = vmatpush1.msra.mxu0 %v308
    %571 = vmatprep.subr.mxu0 0.0
    %572 = vmatpush1.msra.mxu0 %v307
    %573 = vmatprep.subr.mxu0 0.0
    %574 = vmatpush1.msra.mxu0 %v306
    %575 = vmatprep.subr.mxu0 0.0
    %576 = vmatpush2.msra.mxu0 0.0
    %577 = vmatprep.subr.mxu0 0.0
    %578 = vmatpush2.msra.mxu0 0.0
    %579 = vmatprep.subr.mxu0 0.0
    %580 = vmatpush2.msra.mxu0 0.0
    %581 = vmatprep.subr.mxu0 0.0
    %582 = vmatpush2.msra.mxu0 0.0
    %583 = vmatprep.subr.mxu0 0.0
    %584 = vmatpush2.msra.mxu0 0.0
    %585 = vmatprep.subr.mxu0 0.0
    %586 = vmatpush2.msra.mxu0 0.0
    %587 = vmatprep.subr.mxu0 0.0
    %588 = vmatpush2.msra.mxu0 0.0
    %589 = vmatprep.subr.mxu0 0.0
    %590 = vmatpush2.msra.mxu0 0.0
    %591 = vmatprep.subr.mxu0 0.0
    %592 = vmatpush2.msra.mxu0 0.0
    %593 = vmatprep.subr.mxu0 0.0
    %594 = vmatpush2.msra.mxu0 0.0
    %595 = vmatprep.subr.mxu0 0.0
    %596 = vmatpush2.msra.mxu0 0.0
    %597 = vmatprep.subr.mxu0 0.0
    %598 = vmatpush2.msra.mxu0 0.0
    %599 = vmatprep.subr.mxu0 0.0
    %600 = vmatpush2.msra.mxu0 0.0
    %601 = vmatprep.subr.mxu0 0.0
    %602 = vmatpush2.msra.mxu0 0.0
    %603 = vmatprep.subr.mxu0 0.0
    %604 = vmatpush2.msra.mxu0 0.0
    %605 = vmatprep.subr.mxu0 0.0
    %606 = vmatpush2.msra.mxu0 0.0
    %607 = vmatprep.mubr.f32.mxu0 0.0
    %608 = vmatmul.mubr.f32.gmra.mxu0 %v541
    %v609 = vpop.f32.mrf.mxu0
    %v610 = vadd.f32 0.0, %v609
    %v611 = vpop.f32.mrf.mxu0
    %612 = vdwg.mxu0
    %v614 = vrot.slane %v610, 4
    %v616 = vadd.f32 %v298, %v614
    %v617 = vxor.u32 %v616, 2147483648
    %v618 = vmul.f32 %v617, 1.442695
    %v619 = vpow.pop %v618
    %v620 = vadd.f32 %v619, 1.0
    %v621 = vrcp.pop %v620
    %v622 = vmul.f32 1.0, %v621
    %v623 = vtanh.pop %v616
    %v625 = vrot.slane %v521, 6
    %v627 = vmul.f32 %v622, %v625
    %629 = vrot.lane.b32.xlu0 %v623, 32
    %v630 = vpop.permute.xlu0 %629
    %v632 = vmul.f32 %v622, %v630
    %634 = vrot.lane.b32.xlu0 %v632, 32
    %v635 = vpop.permute.xlu0 %634
    %v637 = vadd.f32 %v627, %v635
    %v638 = vtanh.pop %v637
    %640 = vrot.lane.b32.xlu0 %v638, 32
    %v641 = vpop.permute.xlu0 %640
    %v643 = vmul.f32 %v622, %v641
    %645 = vrot.lane.b32.xlu0 %v643, 64
    %v646 = vpop.permute.xlu0 %645
    %vm648 = vcmask 128004
    %649 = vst.msk [vmem:[#allocation2] sm:$0x30] %vm648, %v646
    %650 = vrot.lane.b32.xlu0 %v643, 48
    %v651 = vpop.permute.xlu0 %650
    %653 = vst.msk [vmem:[#allocation3 + $0x6] sm:$0x30] %vm648, %v651
    %v654 = vrot.slane %v643, 4
    %655 = vrot.lane.b32.xlu0 %v654, 64
    %v656 = vpop.permute.xlu0 %655
    %v657 = vsel %vm312, %v656, 0
    %659 = vmatprep.subr.mxu0 0.0
    %660 = vmatpush1.msra.mxu0 0.0
    %661 = vmatprep.subr.mxu0 0.0
    %662 = vmatpush1.msra.mxu0 0.0
    %663 = vmatprep.subr.mxu0 0.0
    %664 = vmatpush1.msra.mxu0 0.0
    %665 = vmatprep.subr.mxu0 0.0
    %666 = vmatpush1.msra.mxu0 0.0
    %667 = vmatprep.subr.mxu0 0.0
    %668 = vmatpush1.msra.mxu0 0.0
    %669 = vmatprep.subr.mxu0 0.0
    %670 = vmatpush1.msra.mxu0 0.0
    %671 = vmatprep.subr.mxu0 0.0
    %672 = vmatpush1.msra.mxu0 0.0
    %673 = vmatprep.subr.mxu0 0.0
    %674 = vmatpush1.msra.mxu0 0.0
    %675 = vmatprep.subr.mxu0 0.0
    %676 = vmatpush1.msra.mxu0 0.0
    %677 = vmatprep.subr.mxu0 0.0
    %678 = vmatpush1.msra.mxu0 0.0
    %679 = vmatprep.subr.mxu0 0.0
    %680 = vmatpush1.msra.mxu0 0.0
    %681 = vmatprep.subr.mxu0 0.0
    %682 = vmatpush1.msra.mxu0 0.0
    %683 = vmatprep.subr.mxu0 0.0
    %684 = vmatpush1.msra.mxu0 %v309
    %685 = vmatprep.subr.mxu0 0.0
    %686 = vmatpush1.msra.mxu0 %v308
    %687 = vmatprep.subr.mxu0 0.0
    %688 = vmatpush1.msra.mxu0 %v307
    %689 = vmatprep.subr.mxu0 0.0
    %690 = vmatpush1.msra.mxu0 %v306
    %691 = vmatprep.subr.mxu0 0.0
    %692 = vmatpush2.msra.mxu0 0.0
    %693 = vmatprep.subr.mxu0 0.0
    %694 = vmatpush2.msra.mxu0 0.0
    %695 = vmatprep.subr.mxu0 0.0
    %696 = vmatpush2.msra.mxu0 0.0
    %697 = vmatprep.subr.mxu0 0.0
    %698 = vmatpush2.msra.mxu0 0.0
    %699 = vmatprep.subr.mxu0 0.0
    %700 = vmatpush2.msra.mxu0 0.0
    %701 = vmatprep.subr.mxu0 0.0
    %702 = vmatpush2.msra.mxu0 0.0
    %703 = vmatprep.subr.mxu0 0.0
    %704 = vmatpush2.msra.mxu0 0.0
    %705 = vmatprep.subr.mxu0 0.0
    %706 = vmatpush2.msra.mxu0 0.0
    %707 = vmatprep.subr.mxu0 0.0
    %708 = vmatpush2.msra.mxu0 0.0
    %709 = vmatprep.subr.mxu0 0.0
    %710 = vmatpush2.msra.mxu0 0.0
    %711 = vmatprep.subr.mxu0 0.0
    %712 = vmatpush2.msra.mxu0 0.0
    %713 = vmatprep.subr.mxu0 0.0
    %714 = vmatpush2.msra.mxu0 0.0
    %715 = vmatprep.subr.mxu0 0.0
    %716 = vmatpush2.msra.mxu0 0.0
    %717 = vmatprep.subr.mxu0 0.0
    %718 = vmatpush2.msra.mxu0 0.0
    %719 = vmatprep.subr.mxu0 0.0
    %720 = vmatpush2.msra.mxu0 0.0
    %721 = vmatprep.subr.mxu0 0.0
    %722 = vmatpush2.msra.mxu0 0.0
    %723 = vmatprep.mubr.f32.mxu0 0.0
    %724 = vmatmul.mubr.f32.gmra.mxu0 %v657
    %v725 = vpop.f32.mrf.mxu0
    %v726 = vadd.f32 0.0, %v725
    %v727 = vpop.f32.mrf.mxu0
    %728 = vdwg.mxu0
    %v730 = vrot.slane %v726, 2
    %v732 = vadd.f32 %v298, %v730
    %v733 = vxor.u32 %v732, 2147483648
    %v734 = vmul.f32 %v733, 1.442695
    %v735 = vpow.pop %v734
    %v736 = vadd.f32 %v735, 1.0
    %v737 = vrcp.pop %v736
    %v738 = vmul.f32 1.0, %v737
    %v739 = vtanh.pop %v732
    %v741 = vrot.slane %v637, 6
    %v743 = vmul.f32 %v738, %v741
    %745 = vrot.lane.b32.xlu0 %v739, 32
    %v746 = vpop.permute.xlu0 %745
    %v748 = vmul.f32 %v738, %v746
    %750 = vrot.lane.b32.xlu0 %v748, 32
    %v751 = vpop.permute.xlu0 %750
    %v753 = vadd.f32 %v743, %v751
    %v754 = vtanh.pop %v753
    %756 = vrot.lane.b32.xlu0 %v754, 32
    %v757 = vpop.permute.xlu0 %756
    %v759 = vmul.f32 %v738, %v757
    %761 = vrot.lane.b32.xlu0 %v759, 64
    %v762 = vpop.permute.xlu0 %761
    %vm764 = vcmask 130054
    %765 = vst.msk [vmem:[#allocation2] sm:$0xc0] %vm764, %v762
    %766 = vrot.lane.b32.xlu0 %v759, 48
    %v767 = vpop.permute.xlu0 %766
    %769 = vst.msk [vmem:[#allocation3 + $0x2] sm:$0xc0] %vm764, %v767
    %v770 = vrot.slane %v759, 6
    %771 = vrot.lane.b32.xlu0 %v770, 64
    %v772 = vpop.permute.xlu0 %771
    %v773 = vsel %vm312, %v772, 0
    %775 = vmatprep.subr.mxu0 0.0
    %776 = vmatpush1.msra.mxu0 0.0
    %777 = vmatprep.subr.mxu0 0.0
    %778 = vmatpush1.msra.mxu0 0.0
    %779 = vmatprep.subr.mxu0 0.0
    %780 = vmatpush1.msra.mxu0 0.0
    %781 = vmatprep.subr.mxu0 0.0
    %782 = vmatpush1.msra.mxu0 0.0
    %783 = vmatprep.subr.mxu0 0.0
    %784 = vmatpush1.msra.mxu0 0.0
    %785 = vmatprep.subr.mxu0 0.0
    %786 = vmatpush1.msra.mxu0 0.0
    %787 = vmatprep.subr.mxu0 0.0
    %788 = vmatpush1.msra.mxu0 0.0
    %789 = vmatprep.subr.mxu0 0.0
    %790 = vmatpush1.msra.mxu0 0.0
    %791 = vmatprep.subr.mxu0 0.0
    %792 = vmatpush1.msra.mxu0 0.0
    %793 = vmatprep.subr.mxu0 0.0
    %794 = vmatpush1.msra.mxu0 0.0
    %795 = vmatprep.subr.mxu0 0.0
    %796 = vmatpush1.msra.mxu0 0.0
    %797 = vmatprep.subr.mxu0 0.0
    %798 = vmatpush1.msra.mxu0 0.0
    %799 = vmatprep.subr.mxu0 0.0
    %800 = vmatpush1.msra.mxu0 %v309
    %801 = vmatprep.subr.mxu0 0.0
    %802 = vmatpush1.msra.mxu0 %v308
    %803 = vmatprep.subr.mxu0 0.0
    %804 = vmatpush1.msra.mxu0 %v307
    %805 = vmatprep.subr.mxu0 0.0
    %806 = vmatpush1.msra.mxu0 %v306
    %807 = vmatprep.subr.mxu0 0.0
    %808 = vmatpush2.msra.mxu0 0.0
    %809 = vmatprep.subr.mxu0 0.0
    %810 = vmatpush2.msra.mxu0 0.0
    %811 = vmatprep.subr.mxu0 0.0
    %812 = vmatpush2.msra.mxu0 0.0
    %813 = vmatprep.subr.mxu0 0.0
    %814 = vmatpush2.msra.mxu0 0.0
    %815 = vmatprep.subr.mxu0 0.0
    %816 = vmatpush2.msra.mxu0 0.0
    %817 = vmatprep.subr.mxu0 0.0
    %818 = vmatpush2.msra.mxu0 0.0
    %819 = vmatprep.subr.mxu0 0.0
    %820 = vmatpush2.msra.mxu0 0.0
    %821 = vmatprep.subr.mxu0 0.0
    %822 = vmatpush2.msra.mxu0 0.0
    %823 = vmatprep.subr.mxu0 0.0
    %824 = vmatpush2.msra.mxu0 0.0
    %825 = vmatprep.subr.mxu0 0.0
    %826 = vmatpush2.msra.mxu0 0.0
    %827 = vmatprep.subr.mxu0 0.0
    %828 = vmatpush2.msra.mxu0 0.0
    %829 = vmatprep.subr.mxu0 0.0
    %830 = vmatpush2.msra.mxu0 0.0
    %831 = vmatprep.subr.mxu0 0.0
    %832 = vmatpush2.msra.mxu0 0.0
    %833 = vmatprep.subr.mxu0 0.0
    %834 = vmatpush2.msra.mxu0 0.0
    %835 = vmatprep.subr.mxu0 0.0
    %836 = vmatpush2.msra.mxu0 0.0
    %837 = vmatprep.subr.mxu0 0.0
    %838 = vmatpush2.msra.mxu0 0.0
    %839 = vmatprep.mubr.f32.mxu0 0.0
    %840 = vmatmul.mubr.f32.gmra.mxu0 %v773
    %v841 = vpop.f32.mrf.mxu0
    %v842 = vadd.f32 0.0, %v841
    %v843 = vpop.f32.mrf.mxu0
    %844 = vdwg.mxu0
    %v845 = vadd.f32 %v303, %v842
    %v846 = vxor.u32 %v845, 2147483648
    %v847 = vmul.f32 %v846, 1.442695
    %v848 = vpow.pop %v847
    %v849 = vadd.f32 %v848, 1.0
    %v850 = vrcp.pop %v849
    %v851 = vmul.f32 1.0, %v850
    %v852 = vtanh.pop %v845
    %v854 = vrot.slane %v753, 6
    %v856 = vmul.f32 %v851, %v854
    %858 = vrot.lane.b32.xlu0 %v852, 32
    %v859 = vpop.permute.xlu0 %858
    %v861 = vmul.f32 %v851, %v859
    %863 = vrot.lane.b32.xlu0 %v861, 32
    %v864 = vpop.permute.xlu0 %863
    %v866 = vadd.f32 %v856, %v864
    %v867 = vtanh.pop %v866
    %869 = vrot.lane.b32.xlu0 %v867, 32
    %v870 = vpop.permute.xlu0 %869
    %v872 = vmul.f32 %v851, %v870
    %874 = vrot.lane.b32.xlu0 %v872, 64
    %v875 = vpop.permute.xlu0 %874
    %877 = vst.msk [vmem:[#allocation2 + $0x8] sm:$0x3] %vm419, %v875
    %878 = vrot.lane.b32.xlu0 %v872, 48
    %v879 = vpop.permute.xlu0 %878
    %881 = vst.msk [vmem:[#allocation3 + $0x6] sm:$0x3] %vm419, %v879
    %v882 = vsel %vm312, %v875, 0
    %884 = vmatprep.subr.mxu0 0.0
    %885 = vmatpush1.msra.mxu0 0.0
    %886 = vmatprep.subr.mxu0 0.0
    %887 = vmatpush1.msra.mxu0 0.0
    %888 = vmatprep.subr.mxu0 0.0
    %889 = vmatpush1.msra.mxu0 0.0
    %890 = vmatprep.subr.mxu0 0.0
    %891 = vmatpush1.msra.mxu0 0.0
    %892 = vmatprep.subr.mxu0 0.0
    %893 = vmatpush1.msra.mxu0 0.0
    %894 = vmatprep.subr.mxu0 0.0
    %895 = vmatpush1.msra.mxu0 0.0
    %896 = vmatprep.subr.mxu0 0.0
    %897 = vmatpush1.msra.mxu0 0.0
    %898 = vmatprep.subr.mxu0 0.0
    %899 = vmatpush1.msra.mxu0 0.0
    %900 = vmatprep.subr.mxu0 0.0
    %901 = vmatpush1.msra.mxu0 0.0
    %902 = vmatprep.subr.mxu0 0.0
    %903 = vmatpush1.msra.mxu0 0.0
    %904 = vmatprep.subr.mxu0 0.0
    %905 = vmatpush1.msra.mxu0 0.0
    %906 = vmatprep.subr.mxu0 0.0
    %907 = vmatpush1.msra.mxu0 0.0
    %908 = vmatprep.subr.mxu0 0.0
    %909 = vmatpush1.msra.mxu0 %v309
    %910 = vmatprep.subr.mxu0 0.0
    %911 = vmatpush1.msra.mxu0 %v308
    %912 = vmatprep.subr.mxu0 0.0
    %913 = vmatpush1.msra.mxu0 %v307
    %914 = vmatprep.subr.mxu0 0.0
    %915 = vmatpush1.msra.mxu0 %v306
    %916 = vmatprep.subr.mxu0 0.0
    %917 = vmatpush2.msra.mxu0 0.0
    %918 = vmatprep.subr.mxu0 0.0
    %919 = vmatpush2.msra.mxu0 0.0
    %920 = vmatprep.subr.mxu0 0.0
    %921 = vmatpush2.msra.mxu0 0.0
    %922 = vmatprep.subr.mxu0 0.0
    %923 = vmatpush2.msra.mxu0 0.0
    %924 = vmatprep.subr.mxu0 0.0
    %925 = vmatpush2.msra.mxu0 0.0
    %926 = vmatprep.subr.mxu0 0.0
    %927 = vmatpush2.msra.mxu0 0.0
    %928 = vmatprep.subr.mxu0 0.0
    %929 = vmatpush2.msra.mxu0 0.0
    %930 = vmatprep.subr.mxu0 0.0
    %931 = vmatpush2.msra.mxu0 0.0
    %932 = vmatprep.subr.mxu0 0.0
    %933 = vmatpush2.msra.mxu0 0.0
    %934 = vmatprep.subr.mxu0 0.0
    %935 = vmatpush2.msra.mxu0 0.0
    %936 = vmatprep.subr.mxu0 0.0
    %937 = vmatpush2.msra.mxu0 0.0
    %938 = vmatprep.subr.mxu0 0.0
    %939 = vmatpush2.msra.mxu0 0.0
    %940 = vmatprep.subr.mxu0 0.0
    %941 = vmatpush2.msra.mxu0 0.0
    %942 = vmatprep.subr.mxu0 0.0
    %943 = vmatpush2.msra.mxu0 0.0
    %944 = vmatprep.subr.mxu0 0.0
    %945 = vmatpush2.msra.mxu0 0.0
    %946 = vmatprep.subr.mxu0 0.0
    %947 = vmatpush2.msra.mxu0 0.0
    %948 = vmatprep.mubr.f32.mxu0 0.0
    %949 = vmatmul.mubr.f32.gmra.mxu0 %v882
    %v950 = vpop.f32.mrf.mxu0
    %v951 = vadd.f32 0.0, %v950
    %v952 = vpop.f32.mrf.mxu0
    %953 = vdwg.mxu0
    %v955 = vrot.slane %v951, 6
    %v957 = vadd.f32 %v303, %v955
    %v958 = vxor.u32 %v957, 2147483648
    %v959 = vmul.f32 %v958, 1.442695
    %v960 = vpow.pop %v959
    %v961 = vadd.f32 %v960, 1.0
    %v962 = vrcp.pop %v961
    %v963 = vmul.f32 1.0, %v962
    %v964 = vtanh.pop %v957
    %v966 = vrot.slane %v866, 6
    %v968 = vmul.f32 %v963, %v966
    %970 = vrot.lane.b32.xlu0 %v964, 32
    %v971 = vpop.permute.xlu0 %970
    %v973 = vmul.f32 %v963, %v971
    %975 = vrot.lane.b32.xlu0 %v973, 32
    %v976 = vpop.permute.xlu0 %975
    %v978 = vadd.f32 %v968, %v976
    %v979 = vtanh.pop %v978
    %981 = vrot.lane.b32.xlu0 %v979, 32
    %v982 = vpop.permute.xlu0 %981
    %v984 = vmul.f32 %v963, %v982
    %986 = vrot.lane.b32.xlu0 %v984, 64
    %v987 = vpop.permute.xlu0 %986
    %989 = vst.msk [vmem:[#allocation2 + $0x8] sm:$0xc] %vm532, %v987
    %990 = vrot.lane.b32.xlu0 %v984, 48
    %v991 = vpop.permute.xlu0 %990
    %993 = vst.msk [vmem:[#allocation3 + $0x2] sm:$0xc] %vm532, %v991
    %v994 = vrot.slane %v984, 2
    %995 = vrot.lane.b32.xlu0 %v994, 64
    %v996 = vpop.permute.xlu0 %995
    %v997 = vsel %vm312, %v996, 0
    %999 = vmatprep.subr.mxu0 0.0
    %1000 = vmatpush1.msra.mxu0 0.0
    %1001 = vmatprep.subr.mxu0 0.0
    %1002 = vmatpush1.msra.mxu0 0.0
    %1003 = vmatprep.subr.mxu0 0.0
    %1004 = vmatpush1.msra.mxu0 0.0
    %1005 = vmatprep.subr.mxu0 0.0
    %1006 = vmatpush1.msra.mxu0 0.0
    %1007 = vmatprep.subr.mxu0 0.0
    %1008 = vmatpush1.msra.mxu0 0.0
    %1009 = vmatprep.subr.mxu0 0.0
    %1010 = vmatpush1.msra.mxu0 0.0
    %1011 = vmatprep.subr.mxu0 0.0
    %1012 = vmatpush1.msra.mxu0 0.0
    %1013 = vmatprep.subr.mxu0 0.0
    %1014 = vmatpush1.msra.mxu0 0.0
    %1015 = vmatprep.subr.mxu0 0.0
    %1016 = vmatpush1.msra.mxu0 0.0
    %1017 = vmatprep.subr.mxu0 0.0
    %1018 = vmatpush1.msra.mxu0 0.0
    %1019 = vmatprep.subr.mxu0 0.0
    %1020 = vmatpush1.msra.mxu0 0.0
    %1021 = vmatprep.subr.mxu0 0.0
    %1022 = vmatpush1.msra.mxu0 0.0
    %1023 = vmatprep.subr.mxu0 0.0
    %1024 = vmatpush1.msra.mxu0 %v309
    %1025 = vmatprep.subr.mxu0 0.0
    %1026 = vmatpush1.msra.mxu0 %v308
    %1027 = vmatprep.subr.mxu0 0.0
    %1028 = vmatpush1.msra.mxu0 %v307
    %1029 = vmatprep.subr.mxu0 0.0
    %1030 = vmatpush1.msra.mxu0 %v306
    %1031 = vmatprep.subr.mxu0 0.0
    %1032 = vmatpush2.msra.mxu0 0.0
    %1033 = vmatprep.subr.mxu0 0.0
    %1034 = vmatpush2.msra.mxu0 0.0
    %1035 = vmatprep.subr.mxu0 0.0
    %1036 = vmatpush2.msra.mxu0 0.0
    %1037 = vmatprep.subr.mxu0 0.0
    %1038 = vmatpush2.msra.mxu0 0.0
    %1039 = vmatprep.subr.mxu0 0.0
    %1040 = vmatpush2.msra.mxu0 0.0
    %1041 = vmatprep.subr.mxu0 0.0
    %1042 = vmatpush2.msra.mxu0 0.0
    %1043 = vmatprep.subr.mxu0 0.0
    %1044 = vmatpush2.msra.mxu0 0.0
    %1045 = vmatprep.subr.mxu0 0.0
    %1046 = vmatpush2.msra.mxu0 0.0
    %1047 = vmatprep.subr.mxu0 0.0
    %1048 = vmatpush2.msra.mxu0 0.0
    %1049 = vmatprep.subr.mxu0 0.0
    %1050 = vmatpush2.msra.mxu0 0.0
    %1051 = vmatprep.subr.mxu0 0.0
    %1052 = vmatpush2.msra.mxu0 0.0
    %1053 = vmatprep.subr.mxu0 0.0
    %1054 = vmatpush2.msra.mxu0 0.0
    %1055 = vmatprep.subr.mxu0 0.0
    %1056 = vmatpush2.msra.mxu0 0.0
    %1057 = vmatprep.subr.mxu0 0.0
    %1058 = vmatpush2.msra.mxu0 0.0
    %1059 = vmatprep.subr.mxu0 0.0
    %1060 = vmatpush2.msra.mxu0 0.0
    %1061 = vmatprep.subr.mxu0 0.0
    %1062 = vmatpush2.msra.mxu0 0.0
    %1063 = vmatprep.mubr.f32.mxu0 0.0
    %1064 = vmatmul.mubr.f32.gmra.mxu0 %v997
    %v1065 = vpop.f32.mrf.mxu0
    %v1066 = vadd.f32 0.0, %v1065
    %v1067 = vpop.f32.mrf.mxu0
    %1068 = vdwg.mxu0
    %v1070 = vrot.slane %v1066, 4
    %v1072 = vadd.f32 %v303, %v1070
    %v1073 = vxor.u32 %v1072, 2147483648
    %v1074 = vmul.f32 %v1073, 1.442695
    %v1075 = vpow.pop %v1074
    %v1076 = vadd.f32 %v1075, 1.0
    %v1077 = vrcp.pop %v1076
    %v1078 = vmul.f32 1.0, %v1077
    %v1079 = vtanh.pop %v1072
    %v1081 = vrot.slane %v978, 6
    %v1083 = vmul.f32 %v1078, %v1081
    %1085 = vrot.lane.b32.xlu0 %v1079, 32
    %v1086 = vpop.permute.xlu0 %1085
    %v1088 = vmul.f32 %v1078, %v1086
    %1090 = vrot.lane.b32.xlu0 %v1088, 32
    %v1091 = vpop.permute.xlu0 %1090
    %v1093 = vadd.f32 %v1083, %v1091
    %v1094 = vtanh.pop %v1093
    %1096 = vrot.lane.b32.xlu0 %v1094, 32
    %v1097 = vpop.permute.xlu0 %1096
    %v1099 = vmul.f32 %v1078, %v1097
    %1101 = vrot.lane.b32.xlu0 %v1099, 64
    %v1102 = vpop.permute.xlu0 %1101
    %1104 = vst.msk [vmem:[#allocation2 + $0x8] sm:$0x30] %vm648, %v1102
    %1105 = vrot.lane.b32.xlu0 %v1099, 48
    %v1106 = vpop.permute.xlu0 %1105
    %1108 = vst.msk [vmem:[#allocation3 - $0x2] sm:$0x30] %vm648, %v1106
    %v1109 = vrot.slane %v1099, 4
    %1110 = vrot.lane.b32.xlu0 %v1109, 64
    %v1111 = vpop.permute.xlu0 %1110
    %v1112 = vsel %vm312, %v1111, 0
    %1114 = vmatprep.subr.mxu0 0.0
    %1115 = vmatpush1.msra.mxu0 0.0
    %1116 = vmatprep.subr.mxu0 0.0
    %1117 = vmatpush1.msra.mxu0 0.0
    %1118 = vmatprep.subr.mxu0 0.0
    %1119 = vmatpush1.msra.mxu0 0.0
    %1120 = vmatprep.subr.mxu0 0.0
    %1121 = vmatpush1.msra.mxu0 0.0
    %1122 = vmatprep.subr.mxu0 0.0
    %1123 = vmatpush1.msra.mxu0 0.0
    %1124 = vmatprep.subr.mxu0 0.0
    %1125 = vmatpush1.msra.mxu0 0.0
    %1126 = vmatprep.subr.mxu0 0.0
    %1127 = vmatpush1.msra.mxu0 0.0
    %1128 = vmatprep.subr.mxu0 0.0
    %1129 = vmatpush1.msra.mxu0 0.0
    %1130 = vmatprep.subr.mxu0 0.0
    %1131 = vmatpush1.msra.mxu0 0.0
    %1132 = vmatprep.subr.mxu0 0.0
    %1133 = vmatpush1.msra.mxu0 0.0
    %1134 = vmatprep.subr.mxu0 0.0
    %1135 = vmatpush1.msra.mxu0 0.0
    %1136 = vmatprep.subr.mxu0 0.0
    %1137 = vmatpush1.msra.mxu0 0.0
    %1138 = vmatprep.subr.mxu0 0.0
    %1139 = vmatpush1.msra.mxu0 %v309
    %1140 = vmatprep.subr.mxu0 0.0
    %1141 = vmatpush1.msra.mxu0 %v308
    %1142 = vmatprep.subr.mxu0 0.0
    %1143 = vmatpush1.msra.mxu0 %v307
    %1144 = vmatprep.subr.mxu0 0.0
    %1145 = vmatpush1.msra.mxu0 %v306
    %1146 = vmatprep.subr.mxu0 0.0
    %1147 = vmatpush2.msra.mxu0 0.0
    %1148 = vmatprep.subr.mxu0 0.0
    %1149 = vmatpush2.msra.mxu0 0.0
    %1150 = vmatprep.subr.mxu0 0.0
    %1151 = vmatpush2.msra.mxu0 0.0
    %1152 = vmatprep.subr.mxu0 0.0
    %1153 = vmatpush2.msra.mxu0 0.0
    %1154 = vmatprep.subr.mxu0 0.0
    %1155 = vmatpush2.msra.mxu0 0.0
    %1156 = vmatprep.subr.mxu0 0.0
    %1157 = vmatpush2.msra.mxu0 0.0
    %1158 = vmatprep.subr.mxu0 0.0
    %1159 = vmatpush2.msra.mxu0 0.0
    %1160 = vmatprep.subr.mxu0 0.0
    %1161 = vmatpush2.msra.mxu0 0.0
    %1162 = vmatprep.subr.mxu0 0.0
    %1163 = vmatpush2.msra.mxu0 0.0
    %1164 = vmatprep.subr.mxu0 0.0
    %1165 = vmatpush2.msra.mxu0 0.0
    %1166 = vmatprep.subr.mxu0 0.0
    %1167 = vmatpush2.msra.mxu0 0.0
    %1168 = vmatprep.subr.mxu0 0.0
    %1169 = vmatpush2.msra.mxu0 0.0
    %1170 = vmatprep.subr.mxu0 0.0
    %1171 = vmatpush2.msra.mxu0 0.0
    %1172 = vmatprep.subr.mxu0 0.0
    %1173 = vmatpush2.msra.mxu0 0.0
    %1174 = vmatprep.subr.mxu0 0.0
    %1175 = vmatpush2.msra.mxu0 0.0
    %1176 = vmatprep.subr.mxu0 0.0
    %1177 = vmatpush2.msra.mxu0 0.0
    %1178 = vmatprep.mubr.f32.mxu0 0.0
    %1179 = vmatmul.mubr.f32.gmra.mxu0 %v1112
    %v1180 = vpop.f32.mrf.mxu0
    %v1181 = vadd.f32 0.0, %v1180
    %v1182 = vpop.f32.mrf.mxu0
    %1183 = vdwg.mxu0
    %v1185 = vrot.slane %v1181, 2
    %v1187 = vadd.f32 %v303, %v1185
    %v1188 = vxor.u32 %v1187, 2147483648
    %v1189 = vmul.f32 %v1188, 1.442695
    %v1190 = vpow.pop %v1189
    %v1191 = vadd.f32 %v1190, 1.0
    %v1192 = vrcp.pop %v1191
    %v1193 = vmul.f32 1.0, %v1192
    %v1194 = vtanh.pop %v1187
    %v1196 = vrot.slane %v1093, 6
    %v1198 = vmul.f32 %v1193, %v1196
    %1200 = vrot.lane.b32.xlu0 %v1194, 32
    %v1201 = vpop.permute.xlu0 %1200
    %v1203 = vmul.f32 %v1193, %v1201
    %1205 = vrot.lane.b32.xlu0 %v1203, 32
    %v1206 = vpop.permute.xlu0 %1205
    %v1208 = vadd.f32 %v1198, %v1206
    %v1209 = vtanh.pop %v1208
    %1211 = vrot.lane.b32.xlu0 %v1209, 32
    %v1212 = vpop.permute.xlu0 %1211
    %v1214 = vmul.f32 %v1193, %v1212
    %1216 = vrot.lane.b32.xlu0 %v1214, 64
    %v1217 = vpop.permute.xlu0 %1216
    %1219 = vst.msk [vmem:[#allocation2 + $0x8] sm:$0xc0] %vm764, %v1217
    %1220 = vrot.lane.b32.xlu0 %v1214, 48
    %v1221 = vpop.permute.xlu0 %1220
    %1223 = vst.msk [vmem:[#allocation3 - $0x6] sm:$0xc0] %vm764, %v1221
    %v1224 = vld [vmem:[#allocation2] sm:$0xff]
    %v1225 = vld [vmem:[#allocation2 + $0x8] sm:$0xff]
    %v1226 = vld [vmem:[#allocation4] sm:$0xff]
    %v1227 = vld [vmem:[#allocation4 + $0x8] sm:$0xff]
    %v1228 = vld [vmem:[#allocation3] sm:$0xff]
    %v1229 = vld [vmem:[#allocation3 + $0x8] sm:$0xff]
    %v1230 = vld [vmem:[#allocation7] sm:$0xff]
    %v1231 = vld [vmem:[#allocation7 + $0x8] sm:$0xff]
    %vm1232 = vcmask 130048
    %v1234 = vsel %vm1232, %v1228, 0
    %v1237 = vsel %vm1232, %v1229, 0
    %1239 = vmatprep.subr.mxu0 0.0
    %1240 = vmatpush1.msra.mxu0 0.0
    %1241 = vmatprep.subr.mxu0 0.0
    %1242 = vmatpush1.msra.mxu0 0.0
    %1243 = vmatprep.subr.mxu0 0.0
    %1244 = vmatpush1.msra.mxu0 0.0
    %1245 = vmatprep.subr.mxu0 0.0
    %1246 = vmatpush1.msra.mxu0 0.0
    %1247 = vmatprep.subr.mxu0 0.0
    %1248 = vmatpush1.msra.mxu0 0.0
    %1249 = vmatprep.subr.mxu0 0.0
    %1250 = vmatpush1.msra.mxu0 0.0
    %1251 = vmatprep.subr.mxu0 0.0
    %1252 = vmatpush1.msra.mxu0 0.0
    %1253 = vmatprep.subr.mxu0 0.0
    %1254 = vmatpush1.msra.mxu0 0.0
    %1255 = vmatprep.subr.mxu0 0.0
    %1256 = vmatpush1.msra.mxu0 0.0
    %1257 = vmatprep.subr.mxu0 0.0
    %1258 = vmatpush1.msra.mxu0 0.0
    %1259 = vmatprep.subr.mxu0 0.0
    %1260 = vmatpush1.msra.mxu0 0.0
    %1261 = vmatprep.subr.mxu0 0.0
    %1262 = vmatpush1.msra.mxu0 0.0
    %1263 = vmatprep.subr.mxu0 0.0
    %1264 = vmatpush1.msra.mxu0 0.0
    %1265 = vmatprep.subr.mxu0 0.0
    %1266 = vmatpush1.msra.mxu0 0.0
    %1267 = vmatprep.subr.mxu0 0.0
    %1268 = vmatpush1.msra.mxu0 %v1231
    %1269 = vmatprep.subr.mxu0 0.0
    %1270 = vmatpush1.msra.mxu0 %v1230
    %1271 = vmatprep.subr.mxu0 0.0
    %1272 = vmatpush2.msra.mxu0 0.0
    %1273 = vmatprep.subr.mxu0 0.0
    %1274 = vmatpush2.msra.mxu0 0.0
    %1275 = vmatprep.subr.mxu0 0.0
    %1276 = vmatpush2.msra.mxu0 0.0
    %1277 = vmatprep.subr.mxu0 0.0
    %1278 = vmatpush2.msra.mxu0 0.0
    %1279 = vmatprep.subr.mxu0 0.0
    %1280 = vmatpush2.msra.mxu0 0.0
    %1281 = vmatprep.subr.mxu0 0.0
    %1282 = vmatpush2.msra.mxu0 0.0
    %1283 = vmatprep.subr.mxu0 0.0
    %1284 = vmatpush2.msra.mxu0 0.0
    %1285 = vmatprep.subr.mxu0 0.0
    %1286 = vmatpush2.msra.mxu0 0.0
    %1287 = vmatprep.subr.mxu0 0.0
    %1288 = vmatpush2.msra.mxu0 0.0
    %1289 = vmatprep.subr.mxu0 0.0
    %1290 = vmatpush2.msra.mxu0 0.0
    %1291 = vmatprep.subr.mxu0 0.0
    %1292 = vmatpush2.msra.mxu0 0.0
    %1293 = vmatprep.subr.mxu0 0.0
    %1294 = vmatpush2.msra.mxu0 0.0
    %1295 = vmatprep.subr.mxu0 0.0
    %1296 = vmatpush2.msra.mxu0 0.0
    %1297 = vmatprep.subr.mxu0 0.0
    %1298 = vmatpush2.msra.mxu0 0.0
    %1299 = vmatprep.subr.mxu0 0.0
    %1300 = vmatpush2.msra.mxu0 0.0
    %1301 = vmatprep.subr.mxu0 0.0
    %1302 = vmatpush2.msra.mxu0 0.0
    %1303 = vmatprep.mubr.f32.mxu0 0.0
    %1304 = vmatmul.mubr.f32.gmra.mxu0 %v1234
    %v1305 = vpop.f32.mrf.mxu0
    %v1306 = vadd.f32 0.0, %v1305
    %v1307 = vpop.f32.mrf.mxu0
    %1308 = vmatprep.mubr.f32.mxu0 0.0
    %1309 = vmatmul.mubr.f32.gmra.mxu0 %v1237
    %v1310 = vpop.f32.mrf.mxu0
    %v1311 = vadd.f32 0.0, %v1310
    %v1312 = vpop.f32.mrf.mxu0
    %1313 = vdwg.mxu0
    %v1315 = vsel %vm1232, %v1224, 0
    %v1318 = vsel %vm1232, %v1225, 0
    %1320 = vmatprep.subr.mxu0 0.0
    %1321 = vmatpush1.msra.mxu0 0.0
    %1322 = vmatprep.subr.mxu0 0.0
    %1323 = vmatpush1.msra.mxu0 0.0
    %1324 = vmatprep.subr.mxu0 0.0
    %1325 = vmatpush1.msra.mxu0 0.0
    %1326 = vmatprep.subr.mxu0 0.0
    %1327 = vmatpush1.msra.mxu0 0.0
    %1328 = vmatprep.subr.mxu0 0.0
    %1329 = vmatpush1.msra.mxu0 0.0
    %1330 = vmatprep.subr.mxu0 0.0
    %1331 = vmatpush1.msra.mxu0 0.0
    %1332 = vmatprep.subr.mxu0 0.0
    %1333 = vmatpush1.msra.mxu0 0.0
    %1334 = vmatprep.subr.mxu0 0.0
    %1335 = vmatpush1.msra.mxu0 0.0
    %1336 = vmatprep.subr.mxu0 0.0
    %1337 = vmatpush1.msra.mxu0 0.0
    %1338 = vmatprep.subr.mxu0 0.0
    %1339 = vmatpush1.msra.mxu0 0.0
    %1340 = vmatprep.subr.mxu0 0.0
    %1341 = vmatpush1.msra.mxu0 0.0
    %1342 = vmatprep.subr.mxu0 0.0
    %1343 = vmatpush1.msra.mxu0 0.0
    %1344 = vmatprep.subr.mxu0 0.0
    %1345 = vmatpush1.msra.mxu0 0.0
    %1346 = vmatprep.subr.mxu0 0.0
    %1347 = vmatpush1.msra.mxu0 0.0
    %1348 = vmatprep.subr.mxu0 0.0
    %1349 = vmatpush1.msra.mxu0 %v1227
    %1350 = vmatprep.subr.mxu0 0.0
    %1351 = vmatpush1.msra.mxu0 %v1226
    %1352 = vmatprep.subr.mxu0 0.0
    %1353 = vmatpush2.msra.mxu0 0.0
    %1354 = vmatprep.subr.mxu0 0.0
    %1355 = vmatpush2.msra.mxu0 0.0
    %1356 = vmatprep.subr.mxu0 0.0
    %1357 = vmatpush2.msra.mxu0 0.0
    %1358 = vmatprep.subr.mxu0 0.0
    %1359 = vmatpush2.msra.mxu0 0.0
    %1360 = vmatprep.subr.mxu0 0.0
    %1361 = vmatpush2.msra.mxu0 0.0
    %1362 = vmatprep.subr.mxu0 0.0
    %1363 = vmatpush2.msra.mxu0 0.0
    %1364 = vmatprep.subr.mxu0 0.0
    %1365 = vmatpush2.msra.mxu0 0.0
    %1366 = vmatprep.subr.mxu0 0.0
    %1367 = vmatpush2.msra.mxu0 0.0
    %1368 = vmatprep.subr.mxu0 0.0
    %1369 = vmatpush2.msra.mxu0 0.0
    %1370 = vmatprep.subr.mxu0 0.0
    %1371 = vmatpush2.msra.mxu0 0.0
    %1372 = vmatprep.subr.mxu0 0.0
    %1373 = vmatpush2.msra.mxu0 0.0
    %1374 = vmatprep.subr.mxu0 0.0
    %1375 = vmatpush2.msra.mxu0 0.0
    %1376 = vmatprep.subr.mxu0 0.0
    %1377 = vmatpush2.msra.mxu0 0.0
    %1378 = vmatprep.subr.mxu0 0.0
    %1379 = vmatpush2.msra.mxu0 0.0
    %1380 = vmatprep.subr.mxu0 0.0
    %1381 = vmatpush2.msra.mxu0 0.0
    %1382 = vmatprep.subr.mxu0 0.0
    %1383 = vmatpush2.msra.mxu0 0.0
    %1384 = vmatprep.mubr.f32.mxu0 0.0
    %1385 = vmatmul.mubr.f32.gmra.mxu0 %v1315
    %v1386 = vpop.f32.mrf.mxu0
    %v1387 = vadd.f32 %v1306, %v1386
    %v1388 = vpop.f32.mrf.mxu0
    %1389 = vmatprep.mubr.f32.mxu0 0.0
    %1390 = vmatmul.mubr.f32.gmra.mxu0 %v1318
    %v1391 = vpop.f32.mrf.mxu0
    %v1392 = vadd.f32 %v1311, %v1391
    %v1393 = vpop.f32.mrf.mxu0
    %1394 = vdwg.mxu0
    %v1395 = vld [vmem:[%s9] sm:$0x1]
    %v1397 = vlaneseq
    %v1398 = vshrl.u32 %v1397, 7
    %v1399 = vsub.s32 0, %v1398
    %v1400 = vrot.slane %v1395, %v1399
    %v1402 = vadd.f32 %v1387, %v1400
    %v1403 = vadd.f32 %v1392, %v1400
    %v1404 = vmax.f32 %v1402, 0.0
    %v1405 = vmax.f32 %v1403, 0.0
    %v1406 = vld [vmem:[%s10] sm:$0xff]
    %v1407 = vld [vmem:[%s10 + $0x8] sm:$0xff]
    %v1408 = vld [vmem:[%s10 + $0x10] sm:$0xff]
    %v1409 = vld [vmem:[%s10 + $0x18] sm:$0xff]
    %v1410 = vld [vmem:[#allocation9] sm:$0x1]
    %v1412 = vlaneseq
    %v1413 = vshrl.u32 %v1412, 7
    %v1414 = vsub.s32 0, %v1413
    %v1415 = vrot.slane %v1410, %v1414
    %v1418 = vsel %vm312, %v1404, 0
    %v1421 = vsel %vm312, %v1405, 0
    %1423 = vmatprep.subr.mxu0 0.0
    %1424 = vmatpush1.msra.mxu0 0.0
    %1425 = vmatprep.subr.mxu0 0.0
    %1426 = vmatpush1.msra.mxu0 0.0
    %1427 = vmatprep.subr.mxu0 0.0
    %1428 = vmatpush1.msra.mxu0 0.0
    %1429 = vmatprep.subr.mxu0 0.0
    %1430 = vmatpush1.msra.mxu0 0.0
    %1431 = vmatprep.subr.mxu0 0.0
    %1432 = vmatpush1.msra.mxu0 0.0
    %1433 = vmatprep.subr.mxu0 0.0
    %1434 = vmatpush1.msra.mxu0 0.0
    %1435 = vmatprep.subr.mxu0 0.0
    %1436 = vmatpush1.msra.mxu0 0.0
    %1437 = vmatprep.subr.mxu0 0.0
    %1438 = vmatpush1.msra.mxu0 0.0
    %1439 = vmatprep.subr.mxu0 0.0
    %1440 = vmatpush1.msra.mxu0 0.0
    %1441 = vmatprep.subr.mxu0 0.0
    %1442 = vmatpush1.msra.mxu0 0.0
    %1443 = vmatprep.subr.mxu0 0.0
    %1444 = vmatpush1.msra.mxu0 0.0
    %1445 = vmatprep.subr.mxu0 0.0
    %1446 = vmatpush1.msra.mxu0 0.0
    %1447 = vmatprep.subr.mxu0 0.0
    %1448 = vmatpush1.msra.mxu0 %v1409
    %1449 = vmatprep.subr.mxu0 0.0
    %1450 = vmatpush1.msra.mxu0 %v1408
    %1451 = vmatprep.subr.mxu0 0.0
    %1452 = vmatpush1.msra.mxu0 %v1407
    %1453 = vmatprep.subr.mxu0 0.0
    %1454 = vmatpush1.msra.mxu0 %v1406
    %1455 = vmatprep.subr.mxu0 0.0
    %1456 = vmatpush2.msra.mxu0 0.0
    %1457 = vmatprep.subr.mxu0 0.0
    %1458 = vmatpush2.msra.mxu0 0.0
    %1459 = vmatprep.subr.mxu0 0.0
    %1460 = vmatpush2.msra.mxu0 0.0
    %1461 = vmatprep.subr.mxu0 0.0
    %1462 = vmatpush2.msra.mxu0 0.0
    %1463 = vmatprep.subr.mxu0 0.0
    %1464 = vmatpush2.msra.mxu0 0.0
    %1465 = vmatprep.subr.mxu0 0.0
    %1466 = vmatpush2.msra.mxu0 0.0
    %1467 = vmatprep.subr.mxu0 0.0
    %1468 = vmatpush2.msra.mxu0 0.0
    %1469 = vmatprep.subr.mxu0 0.0
    %1470 = vmatpush2.msra.mxu0 0.0
    %1471 = vmatprep.subr.mxu0 0.0
    %1472 = vmatpush2.msra.mxu0 0.0
    %1473 = vmatprep.subr.mxu0 0.0
    %1474 = vmatpush2.msra.mxu0 0.0
    %1475 = vmatprep.subr.mxu0 0.0
    %1476 = vmatpush2.msra.mxu0 0.0
    %1477 = vmatprep.subr.mxu0 0.0
    %1478 = vmatpush2.msra.mxu0 0.0
    %1479 = vmatprep.subr.mxu0 0.0
    %1480 = vmatpush2.msra.mxu0 0.0
    %1481 = vmatprep.subr.mxu0 0.0
    %1482 = vmatpush2.msra.mxu0 0.0
    %1483 = vmatprep.subr.mxu0 0.0
    %1484 = vmatpush2.msra.mxu0 0.0
    %1485 = vmatprep.subr.mxu0 0.0
    %1486 = vmatpush2.msra.mxu0 0.0
    %1487 = vmatprep.mubr.f32.mxu0 0.0
    %1488 = vmatmul.mubr.f32.gmra.mxu0 %v1418
    %v1489 = vpop.f32.mrf.mxu0
    %v1490 = vadd.f32 %v1415, %v1489
    %v1491 = vpop.f32.mrf.mxu0
    %1492 = vmatprep.mubr.f32.mxu0 0.0
    %1493 = vmatmul.mubr.f32.gmra.mxu0 %v1421
    %v1494 = vpop.f32.mrf.mxu0
    %v1495 = vadd.f32 %v1415, %v1494
    %v1496 = vpop.f32.mrf.mxu0
    %1497 = vdwg.mxu0
    %1498 = vst [vmem:[#allocation12] sm:$0xff] %v1490
    %1499 = vst [vmem:[#allocation12 + $0x8] sm:$0xff] %v1495
    %v1500 = vld [vmem:[#allocation10] sm:$0x1f]
    %v1501 = vlaneseq
    %v1502 = vshrl.u32 %v1501, 7
    %vm1503 = vcmp.eq.s32.totalorder %v1502, %v101
    %v1504 = vsel %vm1503, 1, 0
    %v1505 = vcvt.s32.f32 %v1504
    %vm1506 = vcmp.eq.s32.totalorder %v101, 3
    %v1507 = vsel %vm1506, 0.0, -10000.0
    %v1508 = vadd.f32 %v1500, %v1507
    %vm1509 = vcmask 36864
    %v1510 = vsel %vm1509, %v1508, -inf
    %1511 = vmax.xlane.f32.xlu0 %v1510
    %v1512 = vpop.xlane.xlu0 %1511
    %v1513 = vmul.f32 %v1512, %v1505
    %vm1514 = vcmask 39936
    %v1516 = vsel %vm1514, 1.0, 0
    %vm1518 = vcmask 1044480
    %v1520 = vsel %vm1518, %v1513, 0
    %1522 = vmatprep.subr.mxu0 0.0
    %1523 = vmatpush1.msra.mxu0 0.0
    %1524 = vmatprep.subr.mxu0 0.0
    %1525 = vmatpush1.msra.mxu0 0.0
    %1526 = vmatprep.subr.mxu0 0.0
    %1527 = vmatpush1.msra.mxu0 0.0
    %1528 = vmatprep.subr.mxu0 0.0
    %1529 = vmatpush1.msra.mxu0 0.0
    %1530 = vmatprep.subr.mxu0 0.0
    %1531 = vmatpush1.msra.mxu0 0.0
    %1532 = vmatprep.subr.mxu0 0.0
    %1533 = vmatpush1.msra.mxu0 0.0
    %1534 = vmatprep.subr.mxu0 0.0
    %1535 = vmatpush1.msra.mxu0 0.0
    %1536 = vmatprep.subr.mxu0 0.0
    %1537 = vmatpush1.msra.mxu0 0.0
    %1538 = vmatprep.subr.mxu0 0.0
    %1539 = vmatpush1.msra.mxu0 0.0
    %1540 = vmatprep.subr.mxu0 0.0
    %1541 = vmatpush1.msra.mxu0 0.0
    %1542 = vmatprep.subr.mxu0 0.0
    %1543 = vmatpush1.msra.mxu0 0.0
    %1544 = vmatprep.subr.mxu0 0.0
    %1545 = vmatpush1.msra.mxu0 0.0
    %1546 = vmatprep.subr.mxu0 0.0
    %1547 = vmatpush1.msra.mxu0 0.0
    %1548 = vmatprep.subr.mxu0 0.0
    %1549 = vmatpush1.msra.mxu0 0.0
    %1550 = vmatprep.subr.mxu0 0.0
    %1551 = vmatpush1.msra.mxu0 0.0
    %1552 = vmatprep.subr.mxu0 0.0
    %1553 = vmatpush1.msra.mxu0 %v1520
    %1554 = vmatprep.subr.mxu0 0.0
    %1555 = vmatpush2.msra.mxu0 0.0
    %1556 = vmatprep.subr.mxu0 0.0
    %1557 = vmatpush2.msra.mxu0 0.0
    %1558 = vmatprep.subr.mxu0 0.0
    %1559 = vmatpush2.msra.mxu0 0.0
    %1560 = vmatprep.subr.mxu0 0.0
    %1561 = vmatpush2.msra.mxu0 0.0
    %1562 = vmatprep.subr.mxu0 0.0
    %1563 = vmatpush2.msra.mxu0 0.0
    %1564 = vmatprep.subr.mxu0 0.0
    %1565 = vmatpush2.msra.mxu0 0.0
    %1566 = vmatprep.subr.mxu0 0.0
    %1567 = vmatpush2.msra.mxu0 0.0
    %1568 = vmatprep.subr.mxu0 0.0
    %1569 = vmatpush2.msra.mxu0 0.0
    %1570 = vmatprep.subr.mxu0 0.0
    %1571 = vmatpush2.msra.mxu0 0.0
    %1572 = vmatprep.subr.mxu0 0.0
    %1573 = vmatpush2.msra.mxu0 0.0
    %1574 = vmatprep.subr.mxu0 0.0
    %1575 = vmatpush2.msra.mxu0 0.0
    %1576 = vmatprep.subr.mxu0 0.0
    %1577 = vmatpush2.msra.mxu0 0.0
    %1578 = vmatprep.subr.mxu0 0.0
    %1579 = vmatpush2.msra.mxu0 0.0
    %1580 = vmatprep.subr.mxu0 0.0
    %1581 = vmatpush2.msra.mxu0 0.0
    %1582 = vmatprep.subr.mxu0 0.0
    %1583 = vmatpush2.msra.mxu0 0.0
    %1584 = vmatprep.subr.mxu0 0.0
    %1585 = vmatpush2.msra.mxu0 0.0
    %1586 = vmatprep.mubr.f32.mxu0 0.0
    %1587 = vmatmul.mubr.f32.gmra.mxu0 %v1516
    %v1588 = vpop.f32.mrf.mxu0
    %v1589 = vadd.f32 %v1490, %v1588
    %v1590 = vpop.f32.mrf.mxu0
    %1591 = vdwg.mxu0
    %v1592 = vlaneseq
    %v1593 = vshrl.u32 %v1592, 7
    %v1594 = vsub.s32 0, %v1593
    %v1595 = vrot.slane %v1589, %v1594
    %v1596 = vadd.f32 %v1500, %v1595
    %v1597 = vsel %vm1509, %v1596, -inf
    %1598 = vmax.xlane.f32.xlu0 %v1597
    %v1599 = vpop.xlane.xlu0 %1598
    %vm1600 = vcmp.eq.f32.partialorder %v1596, %v1599
    %v1601 = vcvt.s32.f32 %v101
    %v1602 = vsel %vm1600, %v1601, 5.0
    %v1603 = vsel %vm1509, %v1602, inf
    %1604 = vmin.xlane.f32.xlu0 %v1603
    %v1605 = vpop.xlane.xlu0 %1604
    %v1606 = vmul.f32 %v1605, %v1505
    %v1608 = vsel %vm1518, %v1606, 0
    %1610 = vmatprep.subr.mxu0 0.0
    %1611 = vmatpush1.msra.mxu0 0.0
    %1612 = vmatprep.subr.mxu0 0.0
    %1613 = vmatpush1.msra.mxu0 0.0
    %1614 = vmatprep.subr.mxu0 0.0
    %1615 = vmatpush1.msra.mxu0 0.0
    %1616 = vmatprep.subr.mxu0 0.0
    %1617 = vmatpush1.msra.mxu0 0.0
    %1618 = vmatprep.subr.mxu0 0.0
    %1619 = vmatpush1.msra.mxu0 0.0
    %1620 = vmatprep.subr.mxu0 0.0
    %1621 = vmatpush1.msra.mxu0 0.0
    %1622 = vmatprep.subr.mxu0 0.0
    %1623 = vmatpush1.msra.mxu0 0.0
    %1624 = vmatprep.subr.mxu0 0.0
    %1625 = vmatpush1.msra.mxu0 0.0
    %1626 = vmatprep.subr.mxu0 0.0
    %1627 = vmatpush1.msra.mxu0 0.0
    %1628 = vmatprep.subr.mxu0 0.0
    %1629 = vmatpush1.msra.mxu0 0.0
    %1630 = vmatprep.subr.mxu0 0.0
    %1631 = vmatpush1.msra.mxu0 0.0
    %1632 = vmatprep.subr.mxu0 0.0
    %1633 = vmatpush1.msra.mxu0 0.0
    %1634 = vmatprep.subr.mxu0 0.0
    %1635 = vmatpush1.msra.mxu0 0.0
    %1636 = vmatprep.subr.mxu0 0.0
    %1637 = vmatpush1.msra.mxu0 0.0
    %1638 = vmatprep.subr.mxu0 0.0
    %1639 = vmatpush1.msra.mxu0 0.0
    %1640 = vmatprep.subr.mxu0 0.0
    %1641 = vmatpush1.msra.mxu0 %v1608
    %1642 = vmatprep.subr.mxu0 0.0
    %1643 = vmatpush2.msra.mxu0 0.0
    %1644 = vmatprep.subr.mxu0 0.0
    %1645 = vmatpush2.msra.mxu0 0.0
    %1646 = vmatprep.subr.mxu0 0.0
    %1647 = vmatpush2.msra.mxu0 0.0
    %1648 = vmatprep.subr.mxu0 0.0
    %1649 = vmatpush2.msra.mxu0 0.0
    %1650 = vmatprep.subr.mxu0 0.0
    %1651 = vmatpush2.msra.mxu0 0.0
    %1652 = vmatprep.subr.mxu0 0.0
    %1653 = vmatpush2.msra.mxu0 0.0
    %1654 = vmatprep.subr.mxu0 0.0
    %1655 = vmatpush2.msra.mxu0 0.0
    %1656 = vmatprep.subr.mxu0 0.0
    %1657 = vmatpush2.msra.mxu0 0.0
    %1658 = vmatprep.subr.mxu0 0.0
    %1659 = vmatpush2.msra.mxu0 0.0
    %1660 = vmatprep.subr.mxu0 0.0
    %1661 = vmatpush2.msra.mxu0 0.0
    %1662 = vmatprep.subr.mxu0 0.0
    %1663 = vmatpush2.msra.mxu0 0.0
    %1664 = vmatprep.subr.mxu0 0.0
    %1665 = vmatpush2.msra.mxu0 0.0
    %1666 = vmatprep.subr.mxu0 0.0
    %1667 = vmatpush2.msra.mxu0 0.0
    %1668 = vmatprep.subr.mxu0 0.0
    %1669 = vmatpush2.msra.mxu0 0.0
    %1670 = vmatprep.subr.mxu0 0.0
    %1671 = vmatpush2.msra.mxu0 0.0
    %1672 = vmatprep.subr.mxu0 0.0
    %1673 = vmatpush2.msra.mxu0 0.0
    %1674 = vmatprep.mubr.f32.mxu0 0.0
    %1675 = vmatmul.mubr.f32.gmra.mxu0 %v1516
    %v1676 = vpop.f32.mrf.mxu0
    %v1677 = vadd.f32 0.0, %v1676
    %v1678 = vpop.f32.mrf.mxu0
    %1679 = vdwg.mxu0
    %v1680 = vmul.f32 %v1599, %v1505
    %v1682 = vrot.slane %v1490, 2
    %v1685 = vsel %vm1518, %v1680, 0
    %1687 = vmatprep.subr.mxu0 0.0
    %1688 = vmatpush1.msra.mxu0 0.0
    %1689 = vmatprep.subr.mxu0 0.0
    %1690 = vmatpush1.msra.mxu0 0.0
    %1691 = vmatprep.subr.mxu0 0.0
    %1692 = vmatpush1.msra.mxu0 0.0
    %1693 = vmatprep.subr.mxu0 0.0
    %1694 = vmatpush1.msra.mxu0 0.0
    %1695 = vmatprep.subr.mxu0 0.0
    %1696 = vmatpush1.msra.mxu0 0.0
    %1697 = vmatprep.subr.mxu0 0.0
    %1698 = vmatpush1.msra.mxu0 0.0
    %1699 = vmatprep.subr.mxu0 0.0
    %1700 = vmatpush1.msra.mxu0 0.0
    %1701 = vmatprep.subr.mxu0 0.0
    %1702 = vmatpush1.msra.mxu0 0.0
    %1703 = vmatprep.subr.mxu0 0.0
    %1704 = vmatpush1.msra.mxu0 0.0
    %1705 = vmatprep.subr.mxu0 0.0
    %1706 = vmatpush1.msra.mxu0 0.0
    %1707 = vmatprep.subr.mxu0 0.0
    %1708 = vmatpush1.msra.mxu0 0.0
    %1709 = vmatprep.subr.mxu0 0.0
    %1710 = vmatpush1.msra.mxu0 0.0
    %1711 = vmatprep.subr.mxu0 0.0
    %1712 = vmatpush1.msra.mxu0 0.0
    %1713 = vmatprep.subr.mxu0 0.0
    %1714 = vmatpush1.msra.mxu0 0.0
    %1715 = vmatprep.subr.mxu0 0.0
    %1716 = vmatpush1.msra.mxu0 0.0
    %1717 = vmatprep.subr.mxu0 0.0
    %1718 = vmatpush1.msra.mxu0 %v1685
    %1719 = vmatprep.subr.mxu0 0.0
    %1720 = vmatpush2.msra.mxu0 0.0
    %1721 = vmatprep.subr.mxu0 0.0
    %1722 = vmatpush2.msra.mxu0 0.0
    %1723 = vmatprep.subr.mxu0 0.0
    %1724 = vmatpush2.msra.mxu0 0.0
    %1725 = vmatprep.subr.mxu0 0.0
    %1726 = vmatpush2.msra.mxu0 0.0
    %1727 = vmatprep.subr.mxu0 0.0
    %1728 = vmatpush2.msra.mxu0 0.0
    %1729 = vmatprep.subr.mxu0 0.0
    %1730 = vmatpush2.msra.mxu0 0.0
    %1731 = vmatprep.subr.mxu0 0.0
    %1732 = vmatpush2.msra.mxu0 0.0
    %1733 = vmatprep.subr.mxu0 0.0
    %1734 = vmatpush2.msra.mxu0 0.0
    %1735 = vmatprep.subr.mxu0 0.0
    %1736 = vmatpush2.msra.mxu0 0.0
    %1737 = vmatprep.subr.mxu0 0.0
    %1738 = vmatpush2.msra.mxu0 0.0
    %1739 = vmatprep.subr.mxu0 0.0
    %1740 = vmatpush2.msra.mxu0 0.0
    %1741 = vmatprep.subr.mxu0 0.0
    %1742 = vmatpush2.msra.mxu0 0.0
    %1743 = vmatprep.subr.mxu0 0.0
    %1744 = vmatpush2.msra.mxu0 0.0
    %1745 = vmatprep.subr.mxu0 0.0
    %1746 = vmatpush2.msra.mxu0 0.0
    %1747 = vmatprep.subr.mxu0 0.0
    %1748 = vmatpush2.msra.mxu0 0.0
    %1749 = vmatprep.subr.mxu0 0.0
    %1750 = vmatpush2.msra.mxu0 0.0
    %1751 = vmatprep.mubr.f32.mxu0 0.0
    %1752 = vmatmul.mubr.f32.gmra.mxu0 %v1516
    %v1753 = vpop.f32.mrf.mxu0
    %v1754 = vadd.f32 %v1682, %v1753
    %v1755 = vpop.f32.mrf.mxu0
    %1756 = vdwg.mxu0
    %v1757 = vlaneseq
    %v1758 = vshrl.u32 %v1757, 7
    %v1759 = vsub.s32 0, %v1758
    %v1760 = vrot.slane %v1754, %v1759
    %v1761 = vadd.f32 %v1500, %v1760
    %v1762 = vsel %vm1509, %v1761, -inf
    %1763 = vmax.xlane.f32.xlu0 %v1762
    %v1764 = vpop.xlane.xlu0 %1763
    %vm1765 = vcmp.eq.f32.partialorder %v1761, %v1764
    %v1766 = vsel %vm1765, %v1601, 5.0
    %v1767 = vsel %vm1509, %v1766, inf
    %1768 = vmin.xlane.f32.xlu0 %v1767
    %v1769 = vpop.xlane.xlu0 %1768
    %v1770 = vmul.f32 %v1769, %v1505
    %v1772 = vsel %vm1518, %v1770, 0
    %1774 = vmatprep.subr.mxu0 0.0
    %1775 = vmatpush1.msra.mxu0 0.0
    %1776 = vmatprep.subr.mxu0 0.0
    %1777 = vmatpush1.msra.mxu0 0.0
    %1778 = vmatprep.subr.mxu0 0.0
    %1779 = vmatpush1.msra.mxu0 0.0
    %1780 = vmatprep.subr.mxu0 0.0
    %1781 = vmatpush1.msra.mxu0 0.0
    %1782 = vmatprep.subr.mxu0 0.0
    %1783 = vmatpush1.msra.mxu0 0.0
    %1784 = vmatprep.subr.mxu0 0.0
    %1785 = vmatpush1.msra.mxu0 0.0
    %1786 = vmatprep.subr.mxu0 0.0
    %1787 = vmatpush1.msra.mxu0 0.0
    %1788 = vmatprep.subr.mxu0 0.0
    %1789 = vmatpush1.msra.mxu0 0.0
    %1790 = vmatprep.subr.mxu0 0.0
    %1791 = vmatpush1.msra.mxu0 0.0
    %1792 = vmatprep.subr.mxu0 0.0
    %1793 = vmatpush1.msra.mxu0 0.0
    %1794 = vmatprep.subr.mxu0 0.0
    %1795 = vmatpush1.msra.mxu0 0.0
    %1796 = vmatprep.subr.mxu0 0.0
    %1797 = vmatpush1.msra.mxu0 0.0
    %1798 = vmatprep.subr.mxu0 0.0
    %1799 = vmatpush1.msra.mxu0 0.0
    %1800 = vmatprep.subr.mxu0 0.0
    %1801 = vmatpush1.msra.mxu0 0.0
    %1802 = vmatprep.subr.mxu0 0.0
    %1803 = vmatpush1.msra.mxu0 0.0
    %1804 = vmatprep.subr.mxu0 0.0
    %1805 = vmatpush1.msra.mxu0 %v1772
    %1806 = vmatprep.subr.mxu0 0.0
    %1807 = vmatpush2.msra.mxu0 0.0
    %1808 = vmatprep.subr.mxu0 0.0
    %1809 = vmatpush2.msra.mxu0 0.0
    %1810 = vmatprep.subr.mxu0 0.0
    %1811 = vmatpush2.msra.mxu0 0.0
    %1812 = vmatprep.subr.mxu0 0.0
    %1813 = vmatpush2.msra.mxu0 0.0
    %1814 = vmatprep.subr.mxu0 0.0
    %1815 = vmatpush2.msra.mxu0 0.0
    %1816 = vmatprep.subr.mxu0 0.0
    %1817 = vmatpush2.msra.mxu0 0.0
    %1818 = vmatprep.subr.mxu0 0.0
    %1819 = vmatpush2.msra.mxu0 0.0
    %1820 = vmatprep.subr.mxu0 0.0
    %1821 = vmatpush2.msra.mxu0 0.0
    %1822 = vmatprep.subr.mxu0 0.0
    %1823 = vmatpush2.msra.mxu0 0.0
    %1824 = vmatprep.subr.mxu0 0.0
    %1825 = vmatpush2.msra.mxu0 0.0
    %1826 = vmatprep.subr.mxu0 0.0
    %1827 = vmatpush2.msra.mxu0 0.0
    %1828 = vmatprep.subr.mxu0 0.0
    %1829 = vmatpush2.msra.mxu0 0.0
    %1830 = vmatprep.subr.mxu0 0.0
    %1831 = vmatpush2.msra.mxu0 0.0
    %1832 = vmatprep.subr.mxu0 0.0
    %1833 = vmatpush2.msra.mxu0 0.0
    %1834 = vmatprep.subr.mxu0 0.0
    %1835 = vmatpush2.msra.mxu0 0.0
    %1836 = vmatprep.subr.mxu0 0.0
    %1837 = vmatpush2.msra.mxu0 0.0
    %1838 = vmatprep.mubr.f32.mxu0 0.0
    %1839 = vmatmul.mubr.f32.gmra.mxu0 %v1516
    %v1840 = vpop.f32.mrf.mxu0
    %v1841 = vadd.f32 0.0, %v1840
    %v1842 = vpop.f32.mrf.mxu0
    %1843 = vdwg.mxu0
    %v1844 = vmul.f32 %v1764, %v1505
    %v1845 = vrot.slane %v1490, 4
    %v1848 = vsel %vm1518, %v1844, 0
    %1850 = vmatprep.subr.mxu0 0.0
    %1851 = vmatpush1.msra.mxu0 0.0
    %1852 = vmatprep.subr.mxu0 0.0
    %1853 = vmatpush1.msra.mxu0 0.0
    %1854 = vmatprep.subr.mxu0 0.0
    %1855 = vmatpush1.msra.mxu0 0.0
    %1856 = vmatprep.subr.mxu0 0.0
    %1857 = vmatpush1.msra.mxu0 0.0
    %1858 = vmatprep.subr.mxu0 0.0
    %1859 = vmatpush1.msra.mxu0 0.0
    %1860 = vmatprep.subr.mxu0 0.0
    %1861 = vmatpush1.msra.mxu0 0.0
    %1862 = vmatprep.subr.mxu0 0.0
    %1863 = vmatpush1.msra.mxu0 0.0
    %1864 = vmatprep.subr.mxu0 0.0
    %1865 = vmatpush1.msra.mxu0 0.0
    %1866 = vmatprep.subr.mxu0 0.0
    %1867 = vmatpush1.msra.mxu0 0.0
    %1868 = vmatprep.subr.mxu0 0.0
    %1869 = vmatpush1.msra.mxu0 0.0
    %1870 = vmatprep.subr.mxu0 0.0
    %1871 = vmatpush1.msra.mxu0 0.0
    %1872 = vmatprep.subr.mxu0 0.0
    %1873 = vmatpush1.msra.mxu0 0.0
    %1874 = vmatprep.subr.mxu0 0.0
    %1875 = vmatpush1.msra.mxu0 0.0
    %1876 = vmatprep.subr.mxu0 0.0
    %1877 = vmatpush1.msra.mxu0 0.0
    %1878 = vmatprep.subr.mxu0 0.0
    %1879 = vmatpush1.msra.mxu0 0.0
    %1880 = vmatprep.subr.mxu0 0.0
    %1881 = vmatpush1.msra.mxu0 %v1848
    %1882 = vmatprep.subr.mxu0 0.0
    %1883 = vmatpush2.msra.mxu0 0.0
    %1884 = vmatprep.subr.mxu0 0.0
    %1885 = vmatpush2.msra.mxu0 0.0
    %1886 = vmatprep.subr.mxu0 0.0
    %1887 = vmatpush2.msra.mxu0 0.0
    %1888 = vmatprep.subr.mxu0 0.0
    %1889 = vmatpush2.msra.mxu0 0.0
    %1890 = vmatprep.subr.mxu0 0.0
    %1891 = vmatpush2.msra.mxu0 0.0
    %1892 = vmatprep.subr.mxu0 0.0
    %1893 = vmatpush2.msra.mxu0 0.0
    %1894 = vmatprep.subr.mxu0 0.0
    %1895 = vmatpush2.msra.mxu0 0.0
    %1896 = vmatprep.subr.mxu0 0.0
    %1897 = vmatpush2.msra.mxu0 0.0
    %1898 = vmatprep.subr.mxu0 0.0
    %1899 = vmatpush2.msra.mxu0 0.0
    %1900 = vmatprep.subr.mxu0 0.0
    %1901 = vmatpush2.msra.mxu0 0.0
    %1902 = vmatprep.subr.mxu0 0.0
    %1903 = vmatpush2.msra.mxu0 0.0
    %1904 = vmatprep.subr.mxu0 0.0
    %1905 = vmatpush2.msra.mxu0 0.0
    %1906 = vmatprep.subr.mxu0 0.0
    %1907 = vmatpush2.msra.mxu0 0.0
    %1908 = vmatprep.subr.mxu0 0.0
    %1909 = vmatpush2.msra.mxu0 0.0
    %1910 = vmatprep.subr.mxu0 0.0
    %1911 = vmatpush2.msra.mxu0 0.0
    %1912 = vmatprep.subr.mxu0 0.0
    %1913 = vmatpush2.msra.mxu0 0.0
    %1914 = vmatprep.mubr.f32.mxu0 0.0
    %1915 = vmatmul.mubr.f32.gmra.mxu0 %v1516
    %v1916 = vpop.f32.mrf.mxu0
    %v1917 = vadd.f32 %v1845, %v1916
    %v1918 = vpop.f32.mrf.mxu0
    %1919 = vdwg.mxu0
    %v1920 = vlaneseq
    %v1921 = vshrl.u32 %v1920, 7
    %v1922 = vsub.s32 0, %v1921
    %v1923 = vrot.slane %v1917, %v1922
    %v1924 = vadd.f32 %v1500, %v1923
    %v1925 = vsel %vm1509, %v1924, -inf
    %1926 = vmax.xlane.f32.xlu0 %v1925
    %v1927 = vpop.xlane.xlu0 %1926
    %vm1928 = vcmp.eq.f32.partialorder %v1924, %v1927
    %v1929 = vsel %vm1928, %v1601, 5.0
    %v1930 = vsel %vm1509, %v1929, inf
    %1931 = vmin.xlane.f32.xlu0 %v1930
    %v1932 = vpop.xlane.xlu0 %1931
    %v1933 = vmul.f32 %v1932, %v1505
    %v1935 = vsel %vm1518, %v1933, 0
    %1937 = vmatprep.subr.mxu0 0.0
    %1938 = vmatpush1.msra.mxu0 0.0
    %1939 = vmatprep.subr.mxu0 0.0
    %1940 = vmatpush1.msra.mxu0 0.0
    %1941 = vmatprep.subr.mxu0 0.0
    %1942 = vmatpush1.msra.mxu0 0.0
    %1943 = vmatprep.subr.mxu0 0.0
    %1944 = vmatpush1.msra.mxu0 0.0
    %1945 = vmatprep.subr.mxu0 0.0
    %1946 = vmatpush1.msra.mxu0 0.0
    %1947 = vmatprep.subr.mxu0 0.0
    %1948 = vmatpush1.msra.mxu0 0.0
    %1949 = vmatprep.subr.mxu0 0.0
    %1950 = vmatpush1.msra.mxu0 0.0
    %1951 = vmatprep.subr.mxu0 0.0
    %1952 = vmatpush1.msra.mxu0 0.0
    %1953 = vmatprep.subr.mxu0 0.0
    %1954 = vmatpush1.msra.mxu0 0.0
    %1955 = vmatprep.subr.mxu0 0.0
    %1956 = vmatpush1.msra.mxu0 0.0
    %1957 = vmatprep.subr.mxu0 0.0
    %1958 = vmatpush1.msra.mxu0 0.0
    %1959 = vmatprep.subr.mxu0 0.0
    %1960 = vmatpush1.msra.mxu0 0.0
    %1961 = vmatprep.subr.mxu0 0.0
    %1962 = vmatpush1.msra.mxu0 0.0
    %1963 = vmatprep.subr.mxu0 0.0
    %1964 = vmatpush1.msra.mxu0 0.0
    %1965 = vmatprep.subr.mxu0 0.0
    %1966 = vmatpush1.msra.mxu0 0.0
    %1967 = vmatprep.subr.mxu0 0.0
    %1968 = vmatpush1.msra.mxu0 %v1935
    %1969 = vmatprep.subr.mxu0 0.0
    %1970 = vmatpush2.msra.mxu0 0.0
    %1971 = vmatprep.subr.mxu0 0.0
    %1972 = vmatpush2.msra.mxu0 0.0
    %1973 = vmatprep.subr.mxu0 0.0
    %1974 = vmatpush2.msra.mxu0 0.0
    %1975 = vmatprep.subr.mxu0 0.0
    %1976 = vmatpush2.msra.mxu0 0.0
    %1977 = vmatprep.subr.mxu0 0.0
    %1978 = vmatpush2.msra.mxu0 0.0
    %1979 = vmatprep.subr.mxu0 0.0
    %1980 = vmatpush2.msra.mxu0 0.0
    %1981 = vmatprep.subr.mxu0 0.0
    %1982 = vmatpush2.msra.mxu0 0.0
    %1983 = vmatprep.subr.mxu0 0.0
    %1984 = vmatpush2.msra.mxu0 0.0
    %1985 = vmatprep.subr.mxu0 0.0
    %1986 = vmatpush2.msra.mxu0 0.0
    %1987 = vmatprep.subr.mxu0 0.0
    %1988 = vmatpush2.msra.mxu0 0.0
    %1989 = vmatprep.subr.mxu0 0.0
    %1990 = vmatpush2.msra.mxu0 0.0
    %1991 = vmatprep.subr.mxu0 0.0
    %1992 = vmatpush2.msra.mxu0 0.0
    %1993 = vmatprep.subr.mxu0 0.0
    %1994 = vmatpush2.msra.mxu0 0.0
    %1995 = vmatprep.subr.mxu0 0.0
    %1996 = vmatpush2.msra.mxu0 0.0
    %1997 = vmatprep.subr.mxu0 0.0
    %1998 = vmatpush2.msra.mxu0 0.0
    %1999 = vmatprep.subr.mxu0 0.0
    %2000 = vmatpush2.msra.mxu0 0.0
    %2001 = vmatprep.mubr.f32.mxu0 0.0
    %2002 = vmatmul.mubr.f32.gmra.mxu0 %v1516
    %v2003 = vpop.f32.mrf.mxu0
    %v2004 = vadd.f32 0.0, %v2003
    %v2005 = vpop.f32.mrf.mxu0
    %2006 = vdwg.mxu0
    %v2007 = vmul.f32 %v1927, %v1505
    %v2008 = vrot.slane %v1490, 6
    %v2011 = vsel %vm1518, %v2007, 0
    %2013 = vmatprep.subr.mxu0 0.0
    %2014 = vmatpush1.msra.mxu0 0.0
    %2015 = vmatprep.subr.mxu0 0.0
    %2016 = vmatpush1.msra.mxu0 0.0
    %2017 = vmatprep.subr.mxu0 0.0
    %2018 = vmatpush1.msra.mxu0 0.0
    %2019 = vmatprep.subr.mxu0 0.0
    %2020 = vmatpush1.msra.mxu0 0.0
    %2021 = vmatprep.subr.mxu0 0.0
    %2022 = vmatpush1.msra.mxu0 0.0
    %2023 = vmatprep.subr.mxu0 0.0
    %2024 = vmatpush1.msra.mxu0 0.0
    %2025 = vmatprep.subr.mxu0 0.0
    %2026 = vmatpush1.msra.mxu0 0.0
    %2027 = vmatprep.subr.mxu0 0.0
    %2028 = vmatpush1.msra.mxu0 0.0
    %2029 = vmatprep.subr.mxu0 0.0
    %2030 = vmatpush1.msra.mxu0 0.0
    %2031 = vmatprep.subr.mxu0 0.0
    %2032 = vmatpush1.msra.mxu0 0.0
    %2033 = vmatprep.subr.mxu0 0.0
    %2034 = vmatpush1.msra.mxu0 0.0
    %2035 = vmatprep.subr.mxu0 0.0
    %2036 = vmatpush1.msra.mxu0 0.0
    %2037 = vmatprep.subr.mxu0 0.0
    %2038 = vmatpush1.msra.mxu0 0.0
    %2039 = vmatprep.subr.mxu0 0.0
    %2040 = vmatpush1.msra.mxu0 0.0
    %2041 = vmatprep.subr.mxu0 0.0
    %2042 = vmatpush1.msra.mxu0 0.0
    %2043 = vmatprep.subr.mxu0 0.0
    %2044 = vmatpush1.msra.mxu0 %v2011
    %2045 = vmatprep.subr.mxu0 0.0
    %2046 = vmatpush2.msra.mxu0 0.0
    %2047 = vmatprep.subr.mxu0 0.0
    %2048 = vmatpush2.msra.mxu0 0.0
    %2049 = vmatprep.subr.mxu0 0.0
    %2050 = vmatpush2.msra.mxu0 0.0
    %2051 = vmatprep.subr.mxu0 0.0
    %2052 = vmatpush2.msra.mxu0 0.0
    %2053 = vmatprep.subr.mxu0 0.0
    %2054 = vmatpush2.msra.mxu0 0.0
    %2055 = vmatprep.subr.mxu0 0.0
    %2056 = vmatpush2.msra.mxu0 0.0
    %2057 = vmatprep.subr.mxu0 0.0
    %2058 = vmatpush2.msra.mxu0 0.0
    %2059 = vmatprep.subr.mxu0 0.0
    %2060 = vmatpush2.msra.mxu0 0.0
    %2061 = vmatprep.subr.mxu0 0.0
    %2062 = vmatpush2.msra.mxu0 0.0
    %2063 = vmatprep.subr.mxu0 0.0
    %2064 = vmatpush2.msra.mxu0 0.0
    %2065 = vmatprep.subr.mxu0 0.0
    %2066 = vmatpush2.msra.mxu0 0.0
    %2067 = vmatprep.subr.mxu0 0.0
    %2068 = vmatpush2.msra.mxu0 0.0
    %2069 = vmatprep.subr.mxu0 0.0
    %2070 = vmatpush2.msra.mxu0 0.0
    %2071 = vmatprep.subr.mxu0 0.0
    %2072 = vmatpush2.msra.mxu0 0.0
    %2073 = vmatprep.subr.mxu0 0.0
    %2074 = vmatpush2.msra.mxu0 0.0
    %2075 = vmatprep.subr.mxu0 0.0
    %2076 = vmatpush2.msra.mxu0 0.0
    %2077 = vmatprep.mubr.f32.mxu0 0.0
    %2078 = vmatmul.mubr.f32.gmra.mxu0 %v1516
    %v2079 = vpop.f32.mrf.mxu0
    %v2080 = vadd.f32 %v2008, %v2079
    %v2081 = vpop.f32.mrf.mxu0
    %2082 = vdwg.mxu0
    %v2083 = vlaneseq
    %v2084 = vshrl.u32 %v2083, 7
    %v2085 = vsub.s32 0, %v2084
    %v2086 = vrot.slane %v2080, %v2085
    %v2087 = vadd.f32 %v1500, %v2086
    %v2088 = vsel %vm1509, %v2087, -inf
    %2089 = vmax.xlane.f32.xlu0 %v2088
    %v2090 = vpop.xlane.xlu0 %2089
    %vm2091 = vcmp.eq.f32.partialorder %v2087, %v2090
    %v2092 = vsel %vm2091, %v1601, 5.0
    %v2093 = vsel %vm1509, %v2092, inf
    %2094 = vmin.xlane.f32.xlu0 %v2093
    %v2095 = vpop.xlane.xlu0 %2094
    %v2096 = vmul.f32 %v2095, %v1505
    %v2098 = vsel %vm1518, %v2096, 0
    %2100 = vmatprep.subr.mxu0 0.0
    %2101 = vmatpush1.msra.mxu0 0.0
    %2102 = vmatprep.subr.mxu0 0.0
    %2103 = vmatpush1.msra.mxu0 0.0
    %2104 = vmatprep.subr.mxu0 0.0
    %2105 = vmatpush1.msra.mxu0 0.0
    %2106 = vmatprep.subr.mxu0 0.0
    %2107 = vmatpush1.msra.mxu0 0.0
    %2108 = vmatprep.subr.mxu0 0.0
    %2109 = vmatpush1.msra.mxu0 0.0
    %2110 = vmatprep.subr.mxu0 0.0
    %2111 = vmatpush1.msra.mxu0 0.0
    %2112 = vmatprep.subr.mxu0 0.0
    %2113 = vmatpush1.msra.mxu0 0.0
    %2114 = vmatprep.subr.mxu0 0.0
    %2115 = vmatpush1.msra.mxu0 0.0
    %2116 = vmatprep.subr.mxu0 0.0
    %2117 = vmatpush1.msra.mxu0 0.0
    %2118 = vmatprep.subr.mxu0 0.0
    %2119 = vmatpush1.msra.mxu0 0.0
    %2120 = vmatprep.subr.mxu0 0.0
    %2121 = vmatpush1.msra.mxu0 0.0
    %2122 = vmatprep.subr.mxu0 0.0
    %2123 = vmatpush1.msra.mxu0 0.0
    %2124 = vmatprep.subr.mxu0 0.0
    %2125 = vmatpush1.msra.mxu0 0.0
    %2126 = vmatprep.subr.mxu0 0.0
    %2127 = vmatpush1.msra.mxu0 0.0
    %2128 = vmatprep.subr.mxu0 0.0
    %2129 = vmatpush1.msra.mxu0 0.0
    %2130 = vmatprep.subr.mxu0 0.0
    %2131 = vmatpush1.msra.mxu0 %v2098
    %2132 = vmatprep.subr.mxu0 0.0
    %2133 = vmatpush2.msra.mxu0 0.0
    %2134 = vmatprep.subr.mxu0 0.0
    %2135 = vmatpush2.msra.mxu0 0.0
    %2136 = vmatprep.subr.mxu0 0.0
    %2137 = vmatpush2.msra.mxu0 0.0
    %2138 = vmatprep.subr.mxu0 0.0
    %2139 = vmatpush2.msra.mxu0 0.0
    %2140 = vmatprep.subr.mxu0 0.0
    %2141 = vmatpush2.msra.mxu0 0.0
    %2142 = vmatprep.subr.mxu0 0.0
    %2143 = vmatpush2.msra.mxu0 0.0
    %2144 = vmatprep.subr.mxu0 0.0
    %2145 = vmatpush2.msra.mxu0 0.0
    %2146 = vmatprep.subr.mxu0 0.0
    %2147 = vmatpush2.msra.mxu0 0.0
    %2148 = vmatprep.subr.mxu0 0.0
    %2149 = vmatpush2.msra.mxu0 0.0
    %2150 = vmatprep.subr.mxu0 0.0
    %2151 = vmatpush2.msra.mxu0 0.0
    %2152 = vmatprep.subr.mxu0 0.0
    %2153 = vmatpush2.msra.mxu0 0.0
    %2154 = vmatprep.subr.mxu0 0.0
    %2155 = vmatpush2.msra.mxu0 0.0
    %2156 = vmatprep.subr.mxu0 0.0
    %2157 = vmatpush2.msra.mxu0 0.0
    %2158 = vmatprep.subr.mxu0 0.0
    %2159 = vmatpush2.msra.mxu0 0.0
    %2160 = vmatprep.subr.mxu0 0.0
    %2161 = vmatpush2.msra.mxu0 0.0
    %2162 = vmatprep.subr.mxu0 0.0
    %2163 = vmatpush2.msra.mxu0 0.0
    %2164 = vmatprep.mubr.f32.mxu0 0.0
    %2165 = vmatmul.mubr.f32.gmra.mxu0 %v1516
    %v2166 = vpop.f32.mrf.mxu0
    %v2167 = vadd.f32 0.0, %v2166
    %v2168 = vpop.f32.mrf.mxu0
    %2169 = vdwg.mxu0
    %v2170 = vmul.f32 %v2090, %v1505
    %v2172 = vsel %vm1518, %v2170, 0
    %2174 = vmatprep.subr.mxu0 0.0
    %2175 = vmatpush1.msra.mxu0 0.0
    %2176 = vmatprep.subr.mxu0 0.0
    %2177 = vmatpush1.msra.mxu0 0.0
    %2178 = vmatprep.subr.mxu0 0.0
    %2179 = vmatpush1.msra.mxu0 0.0
    %2180 = vmatprep.subr.mxu0 0.0
    %2181 = vmatpush1.msra.mxu0 0.0
    %2182 = vmatprep.subr.mxu0 0.0
    %2183 = vmatpush1.msra.mxu0 0.0
    %2184 = vmatprep.subr.mxu0 0.0
    %2185 = vmatpush1.msra.mxu0 0.0
    %2186 = vmatprep.subr.mxu0 0.0
    %2187 = vmatpush1.msra.mxu0 0.0
    %2188 = vmatprep.subr.mxu0 0.0
    %2189 = vmatpush1.msra.mxu0 0.0
    %2190 = vmatprep.subr.mxu0 0.0
    %2191 = vmatpush1.msra.mxu0 0.0
    %2192 = vmatprep.subr.mxu0 0.0
    %2193 = vmatpush1.msra.mxu0 0.0
    %2194 = vmatprep.subr.mxu0 0.0
    %2195 = vmatpush1.msra.mxu0 0.0
    %2196 = vmatprep.subr.mxu0 0.0
    %2197 = vmatpush1.msra.mxu0 0.0
    %2198 = vmatprep.subr.mxu0 0.0
    %2199 = vmatpush1.msra.mxu0 0.0
    %2200 = vmatprep.subr.mxu0 0.0
    %2201 = vmatpush1.msra.mxu0 0.0
    %2202 = vmatprep.subr.mxu0 0.0
    %2203 = vmatpush1.msra.mxu0 0.0
    %2204 = vmatprep.subr.mxu0 0.0
    %2205 = vmatpush1.msra.mxu0 %v2172
    %2206 = vmatprep.subr.mxu0 0.0
    %2207 = vmatpush2.msra.mxu0 0.0
    %2208 = vmatprep.subr.mxu0 0.0
    %2209 = vmatpush2.msra.mxu0 0.0
    %2210 = vmatprep.subr.mxu0 0.0
    %2211 = vmatpush2.msra.mxu0 0.0
    %2212 = vmatprep.subr.mxu0 0.0
    %2213 = vmatpush2.msra.mxu0 0.0
    %2214 = vmatprep.subr.mxu0 0.0
    %2215 = vmatpush2.msra.mxu0 0.0
    %2216 = vmatprep.subr.mxu0 0.0
    %2217 = vmatpush2.msra.mxu0 0.0
    %2218 = vmatprep.subr.mxu0 0.0
    %2219 = vmatpush2.msra.mxu0 0.0
    %2220 = vmatprep.subr.mxu0 0.0
    %2221 = vmatpush2.msra.mxu0 0.0
    %2222 = vmatprep.subr.mxu0 0.0
    %2223 = vmatpush2.msra.mxu0 0.0
    %2224 = vmatprep.subr.mxu0 0.0
    %2225 = vmatpush2.msra.mxu0 0.0
    %2226 = vmatprep.subr.mxu0 0.0
    %2227 = vmatpush2.msra.mxu0 0.0
    %2228 = vmatprep.subr.mxu0 0.0
    %2229 = vmatpush2.msra.mxu0 0.0
    %2230 = vmatprep.subr.mxu0 0.0
    %2231 = vmatpush2.msra.mxu0 0.0
    %2232 = vmatprep.subr.mxu0 0.0
    %2233 = vmatpush2.msra.mxu0 0.0
    %2234 = vmatprep.subr.mxu0 0.0
    %2235 = vmatpush2.msra.mxu0 0.0
    %2236 = vmatprep.subr.mxu0 0.0
    %2237 = vmatpush2.msra.mxu0 0.0
    %2238 = vmatprep.mubr.f32.mxu0 0.0
    %2239 = vmatmul.mubr.f32.gmra.mxu0 %v1516
    %v2240 = vpop.f32.mrf.mxu0
    %v2241 = vadd.f32 %v1495, %v2240
    %v2242 = vpop.f32.mrf.mxu0
    %2243 = vdwg.mxu0
    %v2244 = vlaneseq
    %v2245 = vshrl.u32 %v2244, 7
    %v2246 = vsub.s32 0, %v2245
    %v2247 = vrot.slane %v2241, %v2246
    %v2248 = vadd.f32 %v1500, %v2247
    %v2249 = vsel %vm1509, %v2248, -inf
    %2250 = vmax.xlane.f32.xlu0 %v2249
    %v2251 = vpop.xlane.xlu0 %2250
    %vm2252 = vcmp.eq.f32.partialorder %v2248, %v2251
    %v2253 = vsel %vm2252, %v1601, 5.0
    %v2254 = vsel %vm1509, %v2253, inf
    %2255 = vmin.xlane.f32.xlu0 %v2254
    %v2256 = vpop.xlane.xlu0 %2255
    %v2257 = vmul.f32 %v2256, %v1505
    %v2259 = vsel %vm1518, %v2257, 0
    %2261 = vmatprep.subr.mxu0 0.0
    %2262 = vmatpush1.msra.mxu0 0.0
    %2263 = vmatprep.subr.mxu0 0.0
    %2264 = vmatpush1.msra.mxu0 0.0
    %2265 = vmatprep.subr.mxu0 0.0
    %2266 = vmatpush1.msra.mxu0 0.0
    %2267 = vmatprep.subr.mxu0 0.0
    %2268 = vmatpush1.msra.mxu0 0.0
    %2269 = vmatprep.subr.mxu0 0.0
    %2270 = vmatpush1.msra.mxu0 0.0
    %2271 = vmatprep.subr.mxu0 0.0
    %2272 = vmatpush1.msra.mxu0 0.0
    %2273 = vmatprep.subr.mxu0 0.0
    %2274 = vmatpush1.msra.mxu0 0.0
    %2275 = vmatprep.subr.mxu0 0.0
    %2276 = vmatpush1.msra.mxu0 0.0
    %2277 = vmatprep.subr.mxu0 0.0
    %2278 = vmatpush1.msra.mxu0 0.0
    %2279 = vmatprep.subr.mxu0 0.0
    %2280 = vmatpush1.msra.mxu0 0.0
    %2281 = vmatprep.subr.mxu0 0.0
    %2282 = vmatpush1.msra.mxu0 0.0
    %2283 = vmatprep.subr.mxu0 0.0
    %2284 = vmatpush1.msra.mxu0 0.0
    %2285 = vmatprep.subr.mxu0 0.0
    %2286 = vmatpush1.msra.mxu0 0.0
    %2287 = vmatprep.subr.mxu0 0.0
    %2288 = vmatpush1.msra.mxu0 0.0
    %2289 = vmatprep.subr.mxu0 0.0
    %2290 = vmatpush1.msra.mxu0 0.0
    %2291 = vmatprep.subr.mxu0 0.0
    %2292 = vmatpush1.msra.mxu0 %v2259
    %2293 = vmatprep.subr.mxu0 0.0
    %2294 = vmatpush2.msra.mxu0 0.0
    %2295 = vmatprep.subr.mxu0 0.0
    %2296 = vmatpush2.msra.mxu0 0.0
    %2297 = vmatprep.subr.mxu0 0.0
    %2298 = vmatpush2.msra.mxu0 0.0
    %2299 = vmatprep.subr.mxu0 0.0
    %2300 = vmatpush2.msra.mxu0 0.0
    %2301 = vmatprep.subr.mxu0 0.0
    %2302 = vmatpush2.msra.mxu0 0.0
    %2303 = vmatprep.subr.mxu0 0.0
    %2304 = vmatpush2.msra.mxu0 0.0
    %2305 = vmatprep.subr.mxu0 0.0
    %2306 = vmatpush2.msra.mxu0 0.0
    %2307 = vmatprep.subr.mxu0 0.0
    %2308 = vmatpush2.msra.mxu0 0.0
    %2309 = vmatprep.subr.mxu0 0.0
    %2310 = vmatpush2.msra.mxu0 0.0
    %2311 = vmatprep.subr.mxu0 0.0
    %2312 = vmatpush2.msra.mxu0 0.0
    %2313 = vmatprep.subr.mxu0 0.0
    %2314 = vmatpush2.msra.mxu0 0.0
    %2315 = vmatprep.subr.mxu0 0.0
    %2316 = vmatpush2.msra.mxu0 0.0
    %2317 = vmatprep.subr.mxu0 0.0
    %2318 = vmatpush2.msra.mxu0 0.0
    %2319 = vmatprep.subr.mxu0 0.0
    %2320 = vmatpush2.msra.mxu0 0.0
    %2321 = vmatprep.subr.mxu0 0.0
    %2322 = vmatpush2.msra.mxu0 0.0
    %2323 = vmatprep.subr.mxu0 0.0
    %2324 = vmatpush2.msra.mxu0 0.0
    %2325 = vmatprep.mubr.f32.mxu0 0.0
    %2326 = vmatmul.mubr.f32.gmra.mxu0 %v1516
    %v2327 = vpop.f32.mrf.mxu0
    %v2328 = vadd.f32 0.0, %v2327
    %v2329 = vpop.f32.mrf.mxu0
    %2330 = vdwg.mxu0
    %v2331 = vmul.f32 %v2251, %v1505
    %v2333 = vrot.slane %v1495, 2
    %v2336 = vsel %vm1518, %v2331, 0
    %2338 = vmatprep.subr.mxu0 0.0
    %2339 = vmatpush1.msra.mxu0 0.0
    %2340 = vmatprep.subr.mxu0 0.0
    %2341 = vmatpush1.msra.mxu0 0.0
    %2342 = vmatprep.subr.mxu0 0.0
    %2343 = vmatpush1.msra.mxu0 0.0
    %2344 = vmatprep.subr.mxu0 0.0
    %2345 = vmatpush1.msra.mxu0 0.0
    %2346 = vmatprep.subr.mxu0 0.0
    %2347 = vmatpush1.msra.mxu0 0.0
    %2348 = vmatprep.subr.mxu0 0.0
    %2349 = vmatpush1.msra.mxu0 0.0
    %2350 = vmatprep.subr.mxu0 0.0
    %2351 = vmatpush1.msra.mxu0 0.0
    %2352 = vmatprep.subr.mxu0 0.0
    %2353 = vmatpush1.msra.mxu0 0.0
    %2354 = vmatprep.subr.mxu0 0.0
    %2355 = vmatpush1.msra.mxu0 0.0
    %2356 = vmatprep.subr.mxu0 0.0
    %2357 = vmatpush1.msra.mxu0 0.0
    %2358 = vmatprep.subr.mxu0 0.0
    %2359 = vmatpush1.msra.mxu0 0.0
    %2360 = vmatprep.subr.mxu0 0.0
    %2361 = vmatpush1.msra.mxu0 0.0
    %2362 = vmatprep.subr.mxu0 0.0
    %2363 = vmatpush1.msra.mxu0 0.0
    %2364 = vmatprep.subr.mxu0 0.0
    %2365 = vmatpush1.msra.mxu0 0.0
    %2366 = vmatprep.subr.mxu0 0.0
    %2367 = vmatpush1.msra.mxu0 0.0
    %2368 = vmatprep.subr.mxu0 0.0
    %2369 = vmatpush1.msra.mxu0 %v2336
    %2370 = vmatprep.subr.mxu0 0.0
    %2371 = vmatpush2.msra.mxu0 0.0
    %2372 = vmatprep.subr.mxu0 0.0
    %2373 = vmatpush2.msra.mxu0 0.0
    %2374 = vmatprep.subr.mxu0 0.0
    %2375 = vmatpush2.msra.mxu0 0.0
    %2376 = vmatprep.subr.mxu0 0.0
    %2377 = vmatpush2.msra.mxu0 0.0
    %2378 = vmatprep.subr.mxu0 0.0
    %2379 = vmatpush2.msra.mxu0 0.0
    %2380 = vmatprep.subr.mxu0 0.0
    %2381 = vmatpush2.msra.mxu0 0.0
    %2382 = vmatprep.subr.mxu0 0.0
    %2383 = vmatpush2.msra.mxu0 0.0
    %2384 = vmatprep.subr.mxu0 0.0
    %2385 = vmatpush2.msra.mxu0 0.0
    %2386 = vmatprep.subr.mxu0 0.0
    %2387 = vmatpush2.msra.mxu0 0.0
    %2388 = vmatprep.subr.mxu0 0.0
    %2389 = vmatpush2.msra.mxu0 0.0
    %2390 = vmatprep.subr.mxu0 0.0
    %2391 = vmatpush2.msra.mxu0 0.0
    %2392 = vmatprep.subr.mxu0 0.0
    %2393 = vmatpush2.msra.mxu0 0.0
    %2394 = vmatprep.subr.mxu0 0.0
    %2395 = vmatpush2.msra.mxu0 0.0
    %2396 = vmatprep.subr.mxu0 0.0
    %2397 = vmatpush2.msra.mxu0 0.0
    %2398 = vmatprep.subr.mxu0 0.0
    %2399 = vmatpush2.msra.mxu0 0.0
    %2400 = vmatprep.subr.mxu0 0.0
    %2401 = vmatpush2.msra.mxu0 0.0
    %2402 = vmatprep.mubr.f32.mxu0 0.0
    %2403 = vmatmul.mubr.f32.gmra.mxu0 %v1516
    %v2404 = vpop.f32.mrf.mxu0
    %v2405 = vadd.f32 %v2333, %v2404
    %v2406 = vpop.f32.mrf.mxu0
    %2407 = vdwg.mxu0
    %v2408 = vlaneseq
    %v2409 = vshrl.u32 %v2408, 7
    %v2410 = vsub.s32 0, %v2409
    %v2411 = vrot.slane %v2405, %v2410
    %v2412 = vadd.f32 %v1500, %v2411
    %v2413 = vsel %vm1509, %v2412, -inf
    %2414 = vmax.xlane.f32.xlu0 %v2413
    %v2415 = vpop.xlane.xlu0 %2414
    %vm2416 = vcmp.eq.f32.partialorder %v2412, %v2415
    %v2417 = vsel %vm2416, %v1601, 5.0
    %v2418 = vsel %vm1509, %v2417, inf
    %2419 = vmin.xlane.f32.xlu0 %v2418
    %v2420 = vpop.xlane.xlu0 %2419
    %v2421 = vmul.f32 %v2420, %v1505
    %v2423 = vsel %vm1518, %v2421, 0
    %2425 = vmatprep.subr.mxu0 0.0
    %2426 = vmatpush1.msra.mxu0 0.0
    %2427 = vmatprep.subr.mxu0 0.0
    %2428 = vmatpush1.msra.mxu0 0.0
    %2429 = vmatprep.subr.mxu0 0.0
    %2430 = vmatpush1.msra.mxu0 0.0
    %2431 = vmatprep.subr.mxu0 0.0
    %2432 = vmatpush1.msra.mxu0 0.0
    %2433 = vmatprep.subr.mxu0 0.0
    %2434 = vmatpush1.msra.mxu0 0.0
    %2435 = vmatprep.subr.mxu0 0.0
    %2436 = vmatpush1.msra.mxu0 0.0
    %2437 = vmatprep.subr.mxu0 0.0
    %2438 = vmatpush1.msra.mxu0 0.0
    %2439 = vmatprep.subr.mxu0 0.0
    %2440 = vmatpush1.msra.mxu0 0.0
    %2441 = vmatprep.subr.mxu0 0.0
    %2442 = vmatpush1.msra.mxu0 0.0
    %2443 = vmatprep.subr.mxu0 0.0
    %2444 = vmatpush1.msra.mxu0 0.0
    %2445 = vmatprep.subr.mxu0 0.0
    %2446 = vmatpush1.msra.mxu0 0.0
    %2447 = vmatprep.subr.mxu0 0.0
    %2448 = vmatpush1.msra.mxu0 0.0
    %2449 = vmatprep.subr.mxu0 0.0
    %2450 = vmatpush1.msra.mxu0 0.0
    %2451 = vmatprep.subr.mxu0 0.0
    %2452 = vmatpush1.msra.mxu0 0.0
    %2453 = vmatprep.subr.mxu0 0.0
    %2454 = vmatpush1.msra.mxu0 0.0
    %2455 = vmatprep.subr.mxu0 0.0
    %2456 = vmatpush1.msra.mxu0 %v2423
    %2457 = vmatprep.subr.mxu0 0.0
    %2458 = vmatpush2.msra.mxu0 0.0
    %2459 = vmatprep.subr.mxu0 0.0
    %2460 = vmatpush2.msra.mxu0 0.0
    %2461 = vmatprep.subr.mxu0 0.0
    %2462 = vmatpush2.msra.mxu0 0.0
    %2463 = vmatprep.subr.mxu0 0.0
    %2464 = vmatpush2.msra.mxu0 0.0
    %2465 = vmatprep.subr.mxu0 0.0
    %2466 = vmatpush2.msra.mxu0 0.0
    %2467 = vmatprep.subr.mxu0 0.0
    %2468 = vmatpush2.msra.mxu0 0.0
    %2469 = vmatprep.subr.mxu0 0.0
    %2470 = vmatpush2.msra.mxu0 0.0
    %2471 = vmatprep.subr.mxu0 0.0
    %2472 = vmatpush2.msra.mxu0 0.0
    %2473 = vmatprep.subr.mxu0 0.0
    %2474 = vmatpush2.msra.mxu0 0.0
    %2475 = vmatprep.subr.mxu0 0.0
    %2476 = vmatpush2.msra.mxu0 0.0
    %2477 = vmatprep.subr.mxu0 0.0
    %2478 = vmatpush2.msra.mxu0 0.0
    %2479 = vmatprep.subr.mxu0 0.0
    %2480 = vmatpush2.msra.mxu0 0.0
    %2481 = vmatprep.subr.mxu0 0.0
    %2482 = vmatpush2.msra.mxu0 0.0
    %2483 = vmatprep.subr.mxu0 0.0
    %2484 = vmatpush2.msra.mxu0 0.0
    %2485 = vmatprep.subr.mxu0 0.0
    %2486 = vmatpush2.msra.mxu0 0.0
    %2487 = vmatprep.subr.mxu0 0.0
    %2488 = vmatpush2.msra.mxu0 0.0
    %2489 = vmatprep.mubr.f32.mxu0 0.0
    %2490 = vmatmul.mubr.f32.gmra.mxu0 %v1516
    %v2491 = vpop.f32.mrf.mxu0
    %v2492 = vadd.f32 0.0, %v2491
    %v2493 = vpop.f32.mrf.mxu0
    %2494 = vdwg.mxu0
    %v2495 = vmul.f32 %v2415, %v1505
    %v2496 = vrot.slane %v1495, 4
    %v2499 = vsel %vm1518, %v2495, 0
    %2501 = vmatprep.subr.mxu0 0.0
    %2502 = vmatpush1.msra.mxu0 0.0
    %2503 = vmatprep.subr.mxu0 0.0
    %2504 = vmatpush1.msra.mxu0 0.0
    %2505 = vmatprep.subr.mxu0 0.0
    %2506 = vmatpush1.msra.mxu0 0.0
    %2507 = vmatprep.subr.mxu0 0.0
    %2508 = vmatpush1.msra.mxu0 0.0
    %2509 = vmatprep.subr.mxu0 0.0
    %2510 = vmatpush1.msra.mxu0 0.0
    %2511 = vmatprep.subr.mxu0 0.0
    %2512 = vmatpush1.msra.mxu0 0.0
    %2513 = vmatprep.subr.mxu0 0.0
    %2514 = vmatpush1.msra.mxu0 0.0
    %2515 = vmatprep.subr.mxu0 0.0
    %2516 = vmatpush1.msra.mxu0 0.0
    %2517 = vmatprep.subr.mxu0 0.0
    %2518 = vmatpush1.msra.mxu0 0.0
    %2519 = vmatprep.subr.mxu0 0.0
    %2520 = vmatpush1.msra.mxu0 0.0
    %2521 = vmatprep.subr.mxu0 0.0
    %2522 = vmatpush1.msra.mxu0 0.0
    %2523 = vmatprep.subr.mxu0 0.0
    %2524 = vmatpush1.msra.mxu0 0.0
    %2525 = vmatprep.subr.mxu0 0.0
    %2526 = vmatpush1.msra.mxu0 0.0
    %2527 = vmatprep.subr.mxu0 0.0
    %2528 = vmatpush1.msra.mxu0 0.0
    %2529 = vmatprep.subr.mxu0 0.0
    %2530 = vmatpush1.msra.mxu0 0.0
    %2531 = vmatprep.subr.mxu0 0.0
    %2532 = vmatpush1.msra.mxu0 %v2499
    %2533 = vmatprep.subr.mxu0 0.0
    %2534 = vmatpush2.msra.mxu0 0.0
    %2535 = vmatprep.subr.mxu0 0.0
    %2536 = vmatpush2.msra.mxu0 0.0
    %2537 = vmatprep.subr.mxu0 0.0
    %2538 = vmatpush2.msra.mxu0 0.0
    %2539 = vmatprep.subr.mxu0 0.0
    %2540 = vmatpush2.msra.mxu0 0.0
    %2541 = vmatprep.subr.mxu0 0.0
    %2542 = vmatpush2.msra.mxu0 0.0
    %2543 = vmatprep.subr.mxu0 0.0
    %2544 = vmatpush2.msra.mxu0 0.0
    %2545 = vmatprep.subr.mxu0 0.0
    %2546 = vmatpush2.msra.mxu0 0.0
    %2547 = vmatprep.subr.mxu0 0.0
    %2548 = vmatpush2.msra.mxu0 0.0
    %2549 = vmatprep.subr.mxu0 0.0
    %2550 = vmatpush2.msra.mxu0 0.0
    %2551 = vmatprep.subr.mxu0 0.0
    %2552 = vmatpush2.msra.mxu0 0.0
    %2553 = vmatprep.subr.mxu0 0.0
    %2554 = vmatpush2.msra.mxu0 0.0
    %2555 = vmatprep.subr.mxu0 0.0
    %2556 = vmatpush2.msra.mxu0 0.0
    %2557 = vmatprep.subr.mxu0 0.0
    %2558 = vmatpush2.msra.mxu0 0.0
    %2559 = vmatprep.subr.mxu0 0.0
    %2560 = vmatpush2.msra.mxu0 0.0
    %2561 = vmatprep.subr.mxu0 0.0
    %2562 = vmatpush2.msra.mxu0 0.0
    %2563 = vmatprep.subr.mxu0 0.0
    %2564 = vmatpush2.msra.mxu0 0.0
    %2565 = vmatprep.mubr.f32.mxu0 0.0
    %2566 = vmatmul.mubr.f32.gmra.mxu0 %v1516
    %v2567 = vpop.f32.mrf.mxu0
    %v2568 = vadd.f32 %v2496, %v2567
    %v2569 = vpop.f32.mrf.mxu0
    %2570 = vdwg.mxu0
    %v2571 = vlaneseq
    %v2572 = vshrl.u32 %v2571, 7
    %v2573 = vsub.s32 0, %v2572
    %v2574 = vrot.slane %v2568, %v2573
    %v2575 = vadd.f32 %v1500, %v2574
    %v2576 = vsel %vm1509, %v2575, -inf
    %2577 = vmax.xlane.f32.xlu0 %v2576
    %v2578 = vpop.xlane.xlu0 %2577
    %vm2579 = vcmp.eq.f32.partialorder %v2575, %v2578
    %v2580 = vsel %vm2579, %v1601, 5.0
    %v2581 = vsel %vm1509, %v2580, inf
    %2582 = vmin.xlane.f32.xlu0 %v2581
    %v2583 = vpop.xlane.xlu0 %2582
    %v2584 = vmul.f32 %v2583, %v1505
    %v2586 = vsel %vm1518, %v2584, 0
    %2588 = vmatprep.subr.mxu0 0.0
    %2589 = vmatpush1.msra.mxu0 0.0
    %2590 = vmatprep.subr.mxu0 0.0
    %2591 = vmatpush1.msra.mxu0 0.0
    %2592 = vmatprep.subr.mxu0 0.0
    %2593 = vmatpush1.msra.mxu0 0.0
    %2594 = vmatprep.subr.mxu0 0.0
    %2595 = vmatpush1.msra.mxu0 0.0
    %2596 = vmatprep.subr.mxu0 0.0
    %2597 = vmatpush1.msra.mxu0 0.0
    %2598 = vmatprep.subr.mxu0 0.0
    %2599 = vmatpush1.msra.mxu0 0.0
    %2600 = vmatprep.subr.mxu0 0.0
    %2601 = vmatpush1.msra.mxu0 0.0
    %2602 = vmatprep.subr.mxu0 0.0
    %2603 = vmatpush1.msra.mxu0 0.0
    %2604 = vmatprep.subr.mxu0 0.0
    %2605 = vmatpush1.msra.mxu0 0.0
    %2606 = vmatprep.subr.mxu0 0.0
    %2607 = vmatpush1.msra.mxu0 0.0
    %2608 = vmatprep.subr.mxu0 0.0
    %2609 = vmatpush1.msra.mxu0 0.0
    %2610 = vmatprep.subr.mxu0 0.0
    %2611 = vmatpush1.msra.mxu0 0.0
    %2612 = vmatprep.subr.mxu0 0.0
    %2613 = vmatpush1.msra.mxu0 0.0
    %2614 = vmatprep.subr.mxu0 0.0
    %2615 = vmatpush1.msra.mxu0 0.0
    %2616 = vmatprep.subr.mxu0 0.0
    %2617 = vmatpush1.msra.mxu0 0.0
    %2618 = vmatprep.subr.mxu0 0.0
    %2619 = vmatpush1.msra.mxu0 %v2586
    %2620 = vmatprep.subr.mxu0 0.0
    %2621 = vmatpush2.msra.mxu0 0.0
    %2622 = vmatprep.subr.mxu0 0.0
    %2623 = vmatpush2.msra.mxu0 0.0
    %2624 = vmatprep.subr.mxu0 0.0
    %2625 = vmatpush2.msra.mxu0 0.0
    %2626 = vmatprep.subr.mxu0 0.0
    %2627 = vmatpush2.msra.mxu0 0.0
    %2628 = vmatprep.subr.mxu0 0.0
    %2629 = vmatpush2.msra.mxu0 0.0
    %2630 = vmatprep.subr.mxu0 0.0
    %2631 = vmatpush2.msra.mxu0 0.0
    %2632 = vmatprep.subr.mxu0 0.0
    %2633 = vmatpush2.msra.mxu0 0.0
    %2634 = vmatprep.subr.mxu0 0.0
    %2635 = vmatpush2.msra.mxu0 0.0
    %2636 = vmatprep.subr.mxu0 0.0
    %2637 = vmatpush2.msra.mxu0 0.0
    %2638 = vmatprep.subr.mxu0 0.0
    %2639 = vmatpush2.msra.mxu0 0.0
    %2640 = vmatprep.subr.mxu0 0.0
    %2641 = vmatpush2.msra.mxu0 0.0
    %2642 = vmatprep.subr.mxu0 0.0
    %2643 = vmatpush2.msra.mxu0 0.0
    %2644 = vmatprep.subr.mxu0 0.0
    %2645 = vmatpush2.msra.mxu0 0.0
    %2646 = vmatprep.subr.mxu0 0.0
    %2647 = vmatpush2.msra.mxu0 0.0
    %2648 = vmatprep.subr.mxu0 0.0
    %2649 = vmatpush2.msra.mxu0 0.0
    %2650 = vmatprep.subr.mxu0 0.0
    %2651 = vmatpush2.msra.mxu0 0.0
    %2652 = vmatprep.mubr.f32.mxu0 0.0
    %2653 = vmatmul.mubr.f32.gmra.mxu0 %v1516
    %v2654 = vpop.f32.mrf.mxu0
    %v2655 = vadd.f32 0.0, %v2654
    %v2656 = vpop.f32.mrf.mxu0
    %2657 = vdwg.mxu0
    %v2658 = vmul.f32 %v2578, %v1505
    %v2659 = vrot.slane %v1495, 6
    %v2662 = vsel %vm1518, %v2658, 0
    %2664 = vmatprep.subr.mxu0 0.0
    %2665 = vmatpush1.msra.mxu0 0.0
    %2666 = vmatprep.subr.mxu0 0.0
    %2667 = vmatpush1.msra.mxu0 0.0
    %2668 = vmatprep.subr.mxu0 0.0
    %2669 = vmatpush1.msra.mxu0 0.0
    %2670 = vmatprep.subr.mxu0 0.0
    %2671 = vmatpush1.msra.mxu0 0.0
    %2672 = vmatprep.subr.mxu0 0.0
    %2673 = vmatpush1.msra.mxu0 0.0
    %2674 = vmatprep.subr.mxu0 0.0
    %2675 = vmatpush1.msra.mxu0 0.0
    %2676 = vmatprep.subr.mxu0 0.0
    %2677 = vmatpush1.msra.mxu0 0.0
    %2678 = vmatprep.subr.mxu0 0.0
    %2679 = vmatpush1.msra.mxu0 0.0
    %2680 = vmatprep.subr.mxu0 0.0
    %2681 = vmatpush1.msra.mxu0 0.0
    %2682 = vmatprep.subr.mxu0 0.0
    %2683 = vmatpush1.msra.mxu0 0.0
    %2684 = vmatprep.subr.mxu0 0.0
    %2685 = vmatpush1.msra.mxu0 0.0
    %2686 = vmatprep.subr.mxu0 0.0
    %2687 = vmatpush1.msra.mxu0 0.0
    %2688 = vmatprep.subr.mxu0 0.0
    %2689 = vmatpush1.msra.mxu0 0.0
    %2690 = vmatprep.subr.mxu0 0.0
    %2691 = vmatpush1.msra.mxu0 0.0
    %2692 = vmatprep.subr.mxu0 0.0
    %2693 = vmatpush1.msra.mxu0 0.0
    %2694 = vmatprep.subr.mxu0 0.0
    %2695 = vmatpush1.msra.mxu0 %v2662
    %2696 = vmatprep.subr.mxu0 0.0
    %2697 = vmatpush2.msra.mxu0 0.0
    %2698 = vmatprep.subr.mxu0 0.0
    %2699 = vmatpush2.msra.mxu0 0.0
    %2700 = vmatprep.subr.mxu0 0.0
    %2701 = vmatpush2.msra.mxu0 0.0
    %2702 = vmatprep.subr.mxu0 0.0
    %2703 = vmatpush2.msra.mxu0 0.0
    %2704 = vmatprep.subr.mxu0 0.0
    %2705 = vmatpush2.msra.mxu0 0.0
    %2706 = vmatprep.subr.mxu0 0.0
    %2707 = vmatpush2.msra.mxu0 0.0
    %2708 = vmatprep.subr.mxu0 0.0
    %2709 = vmatpush2.msra.mxu0 0.0
    %2710 = vmatprep.subr.mxu0 0.0
    %2711 = vmatpush2.msra.mxu0 0.0
    %2712 = vmatprep.subr.mxu0 0.0
    %2713 = vmatpush2.msra.mxu0 0.0
    %2714 = vmatprep.subr.mxu0 0.0
    %2715 = vmatpush2.msra.mxu0 0.0
    %2716 = vmatprep.subr.mxu0 0.0
    %2717 = vmatpush2.msra.mxu0 0.0
    %2718 = vmatprep.subr.mxu0 0.0
    %2719 = vmatpush2.msra.mxu0 0.0
    %2720 = vmatprep.subr.mxu0 0.0
    %2721 = vmatpush2.msra.mxu0 0.0
    %2722 = vmatprep.subr.mxu0 0.0
    %2723 = vmatpush2.msra.mxu0 0.0
    %2724 = vmatprep.subr.mxu0 0.0
    %2725 = vmatpush2.msra.mxu0 0.0
    %2726 = vmatprep.subr.mxu0 0.0
    %2727 = vmatpush2.msra.mxu0 0.0
    %2728 = vmatprep.mubr.f32.mxu0 0.0
    %2729 = vmatmul.mubr.f32.gmra.mxu0 %v1516
    %v2730 = vpop.f32.mrf.mxu0
    %v2731 = vadd.f32 %v2659, %v2730
    %v2732 = vpop.f32.mrf.mxu0
    %2733 = vdwg.mxu0
    %v2735 = vrot.slane %v1500, 4
    %v2737 = vadd.f32 %v2731, %v2735
    %vm2738 = vcmask 32768
    %v2739 = vsel %vm2738, %v2737, -inf
    %2740 = vmax.xlane.f32.xlu0 %v2739
    %v2741 = vpop.xlane.xlu0 %2740
    %vm2742 = vcmp.eq.f32.partialorder %v2737, %v2741
    %v2743 = vsel %vm2742, %v1601, 5.0
    %v2744 = vsel %vm2738, %v2743, inf
    %2745 = vmin.xlane.f32.xlu0 %v2744
    %v2746 = vpop.xlane.xlu0 %2745
    %vm2747 = vcmask 0
    %2748 = vst.msk [vmem:[#allocation13] sm:$0x1] %vm2747, %v2741
    %v2749 = vcvt.f32.s32.to.zero.pseudo %v2746
    %vm2750 = vcmp.eq.s32.totalorder %v101, %v2749
    %v2751 = vsel %vm2750, 1, 0
    %v2752 = vcvt.s32.f32 %v2751
    %2753 = vst.msk [vmem:[%s15 + $0x7] sm:$0x1] %vm2747, %v2749
    %v2754 = vmul.f32 %v2655, %v2752
    %v2755 = vsel %vm2738, %v2754, 0.0
    %2756 = vadd.xlane.f32.xlu0 %v2755
    %v2757 = vpop.xlane.xlu0 %2756
    %v2758 = vcvt.f32.s32.to.zero.pseudo %v2757
    %2759 = vst.msk [vmem:[%s15 + $0x6] sm:$0x1] %vm2747, %v2758
    %vm2760 = vcmp.eq.s32.totalorder %v101, %v2758
    %v2761 = vsel %vm2760, 1, 0
    %v2762 = vcvt.s32.f32 %v2761
    %v2763 = vmul.f32 %v2492, %v2762
    %v2764 = vsel %vm2738, %v2763, 0.0
    %2765 = vadd.xlane.f32.xlu0 %v2764
    %v2766 = vpop.xlane.xlu0 %2765
    %v2767 = vcvt.f32.s32.to.zero.pseudo %v2766
    %2768 = vst.msk [vmem:[%s15 + $0x5] sm:$0x1] %vm2747, %v2767
    %vm2769 = vcmp.eq.s32.totalorder %v101, %v2767
    %v2770 = vsel %vm2769, 1, 0
    %v2771 = vcvt.s32.f32 %v2770
    %v2772 = vmul.f32 %v2328, %v2771
    %v2773 = vsel %vm2738, %v2772, 0.0
    %2774 = vadd.xlane.f32.xlu0 %v2773
    %v2775 = vpop.xlane.xlu0 %2774
    %v2776 = vcvt.f32.s32.to.zero.pseudo %v2775
    %2777 = vst.msk [vmem:[%s15 + $0x4] sm:$0x1] %vm2747, %v2776
    %vm2778 = vcmp.eq.s32.totalorder %v101, %v2776
    %v2779 = vsel %vm2778, 1, 0
    %v2780 = vcvt.s32.f32 %v2779
    %v2781 = vmul.f32 %v2167, %v2780
    %v2782 = vsel %vm2738, %v2781, 0.0
    %2783 = vadd.xlane.f32.xlu0 %v2782
    %v2784 = vpop.xlane.xlu0 %2783
    %v2785 = vcvt.f32.s32.to.zero.pseudo %v2784
    %2786 = vst.msk [vmem:[%s15 + $0x3] sm:$0x1] %vm2747, %v2785
    %vm2787 = vcmp.eq.s32.totalorder %v101, %v2785
    %v2788 = vsel %vm2787, 1, 0
    %v2789 = vcvt.s32.f32 %v2788
    %v2790 = vmul.f32 %v2004, %v2789
    %v2791 = vsel %vm2738, %v2790, 0.0
    %2792 = vadd.xlane.f32.xlu0 %v2791
    %v2793 = vpop.xlane.xlu0 %2792
    %v2794 = vcvt.f32.s32.to.zero.pseudo %v2793
    %2795 = vst.msk [vmem:[%s15 + $0x2] sm:$0x1] %vm2747, %v2794
    %vm2796 = vcmp.eq.s32.totalorder %v101, %v2794
    %v2797 = vsel %vm2796, 1, 0
    %v2798 = vcvt.s32.f32 %v2797
    %v2799 = vmul.f32 %v1841, %v2798
    %v2800 = vsel %vm2738, %v2799, 0.0
    %2801 = vadd.xlane.f32.xlu0 %v2800
    %v2802 = vpop.xlane.xlu0 %2801
    %v2803 = vcvt.f32.s32.to.zero.pseudo %v2802
    %2804 = vst.msk [vmem:[%s15 + $0x1] sm:$0x1] %vm2747, %v2803
    %vm2805 = vcmp.eq.s32.totalorder %v101, %v2803
    %v2806 = vsel %vm2805, 1, 0
    %v2807 = vcvt.s32.f32 %v2806
    %v2808 = vmul.f32 %v1677, %v2807
    %v2809 = vsel %vm2738, %v2808, 0.0
    %2810 = vadd.xlane.f32.xlu0 %v2809
    %v2811 = vpop.xlane.xlu0 %2810
    %v2812 = vcvt.f32.s32.to.zero.pseudo %v2811
    %2813 = vst.msk [vmem:[%s15] sm:$0x1] %vm2747, %v2812
    // Predicated region
    $region70: #{bilstm_crf_forward.1} parent=1 // pred_check
      _
    $region71: #{bilstm_crf_forward.1} parent=1 // pred_check_branch
      %2815 = sbr.rel (0) target = $region73
    $region72: #{bilstm_crf_forward.1} parent=1 // pred_region
      %s2817 = ssub.s32 256, 256
      %2818 = vsyncadd [#allocation6], %s2817
      %s2819 = sshll.u32 [#allocation12], 4
      %s2820 = int_to_ptr.vmem [resolvable:$true] %s2819
      %2825 = dma.vmem_to_hbm [thread:$0]  %s2820, 256, %s13, [#allocation6], 128, 128, 8
    $region73: #{bilstm_crf_forward.1} parent=1 // pred_fallthru
      _
    // Predicated region
    $region74: #{bilstm_crf_forward.1} parent=1 // pred_check
      _
    $region75: #{bilstm_crf_forward.1} parent=1 // pred_check_branch
      %2827 = sbr.rel (0) target = $region77
    $region76: #{bilstm_crf_forward.1} parent=1 // pred_region
      %s2829 = ssub.s32 16, 16
      %2830 = vsyncadd [#allocation14], %s2829
      %s2832 = sshll.u32 [#allocation13], 4
      %s2833 = int_to_ptr.vmem [resolvable:$true] %s2832
      %2835 = dma.vmem_to_hbm [thread:$0]  %s2833, 16, %s14, [#allocation14]
    $region77: #{bilstm_crf_forward.1} parent=1 // pred_fallthru
      _
    // Predicated region
    $region78: #{bilstm_crf_forward.1} parent=1 // pred_check
      _
    $region79: #{bilstm_crf_forward.1} parent=1 // pred_check_branch
      %2837 = sbr.rel (0) target = $region81
    $region80: #{bilstm_crf_forward.1} parent=1 // pred_region
      _
    $region81: #{bilstm_crf_forward.1} parent=1 // pred_fallthru
      _
    // Predicated region
    $region82: #{bilstm_crf_forward.1} parent=1 // pred_check
      _
    $region83: #{bilstm_crf_forward.1} parent=1 // pred_check_branch
      %2839 = sbr.rel (0) target = $region85
    $region84: #{bilstm_crf_forward.1} parent=1 // pred_region
      %2840 = dma.done [#allocation6], 256
    $region85: #{bilstm_crf_forward.1} parent=1 // pred_fallthru
      _
    // Predicated region
    $region86: #{bilstm_crf_forward.1} parent=1 // pred_check
      _
    $region87: #{bilstm_crf_forward.1} parent=1 // pred_check_branch
      %2842 = sbr.rel (0) target = $region89
    $region88: #{bilstm_crf_forward.1} parent=1 // pred_region
      %2843 = dma.done [#allocation14], 16
    $region89: #{bilstm_crf_forward.1} parent=1 // pred_fallthru
      _
    // Predicated region
    $region90: #{bilstm_crf_forward.1} parent=1 // pred_check
      _
    $region91: #{bilstm_crf_forward.1} parent=1 // pred_check_branch
      %2845 = sbr.rel (0) target = $region93
    $region92: #{bilstm_crf_forward.1} parent=1 // pred_region
      _
    $region93: #{bilstm_crf_forward.1} parent=1 // pred_fallthru
      _
    %2846 = vsyncpa [#allocation5], 1
    %2847 = vsyncpa [#allocation8], 1
    %2848 = vsyncpa [#allocation11], 1
    %2849 = vsyncpa [#allocation6], 1
    %2850 = vsyncpa [#allocation14], 1

</llo_original>
